<compile_context>
chip_gen: v7x
topology: tpu7x:2x2x1
jax: 0.10.0
libtpu: 0.0.40
codegen_flags: <defaults>
</compile_context>

<pallas_src>
import jax
import jax.numpy as jnp
from jax.experimental import pallas as pl
from jax.experimental.pallas import tpu as pltpu

# ---- static shapes (small MNIST-like input, reduced spatial size) ----
H_IN, W_IN = 16, 16
C_IN = 1
C1, C2 = 32, 64
K = 3
H1, W1 = H_IN - K + 1, W_IN - K + 1      # 14, 14  after conv1
H2, W2 = H1 - K + 1, W1 - K + 1          # 12, 12  after conv2
HP, WP = H2 // 2, W2 // 2                # 6, 6    after max_pool2d(2)

L1 = W1 * C1                             # 448   lane width of conv1 activation rows
L1P = 512                                # 448 padded to a lane-tile multiple (per-kh block in T)
L2 = W2 * C2                             # 768   lane width of conv2 activation rows
T_COLS = K * L1P                         # 1536  conv1 row-Toeplitz weight width
U_COLS = K * L2                          # 2304  conv2 row-Toeplitz weight width
OUT_L = WP * C2                          # 384   lane width of pooled output rows


def netpart1_kernel(x_ref, t_ref, b1_ref, u_ref, b2_ref, o_ref):
    """Fused conv1+relu+conv2+relu+maxpool for a tile of `bb` images.

    x_ref : (bb, 16, 16)   input images (C=1 squeezed out)
    t_ref : (16, 1536)     conv1 row-Toeplitz weight (3 kh-blocks of 512 lanes)
    b1_ref: (1, 448)       conv1 bias tiled over W (lane = w*32 + c)
    u_ref : (448, 2304)    conv2 row-Toeplitz weight (3 kh-blocks of 768 lanes)
    b2_ref: (1, 768)       conv2 bias tiled over W (lane = w*64 + n)
    o_ref : (bb, 6, 384)   pooled output, lane = j*64 + n, sublane = pooled row i
    """
    bb = x_ref.shape[0]
    cdt = t_ref.dtype                                     # matmul operand dtype

    # ---------------- conv1: one MXU matmul over full image rows ----------------
    # r[b, hh, kh*512 + w*32 + c] = sum_kw x[b, hh, w+kw] * w1[c, 0, kh, kw]
    x2 = x_ref[...].reshape(bb * H_IN, W_IN).astype(cdt)            # (bb*16, 16), free reshape
    r = jnp.dot(x2, t_ref[...],
                preferred_element_type=jnp.float32).reshape(bb, H_IN, T_COLS)
    # Sum the three kh-shifted row blocks (sublane-offset slices, 128-aligned lanes).
    a1 = jnp.maximum(
        r[:, 0:H1, 0:L1]
        + r[:, 1:H1 + 1, L1P:L1P + L1]
        + r[:, 2:H1 + 2, 2 * L1P:2 * L1P + L1]
        + b1_ref[...], 0.0)                                         # (bb, 14, 448) lane-dense

    # Pad H 14 -> 16 so the leading-dim merge below is layout-free (rows 14,15 unused).
    a1p = jnp.concatenate([a1, jnp.zeros((bb, 2, L1), jnp.float32)], axis=1)  # (bb, 16, 448)

    # ---------------- conv2: one MXU matmul over conv1 rows ----------------
    # s[b, hh, kh*768 + w*64 + n] = sum_{kw,c} a1[b, hh, w+kw, c] * w2[n, c, kh, kw]
    s = jnp.dot(a1p.reshape(bb * H_IN, L1).astype(cdt), u_ref[...],
                preferred_element_type=jnp.float32).reshape(bb, H_IN, U_COLS)
    y = jnp.maximum(
        s[:, 0:H2, 0:L2]
        + s[:, 1:H2 + 1, L2:2 * L2]
        + s[:, 2:H2 + 2, 2 * L2:3 * L2]
        + b2_ref[...], 0.0)                                         # (bb, 12, 768) lane-dense

    # ---------------- max_pool2d(2), vectorized ----------------
    # Pool W: max over adjacent 64-lane channel groups (6 maxes, 1 lane concat).
    pw = jnp.concatenate(
        [jnp.maximum(y[:, :, (2 * j) * C2:(2 * j + 1) * C2],
                     y[:, :, (2 * j + 1) * C2:(2 * j + 2) * C2])
         for j in range(WP)], axis=-1)                              # (bb, 12, 384)
    # Pool H: max over adjacent sublane pairs (6 maxes, 1 sublane concat).
    o_ref[...] = jnp.concatenate(
        [jnp.maximum(pw[:, 2 * i:2 * i + 1, :], pw[:, 2 * i + 1:2 * i + 2, :])
         for i in range(HP)], axis=1)                               # (bb, 6, 384)
    # Dropout2d(0.25): identity in eval mode -> nothing to do.


def _prep_weights(w1_oihw, b1, w2_oihw, b2, dtype):
    """Build the row-Toeplitz matmul weights (wrapper-side, pure weight prep)."""
    f32 = jnp.float32
    # conv1: T[ww, kh*512 + w*32 + c] = w1[c, 0, kh, ww-w]  for 0 <= ww-w <= 2
    w1t = jnp.transpose(w1_oihw.astype(f32), (2, 3, 0, 1))[:, :, :, 0]          # (kh, kw, c)
    sel1 = (jnp.arange(W_IN)[None, None, :] ==
            (jnp.arange(W1)[None, :, None] + jnp.arange(K)[:, None, None])
            ).astype(f32)                                                       # (kw, w, ww)
    t_blocks = []
    for kh in range(K):
        tk = jnp.einsum('kwx,kc->xwc', sel1, w1t[kh]).reshape(W_IN, L1)         # (16, 448)
        t_blocks.append(jnp.pad(tk, ((0, 0), (0, L1P - L1))))                   # (16, 512)
    t_mat = jnp.concatenate(t_blocks, axis=1).astype(dtype)                     # (16, 1536)

    # conv2: U[ww*32 + c, kh*768 + w*64 + n] = w2[n, c, kh, ww-w]  for 0 <= ww-w <= 2
    w2t = jnp.transpose(w2_oihw.astype(f32), (2, 3, 1, 0))                      # (kh, kw, c, n)
    sel2 = (jnp.arange(W1)[None, None, :] ==
            (jnp.arange(W2)[None, :, None] + jnp.arange(K)[:, None, None])
            ).astype(f32)                                                       # (kw, w, ww)
    u_blocks = [jnp.einsum('kwx,kcn->xcwn', sel2, w2t[kh]).reshape(L1, L2)
                for kh in range(K)]
    u_mat = jnp.concatenate(u_blocks, axis=1).astype(dtype)                     # (448, 2304)

    b1t = jnp.tile(b1.astype(f32), W1).reshape(1, L1)                           # (1, 448)
    b2t = jnp.tile(b2.astype(f32), W2).reshape(1, L2)                           # (1, 768)
    return t_mat, b1t, u_mat, b2t


def netpart1_forward(x_nchw, w1_oihw, b1, w2_oihw, b2, *,
                     block_n=32, compute_dtype=jnp.float32):
    """x_nchw: (N, 1, 16, 16) float32; conv weights in torch OIHW layout."""
    n = x_nchw.shape[0]
    # Keep the grid >= 2 (v7x has 2 TensorCores; batch axis is "parallel").
    bb = max(1, min(block_n, pl.cdiv(n, 2)))
    n_steps = pl.cdiv(n, bb)
    n_pad = n_steps * bb

    x2d = x_nchw[:, 0].astype(jnp.float32)                   # (N, 16, 16) — drop C=1
    if n_pad != n:
        x2d = jnp.pad(x2d, ((0, n_pad - n), (0, 0), (0, 0)))
    t_mat, b1t, u_mat, b2t = _prep_weights(w1_oihw, b1, w2_oihw, b2, compute_dtype)

    flops = int(n_pad) * 2 * H_IN * (W_IN * T_COLS + L1 * U_COLS)
    bytes_accessed = 4 * (x2d.size + t_mat.size + b1t.size + u_mat.size
                          + b2t.size + n_pad * HP * OUT_L)

    pooled = pl.pallas_call(
        netpart1_kernel,
        out_shape=jax.ShapeDtypeStruct((n_pad, HP, OUT_L), jnp.float32),
        grid_spec=pltpu.PrefetchScalarGridSpec(
            num_scalar_prefetch=0,
            grid=(n_steps,),
            in_specs=[
                pl.BlockSpec((bb, H_IN, W_IN), lambda i: (i, 0, 0)),
                pl.BlockSpec((W_IN, T_COLS), lambda i: (0, 0)),
                pl.BlockSpec((1, L1), lambda i: (0, 0)),
                pl.BlockSpec((L1, U_COLS), lambda i: (0, 0)),
                pl.BlockSpec((1, L2), lambda i: (0, 0)),
            ],
            out_specs=pl.BlockSpec((bb, HP, OUT_L), lambda i: (i, 0, 0)),
        ),
        compiler_params=pltpu.CompilerParams(
            dimension_semantics=("parallel",),
            vmem_limit_bytes=64 * 1024 * 1024),
        cost_estimate=pl.CostEstimate(
            flops=flops, transcendentals=0, bytes_accessed=bytes_accessed),
    )(x2d, t_mat, b1t, u_mat, b2t)

    # pooled[b, i, j*64 + n] is NHWC; torch.flatten(1) acts on NCHW -> reorder.
    pooled = pooled[:n].reshape(n, HP, WP, C2)
    return jnp.transpose(pooled, (0, 3, 1, 2)).reshape(n, C2 * HP * WP)


def reference_forward(x, w1, b1, w2, b2):
    """Pure-JAX NCHW reference (matches the PyTorch module in eval mode)."""
    dn = ('NCHW', 'OIHW', 'NCHW')
    y = jax.lax.conv_general_dilated(x, w1, (1, 1), 'VALID', dimension_numbers=dn)
    y = jnp.maximum(y + b1.reshape(1, -1, 1, 1), 0.0)
    y = jax.lax.conv_general_dilated(y, w2, (1, 1), 'VALID', dimension_numbers=dn)
    y = jnp.maximum(y + b2.reshape(1, -1, 1, 1), 0.0)
    y = jax.lax.reduce_window(y, -jnp.inf, jax.lax.max,
                              (1, 1, 2, 2), (1, 1, 2, 2), 'VALID')
    return y.reshape(y.shape[0], -1)


if __name__ == "__main__":
    key = jax.random.PRNGKey(0)
    kx, k1, k2, k3, k4 = jax.random.split(key, 5)

    # Deterministic synthetic parameters (shapes from the conv stack's __init__).
    x = jax.random.normal(kx, (2, C_IN, H_IN, W_IN), jnp.float32)
    w1 = jax.random.normal(k1, (C1, C_IN, K, K), jnp.float32) * 0.1   # conv1.weight
    b1 = jax.random.normal(k2, (C1,), jnp.float32) * 0.1              # conv1.bias
    w2 = jax.random.normal(k3, (C2, C1, K, K), jnp.float32) * 0.05    # conv2.weight
    b2 = jax.random.normal(k4, (C2,), jnp.float32) * 0.1              # conv2.bias

    out = jax.block_until_ready(netpart1_forward(x, w1, b1, w2, b2))

    ref = reference_forward(x, w1, b1, w2, b2)
    assert out.shape == (2, C2 * HP * WP), out.shape
    if not jnp.allclose(out, ref, atol=1e-3, rtol=1e-3):
        max_err = jnp.max(jnp.abs(out - ref))
        raise AssertionError(f"Pallas kernel mismatch, max abs err = {max_err}")
    print("KERNEL_OK")
</pallas_src>

<mosaic_0001>
module attributes {stable_mosaic.version = 11 : i64} {
  func.func @netpart1_kernel(%arg0: i32, %arg1: memref<1x16x16xf32, #tpu.memory_space<vmem>>, %arg2: memref<16x1536xf32, #tpu.memory_space<vmem>>, %arg3: memref<1x448xf32, #tpu.memory_space<vmem>>, %arg4: memref<448x2304xf32, #tpu.memory_space<vmem>>, %arg5: memref<1x768xf32, #tpu.memory_space<vmem>>, %arg6: memref<1x6x384xf32, #tpu.memory_space<vmem>>) attributes {dimension_semantics = [#tpu.dimension_semantics<parallel>], iteration_bounds = array<i64: 2>, scalar_prefetch = 0 : i64, scratch_operands = 0 : i64, tpu.core_type = #tpu.core_type<tc>, window_params = [{transform_indices = @transform_0, window_bounds = array<i64: 1, 16, 16>}, {pipeline_mode = #tpu.pipeline_mode<synchronous>, transform_indices = @transform_1, window_bounds = array<i64: 16, 1536>}, {pipeline_mode = #tpu.pipeline_mode<synchronous>, transform_indices = @transform_2, window_bounds = array<i64: 1, 448>}, {pipeline_mode = #tpu.pipeline_mode<synchronous>, transform_indices = @transform_3, window_bounds = array<i64: 448, 2304>}, {pipeline_mode = #tpu.pipeline_mode<synchronous>, transform_indices = @transform_4, window_bounds = array<i64: 1, 768>}, {transform_indices = @transform_5, window_bounds = array<i64: 1, 6, 384>}]} {
    %c0 = arith.constant 0 : index
    %c0_0 = arith.constant 0 : index
    %c0_1 = arith.constant 0 : index
    %0 = vector.load %arg1[%c0, %c0_0, %c0_1] : memref<1x16x16xf32, #tpu.memory_space<vmem>>, vector<1x16x16xf32>
    %1 = vector.shape_cast %0 : vector<1x16x16xf32> to vector<16x16xf32>
    %c0_2 = arith.constant 0 : index
    %c0_3 = arith.constant 0 : index
    %2 = vector.load %arg2[%c0_2, %c0_3] : memref<16x1536xf32, #tpu.memory_space<vmem>>, vector<16x1536xf32>
    %cst = arith.constant dense<0.000000e+00> : vector<16x1536xf32>
    %3 = tpu.matmul %1, %2, %cst {dimension_numbers = #tpu.dot_dimension_numbers<[1], [0], [0], [1], [0, 0, 1, 1], [], []>} : vector<16x16xf32>, vector<16x1536xf32>, vector<16x1536xf32> -> vector<16x1536xf32>
    %4 = vector.shape_cast %3 : vector<16x1536xf32> to vector<1x16x1536xf32>
    %5 = vector.extract_strided_slice %4 {offsets = [0, 0, 0], sizes = [1, 14, 448], strides = [1, 1, 1]} : vector<1x16x1536xf32> to vector<1x14x448xf32>
    %6 = vector.extract_strided_slice %4 {offsets = [0, 1, 512], sizes = [1, 14, 448], strides = [1, 1, 1]} : vector<1x16x1536xf32> to vector<1x14x448xf32>
    %7 = arith.addf %5, %6 : vector<1x14x448xf32>
    %8 = vector.extract_strided_slice %4 {offsets = [0, 2, 1024], sizes = [1, 14, 448], strides = [1, 1, 1]} : vector<1x16x1536xf32> to vector<1x14x448xf32>
    %9 = arith.addf %7, %8 : vector<1x14x448xf32>
    %c0_4 = arith.constant 0 : index
    %c0_5 = arith.constant 0 : index
    %10 = vector.load %arg3[%c0_4, %c0_5] : memref<1x448xf32, #tpu.memory_space<vmem>>, vector<1x448xf32>
    %11 = vector.shape_cast %10 : vector<1x448xf32> to vector<1x1x448xf32>
    %12 = vector.broadcast %11 : vector<1x1x448xf32> to vector<1x14x448xf32>
    %13 = arith.addf %9, %12 : vector<1x14x448xf32>
    %cst_6 = arith.constant 0.000000e+00 : f32
    %14 = vector.broadcast %cst_6 : f32 to vector<1x14x448xf32>
    %15 = arith.maximumf %13, %14 : vector<1x14x448xf32>
    %cst_7 = arith.constant 0.000000e+00 : f32
    %16 = vector.broadcast %cst_7 : f32 to vector<1x2x448xf32>
    %17 = tpu.concatenate %15, %16 in 1 : vector<1x14x448xf32>, vector<1x2x448xf32> -> vector<1x16x448xf32>
    %18 = vector.shape_cast %17 : vector<1x16x448xf32> to vector<16x448xf32>
    %c0_8 = arith.constant 0 : index
    %c0_9 = arith.constant 0 : index
    %19 = vector.load %arg4[%c0_8, %c0_9] : memref<448x2304xf32, #tpu.memory_space<vmem>>, vector<448x2304xf32>
    %cst_10 = arith.constant dense<0.000000e+00> : vector<16x2304xf32>
    %20 = tpu.matmul %18, %19, %cst_10 {dimension_numbers = #tpu.dot_dimension_numbers<[1], [0], [0], [1], [0, 0, 1, 1], [], []>} : vector<16x448xf32>, vector<448x2304xf32>, vector<16x2304xf32> -> vector<16x2304xf32>
    %21 = vector.shape_cast %20 : vector<16x2304xf32> to vector<1x16x2304xf32>
    %22 = vector.extract_strided_slice %21 {offsets = [0, 0, 0], sizes = [1, 12, 768], strides = [1, 1, 1]} : vector<1x16x2304xf32> to vector<1x12x768xf32>
    %23 = vector.extract_strided_slice %21 {offsets = [0, 1, 768], sizes = [1, 12, 768], strides = [1, 1, 1]} : vector<1x16x2304xf32> to vector<1x12x768xf32>
    %24 = arith.addf %22, %23 : vector<1x12x768xf32>
    %25 = vector.extract_strided_slice %21 {offsets = [0, 2, 1536], sizes = [1, 12, 768], strides = [1, 1, 1]} : vector<1x16x2304xf32> to vector<1x12x768xf32>
    %26 = arith.addf %24, %25 : vector<1x12x768xf32>
    %c0_11 = arith.constant 0 : index
    %c0_12 = arith.constant 0 : index
    %27 = vector.load %arg5[%c0_11, %c0_12] : memref<1x768xf32, #tpu.memory_space<vmem>>, vector<1x768xf32>
    %28 = vector.shape_cast %27 : vector<1x768xf32> to vector<1x1x768xf32>
    %29 = vector.broadcast %28 : vector<1x1x768xf32> to vector<1x12x768xf32>
    %30 = arith.addf %26, %29 : vector<1x12x768xf32>
    %cst_13 = arith.constant 0.000000e+00 : f32
    %31 = vector.broadcast %cst_13 : f32 to vector<1x12x768xf32>
    %32 = arith.maximumf %30, %31 : vector<1x12x768xf32>
    %33 = vector.extract_strided_slice %32 {offsets = [0, 0, 0], sizes = [1, 12, 64], strides = [1, 1, 1]} : vector<1x12x768xf32> to vector<1x12x64xf32>
    %34 = vector.extract_strided_slice %32 {offsets = [0, 0, 64], sizes = [1, 12, 64], strides = [1, 1, 1]} : vector<1x12x768xf32> to vector<1x12x64xf32>
    %35 = arith.maximumf %33, %34 : vector<1x12x64xf32>
    %36 = vector.extract_strided_slice %32 {offsets = [0, 0, 128], sizes = [1, 12, 64], strides = [1, 1, 1]} : vector<1x12x768xf32> to vector<1x12x64xf32>
    %37 = vector.extract_strided_slice %32 {offsets = [0, 0, 192], sizes = [1, 12, 64], strides = [1, 1, 1]} : vector<1x12x768xf32> to vector<1x12x64xf32>
    %38 = arith.maximumf %36, %37 : vector<1x12x64xf32>
    %39 = vector.extract_strided_slice %32 {offsets = [0, 0, 256], sizes = [1, 12, 64], strides = [1, 1, 1]} : vector<1x12x768xf32> to vector<1x12x64xf32>
    %40 = vector.extract_strided_slice %32 {offsets = [0, 0, 320], sizes = [1, 12, 64], strides = [1, 1, 1]} : vector<1x12x768xf32> to vector<1x12x64xf32>
    %41 = arith.maximumf %39, %40 : vector<1x12x64xf32>
    %42 = vector.extract_strided_slice %32 {offsets = [0, 0, 384], sizes = [1, 12, 64], strides = [1, 1, 1]} : vector<1x12x768xf32> to vector<1x12x64xf32>
    %43 = vector.extract_strided_slice %32 {offsets = [0, 0, 448], sizes = [1, 12, 64], strides = [1, 1, 1]} : vector<1x12x768xf32> to vector<1x12x64xf32>
    %44 = arith.maximumf %42, %43 : vector<1x12x64xf32>
    %45 = vector.extract_strided_slice %32 {offsets = [0, 0, 512], sizes = [1, 12, 64], strides = [1, 1, 1]} : vector<1x12x768xf32> to vector<1x12x64xf32>
    %46 = vector.extract_strided_slice %32 {offsets = [0, 0, 576], sizes = [1, 12, 64], strides = [1, 1, 1]} : vector<1x12x768xf32> to vector<1x12x64xf32>
    %47 = arith.maximumf %45, %46 : vector<1x12x64xf32>
    %48 = vector.extract_strided_slice %32 {offsets = [0, 0, 640], sizes = [1, 12, 64], strides = [1, 1, 1]} : vector<1x12x768xf32> to vector<1x12x64xf32>
    %49 = vector.extract_strided_slice %32 {offsets = [0, 0, 704], sizes = [1, 12, 64], strides = [1, 1, 1]} : vector<1x12x768xf32> to vector<1x12x64xf32>
    %50 = arith.maximumf %48, %49 : vector<1x12x64xf32>
    %51 = tpu.concatenate %35, %38, %41, %44, %47, %50 in 2 : vector<1x12x64xf32>, vector<1x12x64xf32>, vector<1x12x64xf32>, vector<1x12x64xf32>, vector<1x12x64xf32>, vector<1x12x64xf32> -> vector<1x12x384xf32>
    %52 = vector.extract_strided_slice %51 {offsets = [0, 0, 0], sizes = [1, 1, 384], strides = [1, 1, 1]} : vector<1x12x384xf32> to vector<1x1x384xf32>
    %53 = vector.extract_strided_slice %51 {offsets = [0, 1, 0], sizes = [1, 1, 384], strides = [1, 1, 1]} : vector<1x12x384xf32> to vector<1x1x384xf32>
    %54 = arith.maximumf %52, %53 : vector<1x1x384xf32>
    %55 = vector.extract_strided_slice %51 {offsets = [0, 2, 0], sizes = [1, 1, 384], strides = [1, 1, 1]} : vector<1x12x384xf32> to vector<1x1x384xf32>
    %56 = vector.extract_strided_slice %51 {offsets = [0, 3, 0], sizes = [1, 1, 384], strides = [1, 1, 1]} : vector<1x12x384xf32> to vector<1x1x384xf32>
    %57 = arith.maximumf %55, %56 : vector<1x1x384xf32>
    %58 = vector.extract_strided_slice %51 {offsets = [0, 4, 0], sizes = [1, 1, 384], strides = [1, 1, 1]} : vector<1x12x384xf32> to vector<1x1x384xf32>
    %59 = vector.extract_strided_slice %51 {offsets = [0, 5, 0], sizes = [1, 1, 384], strides = [1, 1, 1]} : vector<1x12x384xf32> to vector<1x1x384xf32>
    %60 = arith.maximumf %58, %59 : vector<1x1x384xf32>
    %61 = vector.extract_strided_slice %51 {offsets = [0, 6, 0], sizes = [1, 1, 384], strides = [1, 1, 1]} : vector<1x12x384xf32> to vector<1x1x384xf32>
    %62 = vector.extract_strided_slice %51 {offsets = [0, 7, 0], sizes = [1, 1, 384], strides = [1, 1, 1]} : vector<1x12x384xf32> to vector<1x1x384xf32>
    %63 = arith.maximumf %61, %62 : vector<1x1x384xf32>
    %64 = vector.extract_strided_slice %51 {offsets = [0, 8, 0], sizes = [1, 1, 384], strides = [1, 1, 1]} : vector<1x12x384xf32> to vector<1x1x384xf32>
    %65 = vector.extract_strided_slice %51 {offsets = [0, 9, 0], sizes = [1, 1, 384], strides = [1, 1, 1]} : vector<1x12x384xf32> to vector<1x1x384xf32>
    %66 = arith.maximumf %64, %65 : vector<1x1x384xf32>
    %67 = vector.extract_strided_slice %51 {offsets = [0, 10, 0], sizes = [1, 1, 384], strides = [1, 1, 1]} : vector<1x12x384xf32> to vector<1x1x384xf32>
    %68 = vector.extract_strided_slice %51 {offsets = [0, 11, 0], sizes = [1, 1, 384], strides = [1, 1, 1]} : vector<1x12x384xf32> to vector<1x1x384xf32>
    %69 = arith.maximumf %67, %68 : vector<1x1x384xf32>
    %70 = tpu.concatenate %54, %57, %60, %63, %66, %69 in 1 : vector<1x1x384xf32>, vector<1x1x384xf32>, vector<1x1x384xf32>, vector<1x1x384xf32>, vector<1x1x384xf32>, vector<1x1x384xf32> -> vector<1x6x384xf32>
    %c0_14 = arith.constant 0 : index
    %c0_15 = arith.constant 0 : index
    %c0_16 = arith.constant 0 : index
    %71 = vector.load %arg6[%c0_14, %c0_15, %c0_16] : memref<1x6x384xf32, #tpu.memory_space<vmem>>, vector<1x6x384xf32>
    tpu.vector_store %arg6[%c0_14, %c0_15, %c0_16], %70 {strides = array<i32>} : memref<1x6x384xf32, #tpu.memory_space<vmem>>, vector<1x6x384xf32>,
    return
  }
  func.func @transform_0(%arg0: i32) -> (i32, i32, i32) {
    %c0_i32 = arith.constant 0 : i32
    %c0_i32_0 = arith.constant 0 : i32
    %c0_i32_1 = arith.constant 0 : i32
    return %arg0, %c0_i32, %c0_i32_0 : i32, i32, i32
  }
  func.func @transform_1(%arg0: i32) -> (i32, i32) {
    %c0_i32 = arith.constant 0 : i32
    %c0_i32_0 = arith.constant 0 : i32
    %c0_i32_1 = arith.constant 0 : i32
    return %c0_i32, %c0_i32_0 : i32, i32
  }
  func.func @transform_2(%arg0: i32) -> (i32, i32) {
    %c0_i32 = arith.constant 0 : i32
    %c0_i32_0 = arith.constant 0 : i32
    %c0_i32_1 = arith.constant 0 : i32
    return %c0_i32, %c0_i32_0 : i32, i32
  }
  func.func @transform_3(%arg0: i32) -> (i32, i32) {
    %c0_i32 = arith.constant 0 : i32
    %c0_i32_0 = arith.constant 0 : i32
    %c0_i32_1 = arith.constant 0 : i32
    return %c0_i32, %c0_i32_0 : i32, i32
  }
  func.func @transform_4(%arg0: i32) -> (i32, i32) {
    %c0_i32 = arith.constant 0 : i32
    %c0_i32_0 = arith.constant 0 : i32
    %c0_i32_1 = arith.constant 0 : i32
    return %c0_i32, %c0_i32_0 : i32, i32
  }
  func.func @transform_5(%arg0: i32) -> (i32, i32, i32) {
    %c0_i32 = arith.constant 0 : i32
    %c0_i32_0 = arith.constant 0 : i32
    %c0_i32_1 = arith.constant 0 : i32
    return %arg0, %c0_i32, %c0_i32_0 : i32, i32, i32
  }
}

</mosaic_0001>

<llo_original>
// kernel: tpu_custom_call.1
$region0: #{tpu_custom_call.1}
  #allocation0 [shape = 'u32[]', space=smem, size = 0x4, offset = 0x4, fixed_abs, tag = 'smem constant byte address 0x4 - core index']
  #allocation1 [shape = 'u32[144,128]{1,0:T(1,128)}', space=vmem, size = 0x12000, scoped, tag = 'internal scratch']
  %s0 = inlined_call_operand.hbm [shape: f32[2,16,16], index: 0, kind: input, shape index: {}]
  %s1 = inlined_call_operand.hbm [shape: f32[16,1536], index: 1, kind: input, shape index: {}]
  %s2 = inlined_call_operand.hbm [shape: f32[1,448], index: 2, kind: input, shape index: {}]
  %s3 = inlined_call_operand.hbm [shape: f32[448,2304], index: 3, kind: input, shape index: {}]
  %s4 = inlined_call_operand.hbm [shape: f32[1,768], index: 4, kind: input, shape index: {}]
  %s5 = inlined_call_operand.hbm [shape: f32[2,6,384], index: 5, kind: output, shape index: {}]
  %s6 = sld [smem:[#allocation0]]
  $region73: #{tpu_custom_call.1} parent=0
    _
  %s8 = ssub.s32 1, %s6
  %s9 = scalar_select 0, %s8, %s6
  $region1: #{tpu_custom_call.1} parent=0
    #allocation2 [shape = 'u8[16384]{0}', space=vmem, size = 0x4000, scoped, tag = 'input window, operand 0']
    #allocation3 [shape = 's32[2]{0}', space=sflag, size = 0x8, scoped, tag = 'scoped memory for tpu_custom_call.1']
    #allocation4 [shape = 's32[2]{0}', space=sflag, size = 0x8, scoped, tag = 'scoped memory for tpu_custom_call.1']
    #allocation5 [shape = 'u8[98304]{0}', space=vmem, size = 0x18000, scoped, tag = 'input window, operand 1, single buffered']
    #allocation6 [shape = 's32[1]{0}', space=sflag, size = 0x4, scoped, tag = 'scoped memory for tpu_custom_call.1']
    #allocation7 [shape = 'u8[2048]{0}', space=vmem, size = 0x800, scoped, tag = 'input window, operand 2, single buffered']
    #allocation8 [shape = 'u8[4128768]{0}', space=vmem, size = 0x3f0000, scoped, tag = 'input window, operand 3, single buffered']
    #allocation9 [shape = 's32[1]{0}', space=sflag, size = 0x4, scoped, tag = 'scoped memory for tpu_custom_call.1']
    #allocation10 [shape = 'u8[3072]{0}', space=vmem, size = 0xc00, scoped, tag = 'input window, operand 4, single buffered']
    #allocation11 [shape = 'u8[24576]{0}', space=vmem, size = 0x6000, scoped, tag = 'output window, operand 0']
    %10 = vsyncpa [#allocation3], 0
    %s11 = scalar_lea.sflag [#allocation3], 1
    %12 = vsyncpa %s11, 0
    %13 = vsyncpa [#allocation6], 0
    %14 = vsyncpa [#allocation9], 0
    %15 = vsyncpa [#allocation4], 0
    %s16 = scalar_lea.sflag [#allocation4], 1
    %17 = vsyncpa %s16, 0
    loop: start=0, step=1, limit=4
    $region2: #{tpu_custom_call.1} parent=1 // loop_pre_header
      _
    $region3: #{tpu_custom_call.1} parent=1 // loop_header
      %s19 = sphi 0, %s23
      %p20 = scmp.ge.s32.totalorder %s19, 4
      %s29 = sphi 0, %s31
      %s32 = sphi 0, %s29
      %s33 = sphi 0, %s32
      %s49 = sphi 0, %s33
      %s53 = sphi 0, %s53
      %s55 = sphi 0, %s53
      %s56 = sphi 0, %s55
      %s70 = sphi 0, %s56
      %s74 = sphi 0, %s74
      %s76 = sphi 0, %s74
      %s77 = sphi 0, %s76
      %s91 = sphi 0, %s77
      %s95 = sphi 0, %s95
      %s97 = sphi 0, %s95
      %s98 = sphi 0, %s97
      %s112 = sphi 0, %s98
      %s116 = sphi 0, %s116
      %s118 = sphi 0, %s116
      %s119 = sphi 0, %s118
      %s133 = sphi 0, %s119
      %s139 = sphi 0, %s141
      %s142 = sphi 0, %s139
      %s143 = sphi 0, %s142
      %s159 = sphi 0, %s143
    $region4: #{tpu_custom_call.1} parent=1 // loop_header_branch
      %22 = sbr.rel (%p20) target = $region8
    $region5: #{tpu_custom_call.1} parent=1 // loop_body
      %s24 = ssub.s32 %s19, 1
      %s25 = ssub.s32 %s19, 2
      %s26 = sadd.s32 %s19, 1
      %s27 = ssub.s32 %s19, %s26
      %p28 = scmp.eq.s32.totalorder %s27, 0
      %s30 = sadd.s32 %s29, 1
      %s31 = scalar_select %p28, %s29, %s30
      %p34 = pneg %p28
      %p35 = scmp.eq.s32.totalorder %s19, 1
      %p36 = por %p34, %p35
      %p37 = scmp.ne.s32.totalorder %s29, %s32
      %p38 = scmp.eq.s32.totalorder %s19, 0
      %p39 = por %p37, %p38
      %p40 = scmp.ne.s32.totalorder %s29, %s32
      %p41 = scmp.eq.s32.totalorder %s24, 1
      %p42 = por %p40, %p41
      %p43 = scmp.ne.s32.totalorder %s32, %s33
      %p44 = scmp.eq.s32.totalorder %s24, 0
      %p45 = por %p43, %p44
      %p46 = scmp.ne.s32.totalorder %s32, %s33
      %p47 = scmp.eq.s32.totalorder %s25, 1
      %p48 = por %p46, %p47
      %p50 = scmp.ne.s32.totalorder %s33, %s49
      %p51 = scmp.eq.s32.totalorder %s25, 0
      %p52 = por %p50, %p51
      %s54 = sadd.s32 %s53, 1
      %p57 = scmp.eq.s32.totalorder %s19, 1
      %p58 = scmp.ne.s32.totalorder %s53, %s55
      %p59 = scmp.eq.s32.totalorder %s19, 0
      %p60 = por %p58, %p59
      %p61 = scmp.ne.s32.totalorder %s53, %s55
      %p62 = scmp.eq.s32.totalorder %s24, 1
      %p63 = por %p61, %p62
      %p64 = scmp.ne.s32.totalorder %s55, %s56
      %p65 = scmp.eq.s32.totalorder %s24, 0
      %p66 = por %p64, %p65
      %p67 = scmp.ne.s32.totalorder %s55, %s56
      %p68 = scmp.eq.s32.totalorder %s25, 1
      %p69 = por %p67, %p68
      %p71 = scmp.ne.s32.totalorder %s56, %s70
      %p72 = scmp.eq.s32.totalorder %s25, 0
      %p73 = por %p71, %p72
      %s75 = sadd.s32 %s74, 1
      %p78 = scmp.eq.s32.totalorder %s19, 1
      %p79 = scmp.ne.s32.totalorder %s74, %s76
      %p80 = scmp.eq.s32.totalorder %s19, 0
      %p81 = por %p79, %p80
      %p82 = scmp.ne.s32.totalorder %s74, %s76
      %p83 = scmp.eq.s32.totalorder %s24, 1
      %p84 = por %p82, %p83
      %p85 = scmp.ne.s32.totalorder %s76, %s77
      %p86 = scmp.eq.s32.totalorder %s24, 0
      %p87 = por %p85, %p86
      %p88 = scmp.ne.s32.totalorder %s76, %s77
      %p89 = scmp.eq.s32.totalorder %s25, 1
      %p90 = por %p88, %p89
      %p92 = scmp.ne.s32.totalorder %s77, %s91
      %p93 = scmp.eq.s32.totalorder %s25, 0
      %p94 = por %p92, %p93
      %s96 = sadd.s32 %s95, 1
      %p99 = scmp.eq.s32.totalorder %s19, 1
      %p100 = scmp.ne.s32.totalorder %s95, %s97
      %p101 = scmp.eq.s32.totalorder %s19, 0
      %p102 = por %p100, %p101
      %p103 = scmp.ne.s32.totalorder %s95, %s97
      %p104 = scmp.eq.s32.totalorder %s24, 1
      %p105 = por %p103, %p104
      %p106 = scmp.ne.s32.totalorder %s97, %s98
      %p107 = scmp.eq.s32.totalorder %s24, 0
      %p108 = por %p106, %p107
      %p109 = scmp.ne.s32.totalorder %s97, %s98
      %p110 = scmp.eq.s32.totalorder %s25, 1
      %p111 = por %p109, %p110
      %p113 = scmp.ne.s32.totalorder %s98, %s112
      %p114 = scmp.eq.s32.totalorder %s25, 0
      %p115 = por %p113, %p114
      %s117 = sadd.s32 %s116, 1
      %p120 = scmp.eq.s32.totalorder %s19, 1
      %p121 = scmp.ne.s32.totalorder %s116, %s118
      %p122 = scmp.eq.s32.totalorder %s19, 0
      %p123 = por %p121, %p122
      %p124 = scmp.ne.s32.totalorder %s116, %s118
      %p125 = scmp.eq.s32.totalorder %s24, 1
      %p126 = por %p124, %p125
      %p127 = scmp.ne.s32.totalorder %s118, %s119
      %p128 = scmp.eq.s32.totalorder %s24, 0
      %p129 = por %p127, %p128
      %p130 = scmp.ne.s32.totalorder %s118, %s119
      %p131 = scmp.eq.s32.totalorder %s25, 1
      %p132 = por %p130, %p131
      %p134 = scmp.ne.s32.totalorder %s119, %s133
      %p135 = scmp.eq.s32.totalorder %s25, 0
      %p136 = por %p134, %p135
      %s137 = ssub.s32 %s19, %s26
      %p138 = scmp.eq.s32.totalorder %s137, 0
      %s140 = sadd.s32 %s139, 1
      %s141 = scalar_select %p138, %s139, %s140
      %p144 = pneg %p138
      %p145 = scmp.eq.s32.totalorder %s19, 1
      %p146 = por %p144, %p145
      %p147 = scmp.ne.s32.totalorder %s139, %s142
      %p148 = scmp.eq.s32.totalorder %s19, 0
      %p149 = por %p147, %p148
      %p150 = scmp.ne.s32.totalorder %s139, %s142
      %p151 = scmp.eq.s32.totalorder %s24, 1
      %p152 = por %p150, %p151
      %p153 = scmp.ne.s32.totalorder %s142, %s143
      %p154 = scmp.eq.s32.totalorder %s24, 0
      %p155 = por %p153, %p154
      %p156 = scmp.ne.s32.totalorder %s142, %s143
      %p157 = scmp.eq.s32.totalorder %s25, 1
      %p158 = por %p156, %p157
      %p160 = scmp.ne.s32.totalorder %s143, %s159
      %p161 = scmp.eq.s32.totalorder %s25, 0
      %p162 = por %p160, %p161
      %p163 = scmp.le.s32.totalorder 1, %s19
      %p164 = scmp.lt.s32.totalorder %s19, 3
      %p165 = pnand %p163, %p164
      %p166 = pneg %p165
      // Predicated region
      $region9: #{tpu_custom_call.1} parent=5 // pred_check
        _
      $region10: #{tpu_custom_call.1} parent=5 // pred_check_branch
        %168 = sbr.rel (%p165) target = $region12
      $region11: #{tpu_custom_call.1} parent=5 // pred_region
        %s169 = ssub.s32 %s19, 1
        // Predicated region
        $region13: #{tpu_custom_call.1} parent=11 // pred_check
          %p170 = pneg %p66
        $region14: #{tpu_custom_call.1} parent=11 // pred_check_branch
          %172 = sbr.rel (%p170) target = $region16
        $region15: #{tpu_custom_call.1} parent=11 // pred_region
          %s174 = ssub.s32 3072, 3072
          %175 = vsyncadd [#allocation6], %s174
          %s176 = sshll.u32 [#allocation5], 4
          %s177 = int_to_ptr.vmem [resolvable:$true] %s176
          %182 = dma.hbm_to_vmem [thread:$0]  %s1, 3072, %s177, [#allocation6], 1536, 1536, 96
        $region16: #{tpu_custom_call.1} parent=11 // pred_fallthru
          _
        // Predicated region
        $region17: #{tpu_custom_call.1} parent=11 // pred_check
          %p183 = pneg %p87
        $region18: #{tpu_custom_call.1} parent=11 // pred_check_branch
          %185 = sbr.rel (%p183) target = $region20
        $region19: #{tpu_custom_call.1} parent=11 // pred_region
          %s187 = ssub.s32 64, 64
          %188 = vsyncadd [#allocation6], %s187
          %s190 = sshll.u32 [#allocation7], 4
          %s191 = int_to_ptr.vmem [resolvable:$true] %s190
          %193 = dma.hbm_to_vmem [thread:$0]  %s2, 64, %s191, [#allocation6]
        $region20: #{tpu_custom_call.1} parent=11 // pred_fallthru
          _
        // Predicated region
        $region21: #{tpu_custom_call.1} parent=11 // pred_check
          %p194 = pneg %p108
        $region22: #{tpu_custom_call.1} parent=11 // pred_check_branch
          %196 = sbr.rel (%p194) target = $region24
        $region23: #{tpu_custom_call.1} parent=11 // pred_region
          %s198 = ssub.s32 129024, 129024
          %199 = vsyncadd [#allocation9], %s198
          %s200 = sshll.u32 [#allocation8], 4
          %s201 = int_to_ptr.vmem [resolvable:$true] %s200
          %206 = dma.hbm_to_vmem [thread:$0]  %s3, 129024, %s201, [#allocation9], 2304, 2304, 144
        $region24: #{tpu_custom_call.1} parent=11 // pred_fallthru
          _
        // Predicated region
        $region25: #{tpu_custom_call.1} parent=11 // pred_check
          %p207 = pneg %p129
        $region26: #{tpu_custom_call.1} parent=11 // pred_check_branch
          %209 = sbr.rel (%p207) target = $region28
        $region27: #{tpu_custom_call.1} parent=11 // pred_region
          %s211 = ssub.s32 96, 96
          %212 = vsyncadd [#allocation9], %s211
          %s214 = sshll.u32 [#allocation10], 4
          %s215 = int_to_ptr.vmem [resolvable:$true] %s214
          %217 = dma.hbm_to_vmem [thread:$0]  %s4, 96, %s215, [#allocation9]
        $region28: #{tpu_custom_call.1} parent=11 // pred_fallthru
          _
      $region12: #{tpu_custom_call.1} parent=5 // pred_fallthru
        _
      %p218 = scmp.lt.s32.totalorder %s19, 2
      // Predicated region
      $region29: #{tpu_custom_call.1} parent=5 // pred_check
        %p219 = pneg %p218
      $region30: #{tpu_custom_call.1} parent=5 // pred_check_branch
        %221 = sbr.rel (%p219) target = $region32
      $region31: #{tpu_custom_call.1} parent=5 // pred_region
        // Predicated region
        $region33: #{tpu_custom_call.1} parent=31 // pred_check
          %p222 = pneg %p39
        $region34: #{tpu_custom_call.1} parent=31 // pred_check_branch
          %224 = sbr.rel (%p222) target = $region36
        $region35: #{tpu_custom_call.1} parent=31 // pred_region
          %s225 = sand.u32 %s29, 1
          %s226 = scalar_lea.sflag [#allocation3], %s225
          %s227 = sand.u32 %s29, 1
          %s228 = smul.addr %s227, 16
          %s229 = scalar_lea.vmem [#allocation2], %s228
          %s231 = ssub.s32 256, 256
          %232 = vsyncadd %s226, %s231
          %s233 = smul.addr %s19, 2
          %s234 = smul.addr %s233, 128
          %s235 = scalar_lea.hbm %s0, %s234
          %s236 = sshll.u32 %s229, 4
          %s237 = int_to_ptr.vmem [resolvable:$true] %s236
          %242 = dma.hbm_to_vmem [thread:$0]  %s235, 256, %s237, %s226, 128, 128, 8
        $region36: #{tpu_custom_call.1} parent=31 // pred_fallthru
          _
      $region32: #{tpu_custom_call.1} parent=5 // pred_fallthru
        _
      %p243 = scmp.le.s32.totalorder 1, %s19
      %p244 = scmp.lt.s32.totalorder %s19, 3
      %p245 = pnand %p243, %p244
      %p246 = pneg %p245
      // Predicated region
      $region37: #{tpu_custom_call.1} parent=5 // pred_check
        _
      $region38: #{tpu_custom_call.1} parent=5 // pred_check_branch
        %248 = sbr.rel (%p245) target = $region40
      $region39: #{tpu_custom_call.1} parent=5 // pred_region
        %s249 = ssub.s32 %s19, 1
        %s250 = sand.u32 %s32, 1
        %s251 = scalar_lea.sflag [#allocation3], %s250
        %s252 = sand.u32 %s32, 1
        %s253 = smul.addr %s252, 16
        %s254 = scalar_lea.vmem [#allocation2], %s253
        // Predicated region
        $region41: #{tpu_custom_call.1} parent=39 // pred_check
          %p255 = pneg %p45
        $region42: #{tpu_custom_call.1} parent=39 // pred_check_branch
          %257 = sbr.rel (%p255) target = $region44
        $region43: #{tpu_custom_call.1} parent=39 // pred_region
          %258 = dma.done %s251, 256
        $region44: #{tpu_custom_call.1} parent=39 // pred_fallthru
          _
        // Predicated region
        $region45: #{tpu_custom_call.1} parent=39 // pred_check
          %p259 = pneg %p66
        $region46: #{tpu_custom_call.1} parent=39 // pred_check_branch
          %261 = sbr.rel (%p259) target = $region48
        $region47: #{tpu_custom_call.1} parent=39 // pred_region
          %262 = dma.done [#allocation6], 3072
        $region48: #{tpu_custom_call.1} parent=39 // pred_fallthru
          _
        // Predicated region
        $region49: #{tpu_custom_call.1} parent=39 // pred_check
          %p263 = pneg %p87
        $region50: #{tpu_custom_call.1} parent=39 // pred_check_branch
          %265 = sbr.rel (%p263) target = $region52
        $region51: #{tpu_custom_call.1} parent=39 // pred_region
          %266 = dma.done [#allocation6], 64
        $region52: #{tpu_custom_call.1} parent=39 // pred_fallthru
          _
        // Predicated region
        $region53: #{tpu_custom_call.1} parent=39 // pred_check
          %p267 = pneg %p108
        $region54: #{tpu_custom_call.1} parent=39 // pred_check_branch
          %269 = sbr.rel (%p267) target = $region56
        $region55: #{tpu_custom_call.1} parent=39 // pred_region
          %270 = dma.done [#allocation9], 129024
        $region56: #{tpu_custom_call.1} parent=39 // pred_fallthru
          _
        // Predicated region
        $region57: #{tpu_custom_call.1} parent=39 // pred_check
          %p271 = pneg %p129
        $region58: #{tpu_custom_call.1} parent=39 // pred_check_branch
          %273 = sbr.rel (%p271) target = $region60
        $region59: #{tpu_custom_call.1} parent=39 // pred_region
          %274 = dma.done [#allocation9], 96
        $region60: #{tpu_custom_call.1} parent=39 // pred_fallthru
          _
        %s275 = sand.u32 %s32, 1
        %s276 = scalar_lea.sflag [#allocation3], %s275
        %s277 = sand.u32 %s32, 1
        %s278 = smul.addr %s277, 16
        %s279 = scalar_lea.vmem [#allocation2], %s278
        %p280 = pneg %p45
        %p281 = pneg %p42
        %p282 = pneg %p66
        %p283 = pneg %p63
        %p284 = pneg %p87
        %p285 = pneg %p84
        %p286 = pneg %p108
        %p287 = pneg %p105
        %p288 = pneg %p129
        %p289 = pneg %p126
        %p290 = pneg %p155
        %p291 = pneg %p152
        %s292 = sand.u32 %s142, 1
        %s293 = scalar_lea.sflag [#allocation4], %s292
        %s294 = sand.u32 %s142, 1
        %s295 = smul.addr %s294, 24
        %s296 = scalar_lea.vmem [#allocation11], %s295
        %v297 = vld [vmem:[%s254] sm:$0xff]
        %v298 = vld [vmem:[%s254 + $0x8] sm:$0xff]
        %v299 = vld [vmem:[#allocation5] sm:$0xff]
        %v300 = vld [vmem:[#allocation5 + $0x8] sm:$0xff]
        %v301 = vld [vmem:[#allocation5 + $0x10] sm:$0xff]
        %v302 = vld [vmem:[#allocation5 + $0x18] sm:$0xff]
        %v303 = vld [vmem:[#allocation5 + $0x20] sm:$0xff]
        %v304 = vld [vmem:[#allocation5 + $0x28] sm:$0xff]
        %v305 = vld [vmem:[#allocation5 + $0x30] sm:$0xff]
        %v306 = vld [vmem:[#allocation5 + $0x38] sm:$0xff]
        %v307 = vld [vmem:[#allocation5 + $0x40] sm:$0xff]
        %v308 = vld [vmem:[#allocation5 + $0x48] sm:$0xff]
        %v309 = vld [vmem:[#allocation5 + $0x50] sm:$0xff]
        %v310 = vld [vmem:[#allocation5 + $0x58] sm:$0xff]
        %v311 = vld [vmem:[#allocation5 + $0x60] sm:$0xff]
        %v312 = vld [vmem:[#allocation5 + $0x68] sm:$0xff]
        %v313 = vld [vmem:[#allocation5 + $0x70] sm:$0xff]
        %v314 = vld [vmem:[#allocation5 + $0x78] sm:$0xff]
        %v315 = vld [vmem:[#allocation5 + $0x80] sm:$0xff]
        %v316 = vld [vmem:[#allocation5 + $0x88] sm:$0xff]
        %v317 = vld [vmem:[#allocation5 + $0x90] sm:$0xff]
        %v318 = vld [vmem:[#allocation5 + $0x98] sm:$0xff]
        %v319 = vld [vmem:[#allocation5 + $0xa0] sm:$0xff]
        %v320 = vld [vmem:[#allocation5 + $0xa8] sm:$0xff]
        %v321 = vld [vmem:[#allocation5 + $0xb0] sm:$0xff]
        %v322 = vld [vmem:[#allocation5 + $0xb8] sm:$0xff]
        %vm323 = vcmask 130048
        %v325 = vsel %vm323, %v297, 0
        %v328 = vsel %vm323, %v298, 0
        %330 = vmatprep.subr.mxu0 %v300
        %331 = vmatpush1.msra.mxu0 %v299
        %332 = vmatprep.subr.mxu0 %v312
        %333 = vmatpush1.msra.mxu0 %v311
        %334 = vmatprep.subr.mxu0 0.0
        %335 = vmatpush1.msra.mxu0 0.0
        %336 = vmatprep.subr.mxu0 0.0
        %337 = vmatpush1.msra.mxu0 0.0
        %338 = vmatprep.subr.mxu0 0.0
        %339 = vmatpush1.msra.mxu0 0.0
        %340 = vmatprep.subr.mxu0 0.0
        %341 = vmatpush1.msra.mxu0 0.0
        %342 = vmatprep.subr.mxu0 0.0
        %343 = vmatpush1.msra.mxu0 0.0
        %344 = vmatprep.subr.mxu0 0.0
        %345 = vmatpush1.msra.mxu0 0.0
        %346 = vmatprep.subr.mxu0 0.0
        %347 = vmatpush1.msra.mxu0 0.0
        %348 = vmatprep.subr.mxu0 0.0
        %349 = vmatpush1.msra.mxu0 0.0
        %350 = vmatprep.subr.mxu0 0.0
        %351 = vmatpush1.msra.mxu0 0.0
        %352 = vmatprep.subr.mxu0 0.0
        %353 = vmatpush1.msra.mxu0 0.0
        %354 = vmatprep.subr.mxu0 0.0
        %355 = vmatpush1.msra.mxu0 0.0
        %356 = vmatprep.subr.mxu0 0.0
        %357 = vmatpush1.msra.mxu0 0.0
        %358 = vmatprep.subr.mxu0 0.0
        %359 = vmatpush1.msra.mxu0 0.0
        %360 = vmatprep.subr.mxu0 0.0
        %361 = vmatpush1.msra.mxu0 0.0
        %362 = vmatprep.subr.mxu0 0.0
        %363 = vmatpush1.msra.mxu0 0.0
        %364 = vmatprep.subr.mxu0 0.0
        %365 = vmatpush1.msra.mxu0 0.0
        %366 = vmatprep.subr.mxu0 0.0
        %367 = vmatpush1.msra.mxu0 0.0
        %368 = vmatprep.subr.mxu0 0.0
        %369 = vmatpush1.msra.mxu0 0.0
        %370 = vmatprep.subr.mxu0 0.0
        %371 = vmatpush1.msra.mxu0 0.0
        %372 = vmatprep.subr.mxu0 0.0
        %373 = vmatpush1.msra.mxu0 0.0
        %374 = vmatprep.subr.mxu0 0.0
        %375 = vmatpush1.msra.mxu0 0.0
        %376 = vmatprep.subr.mxu0 0.0
        %377 = vmatpush1.msra.mxu0 0.0
        %378 = vmatprep.subr.mxu0 0.0
        %379 = vmatpush1.msra.mxu0 0.0
        %380 = vmatprep.subr.mxu0 0.0
        %381 = vmatpush1.msra.mxu0 0.0
        %382 = vmatprep.subr.mxu0 0.0
        %383 = vmatpush1.msra.mxu0 0.0
        %384 = vmatprep.subr.mxu0 0.0
        %385 = vmatpush1.msra.mxu0 0.0
        %386 = vmatprep.subr.mxu0 0.0
        %387 = vmatpush1.msra.mxu0 0.0
        %388 = vmatprep.subr.mxu0 0.0
        %389 = vmatpush1.msra.mxu0 0.0
        %390 = vmatprep.subr.mxu0 0.0
        %391 = vmatpush1.msra.mxu0 0.0
        %392 = vmatprep.subr.mxu0 0.0
        %393 = vmatpush1.msra.mxu0 0.0
        %394 = vmatprep.mubr.f32.mxu0 0.0
        %395 = vmatmul.mubr.f32.gmra.mrb[0].mxu0 %v325
        %v396 = vpop.f32.mrb[0].mxu0
        %v397 = vadd.f32 0.0, %v396
        %v398 = vpop.f32.mrb[0].mxu0
        %v399 = vadd.f32 0.0, %v398
        %400 = vmatprep.mubr.f32.mxu0 0.0
        %401 = vmatmul.mubr.f32.gmra.mrb[0].mxu0 %v328
        %v402 = vpop.f32.mrb[0].mxu0
        %v403 = vadd.f32 0.0, %v402
        %v404 = vpop.f32.mrb[0].mxu0
        %v405 = vadd.f32 0.0, %v404
        %406 = vdwg.mxu0
        %407 = vmatprep.subr.mxu0 %v302
        %408 = vmatpush1.msra.mxu0 %v301
        %409 = vmatprep.subr.mxu0 %v314
        %410 = vmatpush1.msra.mxu0 %v313
        %411 = vmatprep.subr.mxu0 0.0
        %412 = vmatpush1.msra.mxu0 0.0
        %413 = vmatprep.subr.mxu0 0.0
        %414 = vmatpush1.msra.mxu0 0.0
        %415 = vmatprep.subr.mxu0 0.0
        %416 = vmatpush1.msra.mxu0 0.0
        %417 = vmatprep.subr.mxu0 0.0
        %418 = vmatpush1.msra.mxu0 0.0
        %419 = vmatprep.subr.mxu0 0.0
        %420 = vmatpush1.msra.mxu0 0.0
        %421 = vmatprep.subr.mxu0 0.0
        %422 = vmatpush1.msra.mxu0 0.0
        %423 = vmatprep.subr.mxu0 0.0
        %424 = vmatpush1.msra.mxu0 0.0
        %425 = vmatprep.subr.mxu0 0.0
        %426 = vmatpush1.msra.mxu0 0.0
        %427 = vmatprep.subr.mxu0 0.0
        %428 = vmatpush1.msra.mxu0 0.0
        %429 = vmatprep.subr.mxu0 0.0
        %430 = vmatpush1.msra.mxu0 0.0
        %431 = vmatprep.subr.mxu0 0.0
        %432 = vmatpush1.msra.mxu0 0.0
        %433 = vmatprep.subr.mxu0 0.0
        %434 = vmatpush1.msra.mxu0 0.0
        %435 = vmatprep.subr.mxu0 0.0
        %436 = vmatpush1.msra.mxu0 0.0
        %437 = vmatprep.subr.mxu0 0.0
        %438 = vmatpush1.msra.mxu0 0.0
        %439 = vmatprep.subr.mxu0 0.0
        %440 = vmatpush1.msra.mxu0 0.0
        %441 = vmatprep.subr.mxu0 0.0
        %442 = vmatpush1.msra.mxu0 0.0
        %443 = vmatprep.subr.mxu0 0.0
        %444 = vmatpush1.msra.mxu0 0.0
        %445 = vmatprep.subr.mxu0 0.0
        %446 = vmatpush1.msra.mxu0 0.0
        %447 = vmatprep.subr.mxu0 0.0
        %448 = vmatpush1.msra.mxu0 0.0
        %449 = vmatprep.subr.mxu0 0.0
        %450 = vmatpush1.msra.mxu0 0.0
        %451 = vmatprep.subr.mxu0 0.0
        %452 = vmatpush1.msra.mxu0 0.0
        %453 = vmatprep.subr.mxu0 0.0
        %454 = vmatpush1.msra.mxu0 0.0
        %455 = vmatprep.subr.mxu0 0.0
        %456 = vmatpush1.msra.mxu0 0.0
        %457 = vmatprep.subr.mxu0 0.0
        %458 = vmatpush1.msra.mxu0 0.0
        %459 = vmatprep.subr.mxu0 0.0
        %460 = vmatpush1.msra.mxu0 0.0
        %461 = vmatprep.subr.mxu0 0.0
        %462 = vmatpush1.msra.mxu0 0.0
        %463 = vmatprep.subr.mxu0 0.0
        %464 = vmatpush1.msra.mxu0 0.0
        %465 = vmatprep.subr.mxu0 0.0
        %466 = vmatpush1.msra.mxu0 0.0
        %467 = vmatprep.subr.mxu0 0.0
        %468 = vmatpush1.msra.mxu0 0.0
        %469 = vmatprep.subr.mxu0 0.0
        %470 = vmatpush1.msra.mxu0 0.0
        %471 = vmatprep.mubr.f32.mxu0 0.0
        %472 = vmatmul.mubr.f32.gmra.mrb[0].mxu0 %v325
        %v473 = vpop.f32.mrb[0].mxu0
        %v474 = vadd.f32 0.0, %v473
        %v475 = vpop.f32.mrb[0].mxu0
        %v476 = vadd.f32 0.0, %v475
        %477 = vmatprep.mubr.f32.mxu0 0.0
        %478 = vmatmul.mubr.f32.gmra.mrb[0].mxu0 %v328
        %v479 = vpop.f32.mrb[0].mxu0
        %v480 = vadd.f32 0.0, %v479
        %v481 = vpop.f32.mrb[0].mxu0
        %v482 = vadd.f32 0.0, %v481
        %483 = vdwg.mxu0
        %484 = vmatprep.subr.mxu0 %v304
        %485 = vmatpush1.msra.mxu0 %v303
        %486 = vmatprep.subr.mxu0 %v316
        %487 = vmatpush1.msra.mxu0 %v315
        %488 = vmatprep.subr.mxu0 0.0
        %489 = vmatpush1.msra.mxu0 0.0
        %490 = vmatprep.subr.mxu0 0.0
        %491 = vmatpush1.msra.mxu0 0.0
        %492 = vmatprep.subr.mxu0 0.0
        %493 = vmatpush1.msra.mxu0 0.0
        %494 = vmatprep.subr.mxu0 0.0
        %495 = vmatpush1.msra.mxu0 0.0
        %496 = vmatprep.subr.mxu0 0.0
        %497 = vmatpush1.msra.mxu0 0.0
        %498 = vmatprep.subr.mxu0 0.0
        %499 = vmatpush1.msra.mxu0 0.0
        %500 = vmatprep.subr.mxu0 0.0
        %501 = vmatpush1.msra.mxu0 0.0
        %502 = vmatprep.subr.mxu0 0.0
        %503 = vmatpush1.msra.mxu0 0.0
        %504 = vmatprep.subr.mxu0 0.0
        %505 = vmatpush1.msra.mxu0 0.0
        %506 = vmatprep.subr.mxu0 0.0
        %507 = vmatpush1.msra.mxu0 0.0
        %508 = vmatprep.subr.mxu0 0.0
        %509 = vmatpush1.msra.mxu0 0.0
        %510 = vmatprep.subr.mxu0 0.0
        %511 = vmatpush1.msra.mxu0 0.0
        %512 = vmatprep.subr.mxu0 0.0
        %513 = vmatpush1.msra.mxu0 0.0
        %514 = vmatprep.subr.mxu0 0.0
        %515 = vmatpush1.msra.mxu0 0.0
        %516 = vmatprep.subr.mxu0 0.0
        %517 = vmatpush1.msra.mxu0 0.0
        %518 = vmatprep.subr.mxu0 0.0
        %519 = vmatpush1.msra.mxu0 0.0
        %520 = vmatprep.subr.mxu0 0.0
        %521 = vmatpush1.msra.mxu0 0.0
        %522 = vmatprep.subr.mxu0 0.0
        %523 = vmatpush1.msra.mxu0 0.0
        %524 = vmatprep.subr.mxu0 0.0
        %525 = vmatpush1.msra.mxu0 0.0
        %526 = vmatprep.subr.mxu0 0.0
        %527 = vmatpush1.msra.mxu0 0.0
        %528 = vmatprep.subr.mxu0 0.0
        %529 = vmatpush1.msra.mxu0 0.0
        %530 = vmatprep.subr.mxu0 0.0
        %531 = vmatpush1.msra.mxu0 0.0
        %532 = vmatprep.subr.mxu0 0.0
        %533 = vmatpush1.msra.mxu0 0.0
        %534 = vmatprep.subr.mxu0 0.0
        %535 = vmatpush1.msra.mxu0 0.0
        %536 = vmatprep.subr.mxu0 0.0
        %537 = vmatpush1.msra.mxu0 0.0
        %538 = vmatprep.subr.mxu0 0.0
        %539 = vmatpush1.msra.mxu0 0.0
        %540 = vmatprep.subr.mxu0 0.0
        %541 = vmatpush1.msra.mxu0 0.0
        %542 = vmatprep.subr.mxu0 0.0
        %543 = vmatpush1.msra.mxu0 0.0
        %544 = vmatprep.subr.mxu0 0.0
        %545 = vmatpush1.msra.mxu0 0.0
        %546 = vmatprep.subr.mxu0 0.0
        %547 = vmatpush1.msra.mxu0 0.0
        %548 = vmatprep.mubr.f32.mxu0 0.0
        %549 = vmatmul.mubr.f32.gmra.mrb[0].mxu0 %v325
        %v550 = vpop.f32.mrb[0].mxu0
        %v551 = vadd.f32 0.0, %v550
        %v552 = vpop.f32.mrb[0].mxu0
        %v553 = vadd.f32 0.0, %v552
        %554 = vmatprep.mubr.f32.mxu0 0.0
        %555 = vmatmul.mubr.f32.gmra.mrb[0].mxu0 %v328
        %v556 = vpop.f32.mrb[0].mxu0
        %v557 = vadd.f32 0.0, %v556
        %v558 = vpop.f32.mrb[0].mxu0
        %v559 = vadd.f32 0.0, %v558
        %560 = vdwg.mxu0
        %561 = vmatprep.subr.mxu0 %v306
        %562 = vmatpush1.msra.mxu0 %v305
        %563 = vmatprep.subr.mxu0 %v318
        %564 = vmatpush1.msra.mxu0 %v317
        %565 = vmatprep.subr.mxu0 0.0
        %566 = vmatpush1.msra.mxu0 0.0
        %567 = vmatprep.subr.mxu0 0.0
        %568 = vmatpush1.msra.mxu0 0.0
        %569 = vmatprep.subr.mxu0 0.0
        %570 = vmatpush1.msra.mxu0 0.0
        %571 = vmatprep.subr.mxu0 0.0
        %572 = vmatpush1.msra.mxu0 0.0
        %573 = vmatprep.subr.mxu0 0.0
        %574 = vmatpush1.msra.mxu0 0.0
        %575 = vmatprep.subr.mxu0 0.0
        %576 = vmatpush1.msra.mxu0 0.0
        %577 = vmatprep.subr.mxu0 0.0
        %578 = vmatpush1.msra.mxu0 0.0
        %579 = vmatprep.subr.mxu0 0.0
        %580 = vmatpush1.msra.mxu0 0.0
        %581 = vmatprep.subr.mxu0 0.0
        %582 = vmatpush1.msra.mxu0 0.0
        %583 = vmatprep.subr.mxu0 0.0
        %584 = vmatpush1.msra.mxu0 0.0
        %585 = vmatprep.subr.mxu0 0.0
        %586 = vmatpush1.msra.mxu0 0.0
        %587 = vmatprep.subr.mxu0 0.0
        %588 = vmatpush1.msra.mxu0 0.0
        %589 = vmatprep.subr.mxu0 0.0
        %590 = vmatpush1.msra.mxu0 0.0
        %591 = vmatprep.subr.mxu0 0.0
        %592 = vmatpush1.msra.mxu0 0.0
        %593 = vmatprep.subr.mxu0 0.0
        %594 = vmatpush1.msra.mxu0 0.0
        %595 = vmatprep.subr.mxu0 0.0
        %596 = vmatpush1.msra.mxu0 0.0
        %597 = vmatprep.subr.mxu0 0.0
        %598 = vmatpush1.msra.mxu0 0.0
        %599 = vmatprep.subr.mxu0 0.0
        %600 = vmatpush1.msra.mxu0 0.0
        %601 = vmatprep.subr.mxu0 0.0
        %602 = vmatpush1.msra.mxu0 0.0
        %603 = vmatprep.subr.mxu0 0.0
        %604 = vmatpush1.msra.mxu0 0.0
        %605 = vmatprep.subr.mxu0 0.0
        %606 = vmatpush1.msra.mxu0 0.0
        %607 = vmatprep.subr.mxu0 0.0
        %608 = vmatpush1.msra.mxu0 0.0
        %609 = vmatprep.subr.mxu0 0.0
        %610 = vmatpush1.msra.mxu0 0.0
        %611 = vmatprep.subr.mxu0 0.0
        %612 = vmatpush1.msra.mxu0 0.0
        %613 = vmatprep.subr.mxu0 0.0
        %614 = vmatpush1.msra.mxu0 0.0
        %615 = vmatprep.subr.mxu0 0.0
        %616 = vmatpush1.msra.mxu0 0.0
        %617 = vmatprep.subr.mxu0 0.0
        %618 = vmatpush1.msra.mxu0 0.0
        %619 = vmatprep.subr.mxu0 0.0
        %620 = vmatpush1.msra.mxu0 0.0
        %621 = vmatprep.subr.mxu0 0.0
        %622 = vmatpush1.msra.mxu0 0.0
        %623 = vmatprep.subr.mxu0 0.0
        %624 = vmatpush1.msra.mxu0 0.0
        %625 = vmatprep.mubr.f32.mxu0 0.0
        %626 = vmatmul.mubr.f32.gmra.mrb[0].mxu0 %v325
        %v627 = vpop.f32.mrb[0].mxu0
        %v628 = vadd.f32 0.0, %v627
        %v629 = vpop.f32.mrb[0].mxu0
        %v630 = vadd.f32 0.0, %v629
        %631 = vmatprep.mubr.f32.mxu0 0.0
        %632 = vmatmul.mubr.f32.gmra.mrb[0].mxu0 %v328
        %v633 = vpop.f32.mrb[0].mxu0
        %v634 = vadd.f32 0.0, %v633
        %v635 = vpop.f32.mrb[0].mxu0
        %v636 = vadd.f32 0.0, %v635
        %637 = vdwg.mxu0
        %638 = vmatprep.subr.mxu0 %v308
        %639 = vmatpush1.msra.mxu0 %v307
        %640 = vmatprep.subr.mxu0 %v320
        %641 = vmatpush1.msra.mxu0 %v319
        %642 = vmatprep.subr.mxu0 0.0
        %643 = vmatpush1.msra.mxu0 0.0
        %644 = vmatprep.subr.mxu0 0.0
        %645 = vmatpush1.msra.mxu0 0.0
        %646 = vmatprep.subr.mxu0 0.0
        %647 = vmatpush1.msra.mxu0 0.0
        %648 = vmatprep.subr.mxu0 0.0
        %649 = vmatpush1.msra.mxu0 0.0
        %650 = vmatprep.subr.mxu0 0.0
        %651 = vmatpush1.msra.mxu0 0.0
        %652 = vmatprep.subr.mxu0 0.0
        %653 = vmatpush1.msra.mxu0 0.0
        %654 = vmatprep.subr.mxu0 0.0
        %655 = vmatpush1.msra.mxu0 0.0
        %656 = vmatprep.subr.mxu0 0.0
        %657 = vmatpush1.msra.mxu0 0.0
        %658 = vmatprep.subr.mxu0 0.0
        %659 = vmatpush1.msra.mxu0 0.0
        %660 = vmatprep.subr.mxu0 0.0
        %661 = vmatpush1.msra.mxu0 0.0
        %662 = vmatprep.subr.mxu0 0.0
        %663 = vmatpush1.msra.mxu0 0.0
        %664 = vmatprep.subr.mxu0 0.0
        %665 = vmatpush1.msra.mxu0 0.0
        %666 = vmatprep.subr.mxu0 0.0
        %667 = vmatpush1.msra.mxu0 0.0
        %668 = vmatprep.subr.mxu0 0.0
        %669 = vmatpush1.msra.mxu0 0.0
        %670 = vmatprep.subr.mxu0 0.0
        %671 = vmatpush1.msra.mxu0 0.0
        %672 = vmatprep.subr.mxu0 0.0
        %673 = vmatpush1.msra.mxu0 0.0
        %674 = vmatprep.subr.mxu0 0.0
        %675 = vmatpush1.msra.mxu0 0.0
        %676 = vmatprep.subr.mxu0 0.0
        %677 = vmatpush1.msra.mxu0 0.0
        %678 = vmatprep.subr.mxu0 0.0
        %679 = vmatpush1.msra.mxu0 0.0
        %680 = vmatprep.subr.mxu0 0.0
        %681 = vmatpush1.msra.mxu0 0.0
        %682 = vmatprep.subr.mxu0 0.0
        %683 = vmatpush1.msra.mxu0 0.0
        %684 = vmatprep.subr.mxu0 0.0
        %685 = vmatpush1.msra.mxu0 0.0
        %686 = vmatprep.subr.mxu0 0.0
        %687 = vmatpush1.msra.mxu0 0.0
        %688 = vmatprep.subr.mxu0 0.0
        %689 = vmatpush1.msra.mxu0 0.0
        %690 = vmatprep.subr.mxu0 0.0
        %691 = vmatpush1.msra.mxu0 0.0
        %692 = vmatprep.subr.mxu0 0.0
        %693 = vmatpush1.msra.mxu0 0.0
        %694 = vmatprep.subr.mxu0 0.0
        %695 = vmatpush1.msra.mxu0 0.0
        %696 = vmatprep.subr.mxu0 0.0
        %697 = vmatpush1.msra.mxu0 0.0
        %698 = vmatprep.subr.mxu0 0.0
        %699 = vmatpush1.msra.mxu0 0.0
        %700 = vmatprep.subr.mxu0 0.0
        %701 = vmatpush1.msra.mxu0 0.0
        %702 = vmatprep.mubr.f32.mxu0 0.0
        %703 = vmatmul.mubr.f32.gmra.mrb[0].mxu0 %v325
        %v704 = vpop.f32.mrb[0].mxu0
        %v705 = vadd.f32 0.0, %v704
        %v706 = vpop.f32.mrb[0].mxu0
        %v707 = vadd.f32 0.0, %v706
        %708 = vmatprep.mubr.f32.mxu0 0.0
        %709 = vmatmul.mubr.f32.gmra.mrb[0].mxu0 %v328
        %v710 = vpop.f32.mrb[0].mxu0
        %v711 = vadd.f32 0.0, %v710
        %v712 = vpop.f32.mrb[0].mxu0
        %v713 = vadd.f32 0.0, %v712
        %714 = vdwg.mxu0
        %715 = vmatprep.subr.mxu0 %v310
        %716 = vmatpush1.msra.mxu0 %v309
        %717 = vmatprep.subr.mxu0 %v322
        %718 = vmatpush1.msra.mxu0 %v321
        %719 = vmatprep.subr.mxu0 0.0
        %720 = vmatpush1.msra.mxu0 0.0
        %721 = vmatprep.subr.mxu0 0.0
        %722 = vmatpush1.msra.mxu0 0.0
        %723 = vmatprep.subr.mxu0 0.0
        %724 = vmatpush1.msra.mxu0 0.0
        %725 = vmatprep.subr.mxu0 0.0
        %726 = vmatpush1.msra.mxu0 0.0
        %727 = vmatprep.subr.mxu0 0.0
        %728 = vmatpush1.msra.mxu0 0.0
        %729 = vmatprep.subr.mxu0 0.0
        %730 = vmatpush1.msra.mxu0 0.0
        %731 = vmatprep.subr.mxu0 0.0
        %732 = vmatpush1.msra.mxu0 0.0
        %733 = vmatprep.subr.mxu0 0.0
        %734 = vmatpush1.msra.mxu0 0.0
        %735 = vmatprep.subr.mxu0 0.0
        %736 = vmatpush1.msra.mxu0 0.0
        %737 = vmatprep.subr.mxu0 0.0
        %738 = vmatpush1.msra.mxu0 0.0
        %739 = vmatprep.subr.mxu0 0.0
        %740 = vmatpush1.msra.mxu0 0.0
        %741 = vmatprep.subr.mxu0 0.0
        %742 = vmatpush1.msra.mxu0 0.0
        %743 = vmatprep.subr.mxu0 0.0
        %744 = vmatpush1.msra.mxu0 0.0
        %745 = vmatprep.subr.mxu0 0.0
        %746 = vmatpush1.msra.mxu0 0.0
        %747 = vmatprep.subr.mxu0 0.0
        %748 = vmatpush1.msra.mxu0 0.0
        %749 = vmatprep.subr.mxu0 0.0
        %750 = vmatpush1.msra.mxu0 0.0
        %751 = vmatprep.subr.mxu0 0.0
        %752 = vmatpush1.msra.mxu0 0.0
        %753 = vmatprep.subr.mxu0 0.0
        %754 = vmatpush1.msra.mxu0 0.0
        %755 = vmatprep.subr.mxu0 0.0
        %756 = vmatpush1.msra.mxu0 0.0
        %757 = vmatprep.subr.mxu0 0.0
        %758 = vmatpush1.msra.mxu0 0.0
        %759 = vmatprep.subr.mxu0 0.0
        %760 = vmatpush1.msra.mxu0 0.0
        %761 = vmatprep.subr.mxu0 0.0
        %762 = vmatpush1.msra.mxu0 0.0
        %763 = vmatprep.subr.mxu0 0.0
        %764 = vmatpush1.msra.mxu0 0.0
        %765 = vmatprep.subr.mxu0 0.0
        %766 = vmatpush1.msra.mxu0 0.0
        %767 = vmatprep.subr.mxu0 0.0
        %768 = vmatpush1.msra.mxu0 0.0
        %769 = vmatprep.subr.mxu0 0.0
        %770 = vmatpush1.msra.mxu0 0.0
        %771 = vmatprep.subr.mxu0 0.0
        %772 = vmatpush1.msra.mxu0 0.0
        %773 = vmatprep.subr.mxu0 0.0
        %774 = vmatpush1.msra.mxu0 0.0
        %775 = vmatprep.subr.mxu0 0.0
        %776 = vmatpush1.msra.mxu0 0.0
        %777 = vmatprep.subr.mxu0 0.0
        %778 = vmatpush1.msra.mxu0 0.0
        %779 = vmatprep.mubr.f32.mxu0 0.0
        %780 = vmatmul.mubr.f32.gmra.mrb[0].mxu0 %v325
        %v781 = vpop.f32.mrb[0].mxu0
        %v782 = vadd.f32 0.0, %v781
        %v783 = vpop.f32.mrb[0].mxu0
        %v784 = vadd.f32 0.0, %v783
        %785 = vmatprep.mubr.f32.mxu0 0.0
        %786 = vmatmul.mubr.f32.gmra.mrb[0].mxu0 %v328
        %v787 = vpop.f32.mrb[0].mxu0
        %v788 = vadd.f32 0.0, %v787
        %v789 = vpop.f32.mrb[0].mxu0
        %v790 = vadd.f32 0.0, %v789
        %791 = vdwg.mxu0
        %vm800 = vcmask 1046528
        %v801 = vrot.slane %v551, 1
        %v802 = vrot.slane %v557, 1
        %v803 = vsel %vm800, %v801, %v802
        %v804 = vrot.slane %v553, 1
        %v805 = vrot.slane %v559, 1
        %v806 = vsel %vm800, %v804, %v805
        %v807 = vrot.slane %v628, 1
        %v808 = vrot.slane %v634, 1
        %v809 = vsel %vm800, %v807, %v808
        %v810 = vrot.slane %v630, 1
        %v811 = vrot.slane %v636, 1
        %v812 = vsel %vm800, %v810, %v811
        %v821 = vadd.f32 %v397, %v803
        %v822 = vadd.f32 %v399, %v806
        %v823 = vadd.f32 %v474, %v809
        %v824 = vadd.f32 %v476, %v812
        %v825 = vadd.f32 %v403, %v802
        %v826 = vadd.f32 %v405, %v805
        %v827 = vadd.f32 %v480, %v808
        %v828 = vadd.f32 %v482, %v811
        %vm837 = vcmask 1045504
        %v838 = vrot.slane %v705, 2
        %v839 = vrot.slane %v711, 2
        %v840 = vsel %vm837, %v838, %v839
        %v841 = vrot.slane %v707, 2
        %v842 = vrot.slane %v713, 2
        %v843 = vsel %vm837, %v841, %v842
        %v844 = vrot.slane %v782, 2
        %v845 = vrot.slane %v788, 2
        %v846 = vsel %vm837, %v844, %v845
        %v847 = vrot.slane %v784, 2
        %v848 = vrot.slane %v790, 2
        %v849 = vsel %vm837, %v847, %v848
        %v858 = vadd.f32 %v821, %v840
        %v859 = vadd.f32 %v822, %v843
        %v860 = vadd.f32 %v823, %v846
        %v861 = vadd.f32 %v824, %v849
        %v862 = vadd.f32 %v825, %v839
        %v863 = vadd.f32 %v826, %v842
        %v864 = vadd.f32 %v827, %v845
        %v865 = vadd.f32 %v828, %v848
        %v866 = vld [vmem:[#allocation7] sm:$0xf]
        %v868 = vlaneseq
        %v869 = vshrl.u32 %v868, 7
        %v870 = vsub.s32 0, %v869
        %v871 = vrot.slane %v866, %v870
        %v872 = vlaneseq
        %v873 = vshrl.u32 %v872, 7
        %v874 = vsub.s32 1, %v873
        %v875 = vrot.slane %v866, %v874
        %v876 = vlaneseq
        %v877 = vshrl.u32 %v876, 7
        %v878 = vsub.s32 2, %v877
        %v879 = vrot.slane %v866, %v878
        %v880 = vlaneseq
        %v881 = vshrl.u32 %v880, 7
        %v882 = vsub.s32 3, %v881
        %v883 = vrot.slane %v866, %v882
        %v888 = vadd.f32 %v858, %v871
        %v889 = vadd.f32 %v859, %v875
        %v890 = vadd.f32 %v860, %v879
        %v891 = vadd.f32 %v861, %v883
        %v892 = vadd.f32 %v862, %v871
        %v893 = vadd.f32 %v863, %v875
        %v894 = vadd.f32 %v864, %v879
        %v895 = vadd.f32 %v865, %v883
        %v896 = vmax.f32 %v888, 0.0
        %v897 = vmax.f32 %v889, 0.0
        %v898 = vmax.f32 %v890, 0.0
        %v899 = vmax.f32 %v891, 0.0
        %v900 = vmax.f32 %v892, 0.0
        %v901 = vmax.f32 %v893, 0.0
        %v902 = vmax.f32 %v894, 0.0
        %v903 = vmax.f32 %v895, 0.0
        %v904 = vsel %vm837, %v900, 0.0
        %v905 = vsel %vm837, %v901, 0.0
        %v906 = vsel %vm837, %v902, 0.0
        %v907 = vsel %vm837, %v903, 0.0
        %v908 = vld [vmem:[#allocation8] sm:$0xff]
        %v909 = vld [vmem:[#allocation8 + $0x8] sm:$0xff]
        %v910 = vld [vmem:[#allocation8 + $0x10] sm:$0xff]
        %v911 = vld [vmem:[#allocation8 + $0x18] sm:$0xff]
        %v912 = vld [vmem:[#allocation8 + $0x20] sm:$0xff]
        %v913 = vld [vmem:[#allocation8 + $0x28] sm:$0xff]
        %v914 = vld [vmem:[#allocation8 + $0x30] sm:$0xff]
        %v915 = vld [vmem:[#allocation8 + $0x38] sm:$0xff]
        %v916 = vld [vmem:[#allocation8 + $0x40] sm:$0xff]
        %v917 = vld [vmem:[#allocation8 + $0x48] sm:$0xff]
        %v918 = vld [vmem:[#allocation8 + $0x50] sm:$0xff]
        %v919 = vld [vmem:[#allocation8 + $0x58] sm:$0xff]
        %v920 = vld [vmem:[#allocation8 + $0x60] sm:$0xff]
        %v921 = vld [vmem:[#allocation8 + $0x68] sm:$0xff]
        %v922 = vld [vmem:[#allocation8 + $0x70] sm:$0xff]
        %v923 = vld [vmem:[#allocation8 + $0x78] sm:$0xff]
        %v924 = vld [vmem:[#allocation8 + $0x80] sm:$0xff]
        %v925 = vld [vmem:[#allocation8 + $0x88] sm:$0xff]
        %v926 = vld [vmem:[#allocation8 + $0x90] sm:$0xff]
        %v927 = vld [vmem:[#allocation8 + $0x98] sm:$0xff]
        %v928 = vld [vmem:[#allocation8 + $0xa0] sm:$0xff]
        %v929 = vld [vmem:[#allocation8 + $0xa8] sm:$0xff]
        %v930 = vld [vmem:[#allocation8 + $0xb0] sm:$0xff]
        %v931 = vld [vmem:[#allocation8 + $0xb8] sm:$0xff]
        %v932 = vld [vmem:[#allocation8 + $0xc0] sm:$0xff]
        %v933 = vld [vmem:[#allocation8 + $0xc8] sm:$0xff]
        %v934 = vld [vmem:[#allocation8 + $0xd0] sm:$0xff]
        %v935 = vld [vmem:[#allocation8 + $0xd8] sm:$0xff]
        %v936 = vld [vmem:[#allocation8 + $0xe0] sm:$0xff]
        %v937 = vld [vmem:[#allocation8 + $0xe8] sm:$0xff]
        %v938 = vld [vmem:[#allocation8 + $0xf0] sm:$0xff]
        %v939 = vld [vmem:[#allocation8 + $0xf8] sm:$0xff]
        %v940 = vld [vmem:[#allocation8 + $0x100] sm:$0xff]
        %v941 = vld [vmem:[#allocation8 + $0x108] sm:$0xff]
        %v942 = vld [vmem:[#allocation8 + $0x110] sm:$0xff]
        %v943 = vld [vmem:[#allocation8 + $0x118] sm:$0xff]
        %v944 = vld [vmem:[#allocation8 + $0x120] sm:$0xff]
        %v945 = vld [vmem:[#allocation8 + $0x128] sm:$0xff]
        %v946 = vld [vmem:[#allocation8 + $0x130] sm:$0xff]
        %v947 = vld [vmem:[#allocation8 + $0x138] sm:$0xff]
        %v948 = vld [vmem:[#allocation8 + $0x140] sm:$0xff]
        %v949 = vld [vmem:[#allocation8 + $0x148] sm:$0xff]
        %v950 = vld [vmem:[#allocation8 + $0x150] sm:$0xff]
        %v951 = vld [vmem:[#allocation8 + $0x158] sm:$0xff]
        %v952 = vld [vmem:[#allocation8 + $0x160] sm:$0xff]
        %v953 = vld [vmem:[#allocation8 + $0x168] sm:$0xff]
        %v954 = vld [vmem:[#allocation8 + $0x170] sm:$0xff]
        %v955 = vld [vmem:[#allocation8 + $0x178] sm:$0xff]
        %v956 = vld [vmem:[#allocation8 + $0x180] sm:$0xff]
        %v957 = vld [vmem:[#allocation8 + $0x188] sm:$0xff]
        %v958 = vld [vmem:[#allocation8 + $0x190] sm:$0xff]
        %v959 = vld [vmem:[#allocation8 + $0x198] sm:$0xff]
        %v960 = vld [vmem:[#allocation8 + $0x1a0] sm:$0xff]
        %v961 = vld [vmem:[#allocation8 + $0x1a8] sm:$0xff]
        %v962 = vld [vmem:[#allocation8 + $0x1b0] sm:$0xff]
        %v963 = vld [vmem:[#allocation8 + $0x1b8] sm:$0xff]
        %v964 = vld [vmem:[#allocation8 + $0x1c0] sm:$0xff]
        %v965 = vld [vmem:[#allocation8 + $0x1c8] sm:$0xff]
        %v966 = vld [vmem:[#allocation8 + $0x1d0] sm:$0xff]
        %v967 = vld [vmem:[#allocation8 + $0x1d8] sm:$0xff]
        %v968 = vld [vmem:[#allocation8 + $0x1e0] sm:$0xff]
        %v969 = vld [vmem:[#allocation8 + $0x1e8] sm:$0xff]
        %v970 = vld [vmem:[#allocation8 + $0x1f0] sm:$0xff]
        %v971 = vld [vmem:[#allocation8 + $0x1f8] sm:$0xff]
        %v972 = vld [vmem:[#allocation8 + $0x200] sm:$0xff]
        %v973 = vld [vmem:[#allocation8 + $0x208] sm:$0xff]
        %v974 = vld [vmem:[#allocation8 + $0x210] sm:$0xff]
        %v975 = vld [vmem:[#allocation8 + $0x218] sm:$0xff]
        %v976 = vld [vmem:[#allocation8 + $0x220] sm:$0xff]
        %v977 = vld [vmem:[#allocation8 + $0x228] sm:$0xff]
        %v978 = vld [vmem:[#allocation8 + $0x230] sm:$0xff]
        %v979 = vld [vmem:[#allocation8 + $0x238] sm:$0xff]
        %v980 = vld [vmem:[#allocation8 + $0x240] sm:$0xff]
        %v981 = vld [vmem:[#allocation8 + $0x248] sm:$0xff]
        %v982 = vld [vmem:[#allocation8 + $0x250] sm:$0xff]
        %v983 = vld [vmem:[#allocation8 + $0x258] sm:$0xff]
        %v984 = vld [vmem:[#allocation8 + $0x260] sm:$0xff]
        %v985 = vld [vmem:[#allocation8 + $0x268] sm:$0xff]
        %v986 = vld [vmem:[#allocation8 + $0x270] sm:$0xff]
        %v987 = vld [vmem:[#allocation8 + $0x278] sm:$0xff]
        %v988 = vld [vmem:[#allocation8 + $0x280] sm:$0xff]
        %v989 = vld [vmem:[#allocation8 + $0x288] sm:$0xff]
        %v990 = vld [vmem:[#allocation8 + $0x290] sm:$0xff]
        %v991 = vld [vmem:[#allocation8 + $0x298] sm:$0xff]
        %v992 = vld [vmem:[#allocation8 + $0x2a0] sm:$0xff]
        %v993 = vld [vmem:[#allocation8 + $0x2a8] sm:$0xff]
        %v994 = vld [vmem:[#allocation8 + $0x2b0] sm:$0xff]
        %v995 = vld [vmem:[#allocation8 + $0x2b8] sm:$0xff]
        %v996 = vld [vmem:[#allocation8 + $0x2c0] sm:$0xff]
        %v997 = vld [vmem:[#allocation8 + $0x2c8] sm:$0xff]
        %v998 = vld [vmem:[#allocation8 + $0x2d0] sm:$0xff]
        %v999 = vld [vmem:[#allocation8 + $0x2d8] sm:$0xff]
        %v1000 = vld [vmem:[#allocation8 + $0x2e0] sm:$0xff]
        %v1001 = vld [vmem:[#allocation8 + $0x2e8] sm:$0xff]
        %v1002 = vld [vmem:[#allocation8 + $0x2f0] sm:$0xff]
        %v1003 = vld [vmem:[#allocation8 + $0x2f8] sm:$0xff]
        %v1004 = vld [vmem:[#allocation8 + $0x300] sm:$0xff]
        %v1005 = vld [vmem:[#allocation8 + $0x308] sm:$0xff]
        %v1006 = vld [vmem:[#allocation8 + $0x310] sm:$0xff]
        %v1007 = vld [vmem:[#allocation8 + $0x318] sm:$0xff]
        %v1008 = vld [vmem:[#allocation8 + $0x320] sm:$0xff]
        %v1009 = vld [vmem:[#allocation8 + $0x328] sm:$0xff]
        %v1010 = vld [vmem:[#allocation8 + $0x330] sm:$0xff]
        %v1011 = vld [vmem:[#allocation8 + $0x338] sm:$0xff]
        %v1012 = vld [vmem:[#allocation8 + $0x340] sm:$0xff]
        %v1013 = vld [vmem:[#allocation8 + $0x348] sm:$0xff]
        %v1014 = vld [vmem:[#allocation8 + $0x350] sm:$0xff]
        %v1015 = vld [vmem:[#allocation8 + $0x358] sm:$0xff]
        %v1016 = vld [vmem:[#allocation8 + $0x360] sm:$0xff]
        %v1017 = vld [vmem:[#allocation8 + $0x368] sm:$0xff]
        %v1018 = vld [vmem:[#allocation8 + $0x370] sm:$0xff]
        %v1019 = vld [vmem:[#allocation8 + $0x378] sm:$0xff]
        %v1020 = vld [vmem:[#allocation8 + $0x380] sm:$0xff]
        %v1021 = vld [vmem:[#allocation8 + $0x388] sm:$0xff]
        %v1022 = vld [vmem:[#allocation8 + $0x390] sm:$0xff]
        %v1023 = vld [vmem:[#allocation8 + $0x398] sm:$0xff]
        %v1024 = vld [vmem:[#allocation8 + $0x3a0] sm:$0xff]
        %v1025 = vld [vmem:[#allocation8 + $0x3a8] sm:$0xff]
        %v1026 = vld [vmem:[#allocation8 + $0x3b0] sm:$0xff]
        %v1027 = vld [vmem:[#allocation8 + $0x3b8] sm:$0xff]
        %v1028 = vld [vmem:[#allocation8 + $0x3c0] sm:$0xff]
        %v1029 = vld [vmem:[#allocation8 + $0x3c8] sm:$0xff]
        %v1030 = vld [vmem:[#allocation8 + $0x3d0] sm:$0xff]
        %v1031 = vld [vmem:[#allocation8 + $0x3d8] sm:$0xff]
        %v1032 = vld [vmem:[#allocation8 + $0x3e0] sm:$0xff]
        %v1033 = vld [vmem:[#allocation8 + $0x3e8] sm:$0xff]
        %v1034 = vld [vmem:[#allocation8 + $0x3f0] sm:$0xff]
        %v1035 = vld [vmem:[#allocation8 + $0x3f8] sm:$0xff]
        %v1036 = vld [vmem:[#allocation8 + $0x400] sm:$0xff]
        %v1037 = vld [vmem:[#allocation8 + $0x408] sm:$0xff]
        %v1038 = vld [vmem:[#allocation8 + $0x410] sm:$0xff]
        %v1039 = vld [vmem:[#allocation8 + $0x418] sm:$0xff]
        %v1040 = vld [vmem:[#allocation8 + $0x420] sm:$0xff]
        %v1041 = vld [vmem:[#allocation8 + $0x428] sm:$0xff]
        %v1042 = vld [vmem:[#allocation8 + $0x430] sm:$0xff]
        %v1043 = vld [vmem:[#allocation8 + $0x438] sm:$0xff]
        %v1044 = vld [vmem:[#allocation8 + $0x440] sm:$0xff]
        %v1045 = vld [vmem:[#allocation8 + $0x448] sm:$0xff]
        %v1046 = vld [vmem:[#allocation8 + $0x450] sm:$0xff]
        %v1047 = vld [vmem:[#allocation8 + $0x458] sm:$0xff]
        %v1048 = vld [vmem:[#allocation8 + $0x460] sm:$0xff]
        %v1049 = vld [vmem:[#allocation8 + $0x468] sm:$0xff]
        %v1050 = vld [vmem:[#allocation8 + $0x470] sm:$0xff]
        %v1051 = vld [vmem:[#allocation8 + $0x478] sm:$0xff]
        %v1052 = vld [vmem:[#allocation8 + $0x480] sm:$0xff]
        %v1053 = vld [vmem:[#allocation8 + $0x488] sm:$0xff]
        %v1054 = vld [vmem:[#allocation8 + $0x490] sm:$0xff]
        %v1055 = vld [vmem:[#allocation8 + $0x498] sm:$0xff]
        %v1056 = vld [vmem:[#allocation8 + $0x4a0] sm:$0xff]
        %v1057 = vld [vmem:[#allocation8 + $0x4a8] sm:$0xff]
        %v1058 = vld [vmem:[#allocation8 + $0x4b0] sm:$0xff]
        %v1059 = vld [vmem:[#allocation8 + $0x4b8] sm:$0xff]
        %v1060 = vld [vmem:[#allocation8 + $0x4c0] sm:$0xff]
        %v1061 = vld [vmem:[#allocation8 + $0x4c8] sm:$0xff]
        %v1062 = vld [vmem:[#allocation8 + $0x4d0] sm:$0xff]
        %v1063 = vld [vmem:[#allocation8 + $0x4d8] sm:$0xff]
        %v1064 = vld [vmem:[#allocation8 + $0x4e0] sm:$0xff]
        %v1065 = vld [vmem:[#allocation8 + $0x4e8] sm:$0xff]
        %v1066 = vld [vmem:[#allocation8 + $0x4f0] sm:$0xff]
        %v1067 = vld [vmem:[#allocation8 + $0x4f8] sm:$0xff]
        %v1068 = vld [vmem:[#allocation8 + $0x500] sm:$0xff]
        %v1069 = vld [vmem:[#allocation8 + $0x508] sm:$0xff]
        %v1070 = vld [vmem:[#allocation8 + $0x510] sm:$0xff]
        %v1071 = vld [vmem:[#allocation8 + $0x518] sm:$0xff]
        %v1072 = vld [vmem:[#allocation8 + $0x520] sm:$0xff]
        %v1073 = vld [vmem:[#allocation8 + $0x528] sm:$0xff]
        %v1074 = vld [vmem:[#allocation8 + $0x530] sm:$0xff]
        %v1075 = vld [vmem:[#allocation8 + $0x538] sm:$0xff]
        %v1076 = vld [vmem:[#allocation8 + $0x540] sm:$0xff]
        %v1077 = vld [vmem:[#allocation8 + $0x548] sm:$0xff]
        %v1078 = vld [vmem:[#allocation8 + $0x550] sm:$0xff]
        %v1079 = vld [vmem:[#allocation8 + $0x558] sm:$0xff]
        %v1080 = vld [vmem:[#allocation8 + $0x560] sm:$0xff]
        %v1081 = vld [vmem:[#allocation8 + $0x568] sm:$0xff]
        %v1082 = vld [vmem:[#allocation8 + $0x570] sm:$0xff]
        %v1083 = vld [vmem:[#allocation8 + $0x578] sm:$0xff]
        %v1084 = vld [vmem:[#allocation8 + $0x580] sm:$0xff]
        %v1085 = vld [vmem:[#allocation8 + $0x588] sm:$0xff]
        %v1086 = vld [vmem:[#allocation8 + $0x590] sm:$0xff]
        %v1087 = vld [vmem:[#allocation8 + $0x598] sm:$0xff]
        %v1088 = vld [vmem:[#allocation8 + $0x5a0] sm:$0xff]
        %v1089 = vld [vmem:[#allocation8 + $0x5a8] sm:$0xff]
        %v1090 = vld [vmem:[#allocation8 + $0x5b0] sm:$0xff]
        %v1091 = vld [vmem:[#allocation8 + $0x5b8] sm:$0xff]
        %v1092 = vld [vmem:[#allocation8 + $0x5c0] sm:$0xff]
        %v1093 = vld [vmem:[#allocation8 + $0x5c8] sm:$0xff]
        %v1094 = vld [vmem:[#allocation8 + $0x5d0] sm:$0xff]
        %v1095 = vld [vmem:[#allocation8 + $0x5d8] sm:$0xff]
        %v1096 = vld [vmem:[#allocation8 + $0x5e0] sm:$0xff]
        %v1097 = vld [vmem:[#allocation8 + $0x5e8] sm:$0xff]
        %v1098 = vld [vmem:[#allocation8 + $0x5f0] sm:$0xff]
        %v1099 = vld [vmem:[#allocation8 + $0x5f8] sm:$0xff]
        %v1100 = vld [vmem:[#allocation8 + $0x600] sm:$0xff]
        %v1101 = vld [vmem:[#allocation8 + $0x608] sm:$0xff]
        %v1102 = vld [vmem:[#allocation8 + $0x610] sm:$0xff]
        %v1103 = vld [vmem:[#allocation8 + $0x618] sm:$0xff]
        %v1104 = vld [vmem:[#allocation8 + $0x620] sm:$0xff]
        %v1105 = vld [vmem:[#allocation8 + $0x628] sm:$0xff]
        %v1106 = vld [vmem:[#allocation8 + $0x630] sm:$0xff]
        %v1107 = vld [vmem:[#allocation8 + $0x638] sm:$0xff]
        %v1108 = vld [vmem:[#allocation8 + $0x640] sm:$0xff]
        %v1109 = vld [vmem:[#allocation8 + $0x648] sm:$0xff]
        %v1110 = vld [vmem:[#allocation8 + $0x650] sm:$0xff]
        %v1111 = vld [vmem:[#allocation8 + $0x658] sm:$0xff]
        %v1112 = vld [vmem:[#allocation8 + $0x660] sm:$0xff]
        %v1113 = vld [vmem:[#allocation8 + $0x668] sm:$0xff]
        %v1114 = vld [vmem:[#allocation8 + $0x670] sm:$0xff]
        %v1115 = vld [vmem:[#allocation8 + $0x678] sm:$0xff]
        %v1116 = vld [vmem:[#allocation8 + $0x680] sm:$0xff]
        %v1117 = vld [vmem:[#allocation8 + $0x688] sm:$0xff]
        %v1118 = vld [vmem:[#allocation8 + $0x690] sm:$0xff]
        %v1119 = vld [vmem:[#allocation8 + $0x698] sm:$0xff]
        %v1120 = vld [vmem:[#allocation8 + $0x6a0] sm:$0xff]
        %v1121 = vld [vmem:[#allocation8 + $0x6a8] sm:$0xff]
        %v1122 = vld [vmem:[#allocation8 + $0x6b0] sm:$0xff]
        %v1123 = vld [vmem:[#allocation8 + $0x6b8] sm:$0xff]
        %v1124 = vld [vmem:[#allocation8 + $0x6c0] sm:$0xff]
        %v1125 = vld [vmem:[#allocation8 + $0x6c8] sm:$0xff]
        %v1126 = vld [vmem:[#allocation8 + $0x6d0] sm:$0xff]
        %v1127 = vld [vmem:[#allocation8 + $0x6d8] sm:$0xff]
        %v1128 = vld [vmem:[#allocation8 + $0x6e0] sm:$0xff]
        %v1129 = vld [vmem:[#allocation8 + $0x6e8] sm:$0xff]
        %v1130 = vld [vmem:[#allocation8 + $0x6f0] sm:$0xff]
        %v1131 = vld [vmem:[#allocation8 + $0x6f8] sm:$0xff]
        %v1132 = vld [vmem:[#allocation8 + $0x700] sm:$0xff]
        %v1133 = vld [vmem:[#allocation8 + $0x708] sm:$0xff]
        %v1134 = vld [vmem:[#allocation8 + $0x710] sm:$0xff]
        %v1135 = vld [vmem:[#allocation8 + $0x718] sm:$0xff]
        %v1136 = vld [vmem:[#allocation8 + $0x720] sm:$0xff]
        %v1137 = vld [vmem:[#allocation8 + $0x728] sm:$0xff]
        %v1138 = vld [vmem:[#allocation8 + $0x730] sm:$0xff]
        %v1139 = vld [vmem:[#allocation8 + $0x738] sm:$0xff]
        %v1140 = vld [vmem:[#allocation8 + $0x740] sm:$0xff]
        %v1141 = vld [vmem:[#allocation8 + $0x748] sm:$0xff]
        %v1142 = vld [vmem:[#allocation8 + $0x750] sm:$0xff]
        %v1143 = vld [vmem:[#allocation8 + $0x758] sm:$0xff]
        %v1144 = vld [vmem:[#allocation8 + $0x760] sm:$0xff]
        %v1145 = vld [vmem:[#allocation8 + $0x768] sm:$0xff]
        %v1146 = vld [vmem:[#allocation8 + $0x770] sm:$0xff]
        %v1147 = vld [vmem:[#allocation8 + $0x778] sm:$0xff]
        %v1148 = vld [vmem:[#allocation8 + $0x780] sm:$0xff]
        %v1149 = vld [vmem:[#allocation8 + $0x788] sm:$0xff]
        %v1150 = vld [vmem:[#allocation8 + $0x790] sm:$0xff]
        %v1151 = vld [vmem:[#allocation8 + $0x798] sm:$0xff]
        %v1152 = vld [vmem:[#allocation8 + $0x7a0] sm:$0xff]
        %v1153 = vld [vmem:[#allocation8 + $0x7a8] sm:$0xff]
        %v1154 = vld [vmem:[#allocation8 + $0x7b0] sm:$0xff]
        %v1155 = vld [vmem:[#allocation8 + $0x7b8] sm:$0xff]
        %v1156 = vld [vmem:[#allocation8 + $0x7c0] sm:$0xff]
        %v1157 = vld [vmem:[#allocation8 + $0x7c8] sm:$0xff]
        %v1158 = vld [vmem:[#allocation8 + $0x7d0] sm:$0xff]
        %v1159 = vld [vmem:[#allocation8 + $0x7d8] sm:$0xff]
        %v1160 = vld [vmem:[#allocation8 + $0x7e0] sm:$0xff]
        %v1161 = vld [vmem:[#allocation8 + $0x7e8] sm:$0xff]
        %v1162 = vld [vmem:[#allocation8 + $0x7f0] sm:$0xff]
        %v1163 = vld [vmem:[#allocation8 + $0x7f8] sm:$0xff]
        %v1164 = vld [vmem:[#allocation8 + $0x800] sm:$0xff]
        %v1165 = vld [vmem:[#allocation8 + $0x808] sm:$0xff]
        %v1166 = vld [vmem:[#allocation8 + $0x810] sm:$0xff]
        %v1167 = vld [vmem:[#allocation8 + $0x818] sm:$0xff]
        %v1168 = vld [vmem:[#allocation8 + $0x820] sm:$0xff]
        %v1169 = vld [vmem:[#allocation8 + $0x828] sm:$0xff]
        %v1170 = vld [vmem:[#allocation8 + $0x830] sm:$0xff]
        %v1171 = vld [vmem:[#allocation8 + $0x838] sm:$0xff]
        %v1172 = vld [vmem:[#allocation8 + $0x840] sm:$0xff]
        %v1173 = vld [vmem:[#allocation8 + $0x848] sm:$0xff]
        %v1174 = vld [vmem:[#allocation8 + $0x850] sm:$0xff]
        %v1175 = vld [vmem:[#allocation8 + $0x858] sm:$0xff]
        %v1176 = vld [vmem:[#allocation8 + $0x860] sm:$0xff]
        %v1177 = vld [vmem:[#allocation8 + $0x868] sm:$0xff]
        %v1178 = vld [vmem:[#allocation8 + $0x870] sm:$0xff]
        %v1179 = vld [vmem:[#allocation8 + $0x878] sm:$0xff]
        %v1180 = vld [vmem:[#allocation8 + $0x880] sm:$0xff]
        %v1181 = vld [vmem:[#allocation8 + $0x888] sm:$0xff]
        %v1182 = vld [vmem:[#allocation8 + $0x890] sm:$0xff]
        %v1183 = vld [vmem:[#allocation8 + $0x898] sm:$0xff]
        %v1184 = vld [vmem:[#allocation8 + $0x8a0] sm:$0xff]
        %v1185 = vld [vmem:[#allocation8 + $0x8a8] sm:$0xff]
        %v1186 = vld [vmem:[#allocation8 + $0x8b0] sm:$0xff]
        %v1187 = vld [vmem:[#allocation8 + $0x8b8] sm:$0xff]
        %v1188 = vld [vmem:[#allocation8 + $0x8c0] sm:$0xff]
        %v1189 = vld [vmem:[#allocation8 + $0x8c8] sm:$0xff]
        %v1190 = vld [vmem:[#allocation8 + $0x8d0] sm:$0xff]
        %v1191 = vld [vmem:[#allocation8 + $0x8d8] sm:$0xff]
        %v1192 = vld [vmem:[#allocation8 + $0x8e0] sm:$0xff]
        %v1193 = vld [vmem:[#allocation8 + $0x8e8] sm:$0xff]
        %v1194 = vld [vmem:[#allocation8 + $0x8f0] sm:$0xff]
        %v1195 = vld [vmem:[#allocation8 + $0x8f8] sm:$0xff]
        %v1196 = vld [vmem:[#allocation8 + $0x900] sm:$0xff]
        %v1197 = vld [vmem:[#allocation8 + $0x908] sm:$0xff]
        %v1198 = vld [vmem:[#allocation8 + $0x910] sm:$0xff]
        %v1199 = vld [vmem:[#allocation8 + $0x918] sm:$0xff]
        %v1200 = vld [vmem:[#allocation8 + $0x920] sm:$0xff]
        %v1201 = vld [vmem:[#allocation8 + $0x928] sm:$0xff]
        %v1202 = vld [vmem:[#allocation8 + $0x930] sm:$0xff]
        %v1203 = vld [vmem:[#allocation8 + $0x938] sm:$0xff]
        %v1204 = vld [vmem:[#allocation8 + $0x940] sm:$0xff]
        %v1205 = vld [vmem:[#allocation8 + $0x948] sm:$0xff]
        %v1206 = vld [vmem:[#allocation8 + $0x950] sm:$0xff]
        %v1207 = vld [vmem:[#allocation8 + $0x958] sm:$0xff]
        %v1208 = vld [vmem:[#allocation8 + $0x960] sm:$0xff]
        %v1209 = vld [vmem:[#allocation8 + $0x968] sm:$0xff]
        %v1210 = vld [vmem:[#allocation8 + $0x970] sm:$0xff]
        %v1211 = vld [vmem:[#allocation8 + $0x978] sm:$0xff]
        %v1212 = vld [vmem:[#allocation8 + $0x980] sm:$0xff]
        %v1213 = vld [vmem:[#allocation8 + $0x988] sm:$0xff]
        %v1214 = vld [vmem:[#allocation8 + $0x990] sm:$0xff]
        %v1215 = vld [vmem:[#allocation8 + $0x998] sm:$0xff]
        %v1216 = vld [vmem:[#allocation8 + $0x9a0] sm:$0xff]
        %v1217 = vld [vmem:[#allocation8 + $0x9a8] sm:$0xff]
        %v1218 = vld [vmem:[#allocation8 + $0x9b0] sm:$0xff]
        %v1219 = vld [vmem:[#allocation8 + $0x9b8] sm:$0xff]
        %v1220 = vld [vmem:[#allocation8 + $0x9c0] sm:$0xff]
        %v1221 = vld [vmem:[#allocation8 + $0x9c8] sm:$0xff]
        %v1222 = vld [vmem:[#allocation8 + $0x9d0] sm:$0xff]
        %v1223 = vld [vmem:[#allocation8 + $0x9d8] sm:$0xff]
        %v1224 = vld [vmem:[#allocation8 + $0x9e0] sm:$0xff]
        %v1225 = vld [vmem:[#allocation8 + $0x9e8] sm:$0xff]
        %v1226 = vld [vmem:[#allocation8 + $0x9f0] sm:$0xff]
        %v1227 = vld [vmem:[#allocation8 + $0x9f8] sm:$0xff]
        %v1228 = vld [vmem:[#allocation8 + $0xa00] sm:$0xff]
        %v1229 = vld [vmem:[#allocation8 + $0xa08] sm:$0xff]
        %v1230 = vld [vmem:[#allocation8 + $0xa10] sm:$0xff]
        %v1231 = vld [vmem:[#allocation8 + $0xa18] sm:$0xff]
        %v1232 = vld [vmem:[#allocation8 + $0xa20] sm:$0xff]
        %v1233 = vld [vmem:[#allocation8 + $0xa28] sm:$0xff]
        %v1234 = vld [vmem:[#allocation8 + $0xa30] sm:$0xff]
        %v1235 = vld [vmem:[#allocation8 + $0xa38] sm:$0xff]
        %v1236 = vld [vmem:[#allocation8 + $0xa40] sm:$0xff]
        %v1237 = vld [vmem:[#allocation8 + $0xa48] sm:$0xff]
        %v1238 = vld [vmem:[#allocation8 + $0xa50] sm:$0xff]
        %v1239 = vld [vmem:[#allocation8 + $0xa58] sm:$0xff]
        %v1240 = vld [vmem:[#allocation8 + $0xa60] sm:$0xff]
        %v1241 = vld [vmem:[#allocation8 + $0xa68] sm:$0xff]
        %v1242 = vld [vmem:[#allocation8 + $0xa70] sm:$0xff]
        %v1243 = vld [vmem:[#allocation8 + $0xa78] sm:$0xff]
        %v1244 = vld [vmem:[#allocation8 + $0xa80] sm:$0xff]
        %v1245 = vld [vmem:[#allocation8 + $0xa88] sm:$0xff]
        %v1246 = vld [vmem:[#allocation8 + $0xa90] sm:$0xff]
        %v1247 = vld [vmem:[#allocation8 + $0xa98] sm:$0xff]
        %v1248 = vld [vmem:[#allocation8 + $0xaa0] sm:$0xff]
        %v1249 = vld [vmem:[#allocation8 + $0xaa8] sm:$0xff]
        %v1250 = vld [vmem:[#allocation8 + $0xab0] sm:$0xff]
        %v1251 = vld [vmem:[#allocation8 + $0xab8] sm:$0xff]
        %v1252 = vld [vmem:[#allocation8 + $0xac0] sm:$0xff]
        %v1253 = vld [vmem:[#allocation8 + $0xac8] sm:$0xff]
        %v1254 = vld [vmem:[#allocation8 + $0xad0] sm:$0xff]
        %v1255 = vld [vmem:[#allocation8 + $0xad8] sm:$0xff]
        %v1256 = vld [vmem:[#allocation8 + $0xae0] sm:$0xff]
        %v1257 = vld [vmem:[#allocation8 + $0xae8] sm:$0xff]
        %v1258 = vld [vmem:[#allocation8 + $0xaf0] sm:$0xff]
        %v1259 = vld [vmem:[#allocation8 + $0xaf8] sm:$0xff]
        %v1260 = vld [vmem:[#allocation8 + $0xb00] sm:$0xff]
        %v1261 = vld [vmem:[#allocation8 + $0xb08] sm:$0xff]
        %v1262 = vld [vmem:[#allocation8 + $0xb10] sm:$0xff]
        %v1263 = vld [vmem:[#allocation8 + $0xb18] sm:$0xff]
        %v1264 = vld [vmem:[#allocation8 + $0xb20] sm:$0xff]
        %v1265 = vld [vmem:[#allocation8 + $0xb28] sm:$0xff]
        %v1266 = vld [vmem:[#allocation8 + $0xb30] sm:$0xff]
        %v1267 = vld [vmem:[#allocation8 + $0xb38] sm:$0xff]
        %v1268 = vld [vmem:[#allocation8 + $0xb40] sm:$0xff]
        %v1269 = vld [vmem:[#allocation8 + $0xb48] sm:$0xff]
        %v1270 = vld [vmem:[#allocation8 + $0xb50] sm:$0xff]
        %v1271 = vld [vmem:[#allocation8 + $0xb58] sm:$0xff]
        %v1272 = vld [vmem:[#allocation8 + $0xb60] sm:$0xff]
        %v1273 = vld [vmem:[#allocation8 + $0xb68] sm:$0xff]
        %v1274 = vld [vmem:[#allocation8 + $0xb70] sm:$0xff]
        %v1275 = vld [vmem:[#allocation8 + $0xb78] sm:$0xff]
        %v1276 = vld [vmem:[#allocation8 + $0xb80] sm:$0xff]
        %v1277 = vld [vmem:[#allocation8 + $0xb88] sm:$0xff]
        %v1278 = vld [vmem:[#allocation8 + $0xb90] sm:$0xff]
        %v1279 = vld [vmem:[#allocation8 + $0xb98] sm:$0xff]
        %v1280 = vld [vmem:[#allocation8 + $0xba0] sm:$0xff]
        %v1281 = vld [vmem:[#allocation8 + $0xba8] sm:$0xff]
        %v1282 = vld [vmem:[#allocation8 + $0xbb0] sm:$0xff]
        %v1283 = vld [vmem:[#allocation8 + $0xbb8] sm:$0xff]
        %v1284 = vld [vmem:[#allocation8 + $0xbc0] sm:$0xff]
        %v1285 = vld [vmem:[#allocation8 + $0xbc8] sm:$0xff]
        %v1286 = vld [vmem:[#allocation8 + $0xbd0] sm:$0xff]
        %v1287 = vld [vmem:[#allocation8 + $0xbd8] sm:$0xff]
        %v1288 = vld [vmem:[#allocation8 + $0xbe0] sm:$0xff]
        %v1289 = vld [vmem:[#allocation8 + $0xbe8] sm:$0xff]
        %v1290 = vld [vmem:[#allocation8 + $0xbf0] sm:$0xff]
        %v1291 = vld [vmem:[#allocation8 + $0xbf8] sm:$0xff]
        %v1292 = vld [vmem:[#allocation8 + $0xc00] sm:$0xff]
        %v1293 = vld [vmem:[#allocation8 + $0xc08] sm:$0xff]
        %v1294 = vld [vmem:[#allocation8 + $0xc10] sm:$0xff]
        %v1295 = vld [vmem:[#allocation8 + $0xc18] sm:$0xff]
        %v1296 = vld [vmem:[#allocation8 + $0xc20] sm:$0xff]
        %v1297 = vld [vmem:[#allocation8 + $0xc28] sm:$0xff]
        %v1298 = vld [vmem:[#allocation8 + $0xc30] sm:$0xff]
        %v1299 = vld [vmem:[#allocation8 + $0xc38] sm:$0xff]
        %v1300 = vld [vmem:[#allocation8 + $0xc40] sm:$0xff]
        %v1301 = vld [vmem:[#allocation8 + $0xc48] sm:$0xff]
        %v1302 = vld [vmem:[#allocation8 + $0xc50] sm:$0xff]
        %v1303 = vld [vmem:[#allocation8 + $0xc58] sm:$0xff]
        %v1304 = vld [vmem:[#allocation8 + $0xc60] sm:$0xff]
        %v1305 = vld [vmem:[#allocation8 + $0xc68] sm:$0xff]
        %v1306 = vld [vmem:[#allocation8 + $0xc70] sm:$0xff]
        %v1307 = vld [vmem:[#allocation8 + $0xc78] sm:$0xff]
        %v1308 = vld [vmem:[#allocation8 + $0xc80] sm:$0xff]
        %v1309 = vld [vmem:[#allocation8 + $0xc88] sm:$0xff]
        %v1310 = vld [vmem:[#allocation8 + $0xc90] sm:$0xff]
        %v1311 = vld [vmem:[#allocation8 + $0xc98] sm:$0xff]
        %v1312 = vld [vmem:[#allocation8 + $0xca0] sm:$0xff]
        %v1313 = vld [vmem:[#allocation8 + $0xca8] sm:$0xff]
        %v1314 = vld [vmem:[#allocation8 + $0xcb0] sm:$0xff]
        %v1315 = vld [vmem:[#allocation8 + $0xcb8] sm:$0xff]
        %v1316 = vld [vmem:[#allocation8 + $0xcc0] sm:$0xff]
        %v1317 = vld [vmem:[#allocation8 + $0xcc8] sm:$0xff]
        %v1318 = vld [vmem:[#allocation8 + $0xcd0] sm:$0xff]
        %v1319 = vld [vmem:[#allocation8 + $0xcd8] sm:$0xff]
        %v1320 = vld [vmem:[#allocation8 + $0xce0] sm:$0xff]
        %v1321 = vld [vmem:[#allocation8 + $0xce8] sm:$0xff]
        %v1322 = vld [vmem:[#allocation8 + $0xcf0] sm:$0xff]
        %v1323 = vld [vmem:[#allocation8 + $0xcf8] sm:$0xff]
        %v1324 = vld [vmem:[#allocation8 + $0xd00] sm:$0xff]
        %v1325 = vld [vmem:[#allocation8 + $0xd08] sm:$0xff]
        %v1326 = vld [vmem:[#allocation8 + $0xd10] sm:$0xff]
        %v1327 = vld [vmem:[#allocation8 + $0xd18] sm:$0xff]
        %v1328 = vld [vmem:[#allocation8 + $0xd20] sm:$0xff]
        %v1329 = vld [vmem:[#allocation8 + $0xd28] sm:$0xff]
        %v1330 = vld [vmem:[#allocation8 + $0xd30] sm:$0xff]
        %v1331 = vld [vmem:[#allocation8 + $0xd38] sm:$0xff]
        %v1332 = vld [vmem:[#allocation8 + $0xd40] sm:$0xff]
        %v1333 = vld [vmem:[#allocation8 + $0xd48] sm:$0xff]
        %v1334 = vld [vmem:[#allocation8 + $0xd50] sm:$0xff]
        %v1335 = vld [vmem:[#allocation8 + $0xd58] sm:$0xff]
        %v1336 = vld [vmem:[#allocation8 + $0xd60] sm:$0xff]
        %v1337 = vld [vmem:[#allocation8 + $0xd68] sm:$0xff]
        %v1338 = vld [vmem:[#allocation8 + $0xd70] sm:$0xff]
        %v1339 = vld [vmem:[#allocation8 + $0xd78] sm:$0xff]
        %v1340 = vld [vmem:[#allocation8 + $0xd80] sm:$0xff]
        %v1341 = vld [vmem:[#allocation8 + $0xd88] sm:$0xff]
        %v1342 = vld [vmem:[#allocation8 + $0xd90] sm:$0xff]
        %v1343 = vld [vmem:[#allocation8 + $0xd98] sm:$0xff]
        %v1344 = vld [vmem:[#allocation8 + $0xda0] sm:$0xff]
        %v1345 = vld [vmem:[#allocation8 + $0xda8] sm:$0xff]
        %v1346 = vld [vmem:[#allocation8 + $0xdb0] sm:$0xff]
        %v1347 = vld [vmem:[#allocation8 + $0xdb8] sm:$0xff]
        %v1348 = vld [vmem:[#allocation8 + $0xdc0] sm:$0xff]
        %v1349 = vld [vmem:[#allocation8 + $0xdc8] sm:$0xff]
        %v1350 = vld [vmem:[#allocation8 + $0xdd0] sm:$0xff]
        %v1351 = vld [vmem:[#allocation8 + $0xdd8] sm:$0xff]
        %v1352 = vld [vmem:[#allocation8 + $0xde0] sm:$0xff]
        %v1353 = vld [vmem:[#allocation8 + $0xde8] sm:$0xff]
        %v1354 = vld [vmem:[#allocation8 + $0xdf0] sm:$0xff]
        %v1355 = vld [vmem:[#allocation8 + $0xdf8] sm:$0xff]
        %v1356 = vld [vmem:[#allocation8 + $0xe00] sm:$0xff]
        %v1357 = vld [vmem:[#allocation8 + $0xe08] sm:$0xff]
        %v1358 = vld [vmem:[#allocation8 + $0xe10] sm:$0xff]
        %v1359 = vld [vmem:[#allocation8 + $0xe18] sm:$0xff]
        %v1360 = vld [vmem:[#allocation8 + $0xe20] sm:$0xff]
        %v1361 = vld [vmem:[#allocation8 + $0xe28] sm:$0xff]
        %v1362 = vld [vmem:[#allocation8 + $0xe30] sm:$0xff]
        %v1363 = vld [vmem:[#allocation8 + $0xe38] sm:$0xff]
        %v1364 = vld [vmem:[#allocation8 + $0xe40] sm:$0xff]
        %v1365 = vld [vmem:[#allocation8 + $0xe48] sm:$0xff]
        %v1366 = vld [vmem:[#allocation8 + $0xe50] sm:$0xff]
        %v1367 = vld [vmem:[#allocation8 + $0xe58] sm:$0xff]
        %v1368 = vld [vmem:[#allocation8 + $0xe60] sm:$0xff]
        %v1369 = vld [vmem:[#allocation8 + $0xe68] sm:$0xff]
        %v1370 = vld [vmem:[#allocation8 + $0xe70] sm:$0xff]
        %v1371 = vld [vmem:[#allocation8 + $0xe78] sm:$0xff]
        %v1372 = vld [vmem:[#allocation8 + $0xe80] sm:$0xff]
        %v1373 = vld [vmem:[#allocation8 + $0xe88] sm:$0xff]
        %v1374 = vld [vmem:[#allocation8 + $0xe90] sm:$0xff]
        %v1375 = vld [vmem:[#allocation8 + $0xe98] sm:$0xff]
        %v1376 = vld [vmem:[#allocation8 + $0xea0] sm:$0xff]
        %v1377 = vld [vmem:[#allocation8 + $0xea8] sm:$0xff]
        %v1378 = vld [vmem:[#allocation8 + $0xeb0] sm:$0xff]
        %v1379 = vld [vmem:[#allocation8 + $0xeb8] sm:$0xff]
        %v1380 = vld [vmem:[#allocation8 + $0xec0] sm:$0xff]
        %v1381 = vld [vmem:[#allocation8 + $0xec8] sm:$0xff]
        %v1382 = vld [vmem:[#allocation8 + $0xed0] sm:$0xff]
        %v1383 = vld [vmem:[#allocation8 + $0xed8] sm:$0xff]
        %v1384 = vld [vmem:[#allocation8 + $0xee0] sm:$0xff]
        %v1385 = vld [vmem:[#allocation8 + $0xee8] sm:$0xff]
        %v1386 = vld [vmem:[#allocation8 + $0xef0] sm:$0xff]
        %v1387 = vld [vmem:[#allocation8 + $0xef8] sm:$0xff]
        %v1388 = vld [vmem:[#allocation8 + $0xf00] sm:$0xff]
        %v1389 = vld [vmem:[#allocation8 + $0xf08] sm:$0xff]
        %v1390 = vld [vmem:[#allocation8 + $0xf10] sm:$0xff]
        %v1391 = vld [vmem:[#allocation8 + $0xf18] sm:$0xff]
        %v1392 = vld [vmem:[#allocation8 + $0xf20] sm:$0xff]
        %v1393 = vld [vmem:[#allocation8 + $0xf28] sm:$0xff]
        %v1394 = vld [vmem:[#allocation8 + $0xf30] sm:$0xff]
        %v1395 = vld [vmem:[#allocation8 + $0xf38] sm:$0xff]
        %v1396 = vld [vmem:[#allocation8 + $0xf40] sm:$0xff]
        %v1397 = vld [vmem:[#allocation8 + $0xf48] sm:$0xff]
        %v1398 = vld [vmem:[#allocation8 + $0xf50] sm:$0xff]
        %v1399 = vld [vmem:[#allocation8 + $0xf58] sm:$0xff]
        %v1400 = vld [vmem:[#allocation8 + $0xf60] sm:$0xff]
        %v1401 = vld [vmem:[#allocation8 + $0xf68] sm:$0xff]
        %v1402 = vld [vmem:[#allocation8 + $0xf70] sm:$0xff]
        %v1403 = vld [vmem:[#allocation8 + $0xf78] sm:$0xff]
        %v1404 = vld [vmem:[#allocation8 + $0xf80] sm:$0xff]
        %v1405 = vld [vmem:[#allocation8 + $0xf88] sm:$0xff]
        %v1406 = vld [vmem:[#allocation8 + $0xf90] sm:$0xff]
        %v1407 = vld [vmem:[#allocation8 + $0xf98] sm:$0xff]
        %v1408 = vld [vmem:[#allocation8 + $0xfa0] sm:$0xff]
        %v1409 = vld [vmem:[#allocation8 + $0xfa8] sm:$0xff]
        %v1410 = vld [vmem:[#allocation8 + $0xfb0] sm:$0xff]
        %v1411 = vld [vmem:[#allocation8 + $0xfb8] sm:$0xff]
        %v1412 = vld [vmem:[#allocation8 + $0xfc0] sm:$0xff]
        %v1413 = vld [vmem:[#allocation8 + $0xfc8] sm:$0xff]
        %v1414 = vld [vmem:[#allocation8 + $0xfd0] sm:$0xff]
        %v1415 = vld [vmem:[#allocation8 + $0xfd8] sm:$0xff]
        %v1416 = vld [vmem:[#allocation8 + $0xfe0] sm:$0xff]
        %v1417 = vld [vmem:[#allocation8 + $0xfe8] sm:$0xff]
        %v1418 = vld [vmem:[#allocation8 + $0xff0] sm:$0xff]
        %v1419 = vld [vmem:[#allocation8 + $0xff8] sm:$0xff]
        %v1420 = vld [vmem:[#allocation8 + $0x1000] sm:$0xff]
        %v1421 = vld [vmem:[#allocation8 + $0x1008] sm:$0xff]
        %v1422 = vld [vmem:[#allocation8 + $0x1010] sm:$0xff]
        %v1423 = vld [vmem:[#allocation8 + $0x1018] sm:$0xff]
        %v1424 = vld [vmem:[#allocation8 + $0x1020] sm:$0xff]
        %v1425 = vld [vmem:[#allocation8 + $0x1028] sm:$0xff]
        %v1426 = vld [vmem:[#allocation8 + $0x1030] sm:$0xff]
        %v1427 = vld [vmem:[#allocation8 + $0x1038] sm:$0xff]
        %v1428 = vld [vmem:[#allocation8 + $0x1040] sm:$0xff]
        %v1429 = vld [vmem:[#allocation8 + $0x1048] sm:$0xff]
        %v1430 = vld [vmem:[#allocation8 + $0x1050] sm:$0xff]
        %v1431 = vld [vmem:[#allocation8 + $0x1058] sm:$0xff]
        %v1432 = vld [vmem:[#allocation8 + $0x1060] sm:$0xff]
        %v1433 = vld [vmem:[#allocation8 + $0x1068] sm:$0xff]
        %v1434 = vld [vmem:[#allocation8 + $0x1070] sm:$0xff]
        %v1435 = vld [vmem:[#allocation8 + $0x1078] sm:$0xff]
        %v1436 = vld [vmem:[#allocation8 + $0x1080] sm:$0xff]
        %v1437 = vld [vmem:[#allocation8 + $0x1088] sm:$0xff]
        %v1438 = vld [vmem:[#allocation8 + $0x1090] sm:$0xff]
        %v1439 = vld [vmem:[#allocation8 + $0x1098] sm:$0xff]
        %v1440 = vld [vmem:[#allocation8 + $0x10a0] sm:$0xff]
        %v1441 = vld [vmem:[#allocation8 + $0x10a8] sm:$0xff]
        %v1442 = vld [vmem:[#allocation8 + $0x10b0] sm:$0xff]
        %v1443 = vld [vmem:[#allocation8 + $0x10b8] sm:$0xff]
        %v1444 = vld [vmem:[#allocation8 + $0x10c0] sm:$0xff]
        %v1445 = vld [vmem:[#allocation8 + $0x10c8] sm:$0xff]
        %v1446 = vld [vmem:[#allocation8 + $0x10d0] sm:$0xff]
        %v1447 = vld [vmem:[#allocation8 + $0x10d8] sm:$0xff]
        %v1448 = vld [vmem:[#allocation8 + $0x10e0] sm:$0xff]
        %v1449 = vld [vmem:[#allocation8 + $0x10e8] sm:$0xff]
        %v1450 = vld [vmem:[#allocation8 + $0x10f0] sm:$0xff]
        %v1451 = vld [vmem:[#allocation8 + $0x10f8] sm:$0xff]
        %v1452 = vld [vmem:[#allocation8 + $0x1100] sm:$0xff]
        %v1453 = vld [vmem:[#allocation8 + $0x1108] sm:$0xff]
        %v1454 = vld [vmem:[#allocation8 + $0x1110] sm:$0xff]
        %v1455 = vld [vmem:[#allocation8 + $0x1118] sm:$0xff]
        %v1456 = vld [vmem:[#allocation8 + $0x1120] sm:$0xff]
        %v1457 = vld [vmem:[#allocation8 + $0x1128] sm:$0xff]
        %v1458 = vld [vmem:[#allocation8 + $0x1130] sm:$0xff]
        %v1459 = vld [vmem:[#allocation8 + $0x1138] sm:$0xff]
        %v1460 = vld [vmem:[#allocation8 + $0x1140] sm:$0xff]
        %v1461 = vld [vmem:[#allocation8 + $0x1148] sm:$0xff]
        %v1462 = vld [vmem:[#allocation8 + $0x1150] sm:$0xff]
        %v1463 = vld [vmem:[#allocation8 + $0x1158] sm:$0xff]
        %v1464 = vld [vmem:[#allocation8 + $0x1160] sm:$0xff]
        %v1465 = vld [vmem:[#allocation8 + $0x1168] sm:$0xff]
        %v1466 = vld [vmem:[#allocation8 + $0x1170] sm:$0xff]
        %v1467 = vld [vmem:[#allocation8 + $0x1178] sm:$0xff]
        %v1468 = vld [vmem:[#allocation8 + $0x1180] sm:$0xff]
        %v1469 = vld [vmem:[#allocation8 + $0x1188] sm:$0xff]
        %v1470 = vld [vmem:[#allocation8 + $0x1190] sm:$0xff]
        %v1471 = vld [vmem:[#allocation8 + $0x1198] sm:$0xff]
        %v1472 = vld [vmem:[#allocation8 + $0x11a0] sm:$0xff]
        %v1473 = vld [vmem:[#allocation8 + $0x11a8] sm:$0xff]
        %v1474 = vld [vmem:[#allocation8 + $0x11b0] sm:$0xff]
        %v1475 = vld [vmem:[#allocation8 + $0x11b8] sm:$0xff]
        %v1476 = vld [vmem:[#allocation8 + $0x11c0] sm:$0xff]
        %v1477 = vld [vmem:[#allocation8 + $0x11c8] sm:$0xff]
        %v1478 = vld [vmem:[#allocation8 + $0x11d0] sm:$0xff]
        %v1479 = vld [vmem:[#allocation8 + $0x11d8] sm:$0xff]
        %v1480 = vld [vmem:[#allocation8 + $0x11e0] sm:$0xff]
        %v1481 = vld [vmem:[#allocation8 + $0x11e8] sm:$0xff]
        %v1482 = vld [vmem:[#allocation8 + $0x11f0] sm:$0xff]
        %v1483 = vld [vmem:[#allocation8 + $0x11f8] sm:$0xff]
        %v1484 = vld [vmem:[#allocation8 + $0x1200] sm:$0xff]
        %v1485 = vld [vmem:[#allocation8 + $0x1208] sm:$0xff]
        %v1486 = vld [vmem:[#allocation8 + $0x1210] sm:$0xff]
        %v1487 = vld [vmem:[#allocation8 + $0x1218] sm:$0xff]
        %v1488 = vld [vmem:[#allocation8 + $0x1220] sm:$0xff]
        %v1489 = vld [vmem:[#allocation8 + $0x1228] sm:$0xff]
        %v1490 = vld [vmem:[#allocation8 + $0x1230] sm:$0xff]
        %v1491 = vld [vmem:[#allocation8 + $0x1238] sm:$0xff]
        %v1492 = vld [vmem:[#allocation8 + $0x1240] sm:$0xff]
        %v1493 = vld [vmem:[#allocation8 + $0x1248] sm:$0xff]
        %v1494 = vld [vmem:[#allocation8 + $0x1250] sm:$0xff]
        %v1495 = vld [vmem:[#allocation8 + $0x1258] sm:$0xff]
        %v1496 = vld [vmem:[#allocation8 + $0x1260] sm:$0xff]
        %v1497 = vld [vmem:[#allocation8 + $0x1268] sm:$0xff]
        %v1498 = vld [vmem:[#allocation8 + $0x1270] sm:$0xff]
        %v1499 = vld [vmem:[#allocation8 + $0x1278] sm:$0xff]
        %v1500 = vld [vmem:[#allocation8 + $0x1280] sm:$0xff]
        %v1501 = vld [vmem:[#allocation8 + $0x1288] sm:$0xff]
        %v1502 = vld [vmem:[#allocation8 + $0x1290] sm:$0xff]
        %v1503 = vld [vmem:[#allocation8 + $0x1298] sm:$0xff]
        %v1504 = vld [vmem:[#allocation8 + $0x12a0] sm:$0xff]
        %v1505 = vld [vmem:[#allocation8 + $0x12a8] sm:$0xff]
        %v1506 = vld [vmem:[#allocation8 + $0x12b0] sm:$0xff]
        %v1507 = vld [vmem:[#allocation8 + $0x12b8] sm:$0xff]
        %v1508 = vld [vmem:[#allocation8 + $0x12c0] sm:$0xff]
        %v1509 = vld [vmem:[#allocation8 + $0x12c8] sm:$0xff]
        %v1510 = vld [vmem:[#allocation8 + $0x12d0] sm:$0xff]
        %v1511 = vld [vmem:[#allocation8 + $0x12d8] sm:$0xff]
        %v1512 = vld [vmem:[#allocation8 + $0x12e0] sm:$0xff]
        %v1513 = vld [vmem:[#allocation8 + $0x12e8] sm:$0xff]
        %v1514 = vld [vmem:[#allocation8 + $0x12f0] sm:$0xff]
        %v1515 = vld [vmem:[#allocation8 + $0x12f8] sm:$0xff]
        %v1516 = vld [vmem:[#allocation8 + $0x1300] sm:$0xff]
        %v1517 = vld [vmem:[#allocation8 + $0x1308] sm:$0xff]
        %v1518 = vld [vmem:[#allocation8 + $0x1310] sm:$0xff]
        %v1519 = vld [vmem:[#allocation8 + $0x1318] sm:$0xff]
        %v1520 = vld [vmem:[#allocation8 + $0x1320] sm:$0xff]
        %v1521 = vld [vmem:[#allocation8 + $0x1328] sm:$0xff]
        %v1522 = vld [vmem:[#allocation8 + $0x1330] sm:$0xff]
        %v1523 = vld [vmem:[#allocation8 + $0x1338] sm:$0xff]
        %v1524 = vld [vmem:[#allocation8 + $0x1340] sm:$0xff]
        %v1525 = vld [vmem:[#allocation8 + $0x1348] sm:$0xff]
        %v1526 = vld [vmem:[#allocation8 + $0x1350] sm:$0xff]
        %v1527 = vld [vmem:[#allocation8 + $0x1358] sm:$0xff]
        %v1528 = vld [vmem:[#allocation8 + $0x1360] sm:$0xff]
        %v1529 = vld [vmem:[#allocation8 + $0x1368] sm:$0xff]
        %v1530 = vld [vmem:[#allocation8 + $0x1370] sm:$0xff]
        %v1531 = vld [vmem:[#allocation8 + $0x1378] sm:$0xff]
        %v1532 = vld [vmem:[#allocation8 + $0x1380] sm:$0xff]
        %v1533 = vld [vmem:[#allocation8 + $0x1388] sm:$0xff]
        %v1534 = vld [vmem:[#allocation8 + $0x1390] sm:$0xff]
        %v1535 = vld [vmem:[#allocation8 + $0x1398] sm:$0xff]
        %v1536 = vld [vmem:[#allocation8 + $0x13a0] sm:$0xff]
        %v1537 = vld [vmem:[#allocation8 + $0x13a8] sm:$0xff]
        %v1538 = vld [vmem:[#allocation8 + $0x13b0] sm:$0xff]
        %v1539 = vld [vmem:[#allocation8 + $0x13b8] sm:$0xff]
        %v1540 = vld [vmem:[#allocation8 + $0x13c0] sm:$0xff]
        %v1541 = vld [vmem:[#allocation8 + $0x13c8] sm:$0xff]
        %v1542 = vld [vmem:[#allocation8 + $0x13d0] sm:$0xff]
        %v1543 = vld [vmem:[#allocation8 + $0x13d8] sm:$0xff]
        %v1544 = vld [vmem:[#allocation8 + $0x13e0] sm:$0xff]
        %v1545 = vld [vmem:[#allocation8 + $0x13e8] sm:$0xff]
        %v1546 = vld [vmem:[#allocation8 + $0x13f0] sm:$0xff]
        %v1547 = vld [vmem:[#allocation8 + $0x13f8] sm:$0xff]
        %v1548 = vld [vmem:[#allocation8 + $0x1400] sm:$0xff]
        %v1549 = vld [vmem:[#allocation8 + $0x1408] sm:$0xff]
        %v1550 = vld [vmem:[#allocation8 + $0x1410] sm:$0xff]
        %v1551 = vld [vmem:[#allocation8 + $0x1418] sm:$0xff]
        %v1552 = vld [vmem:[#allocation8 + $0x1420] sm:$0xff]
        %v1553 = vld [vmem:[#allocation8 + $0x1428] sm:$0xff]
        %v1554 = vld [vmem:[#allocation8 + $0x1430] sm:$0xff]
        %v1555 = vld [vmem:[#allocation8 + $0x1438] sm:$0xff]
        %v1556 = vld [vmem:[#allocation8 + $0x1440] sm:$0xff]
        %v1557 = vld [vmem:[#allocation8 + $0x1448] sm:$0xff]
        %v1558 = vld [vmem:[#allocation8 + $0x1450] sm:$0xff]
        %v1559 = vld [vmem:[#allocation8 + $0x1458] sm:$0xff]
        %v1560 = vld [vmem:[#allocation8 + $0x1460] sm:$0xff]
        %v1561 = vld [vmem:[#allocation8 + $0x1468] sm:$0xff]
        %v1562 = vld [vmem:[#allocation8 + $0x1470] sm:$0xff]
        %v1563 = vld [vmem:[#allocation8 + $0x1478] sm:$0xff]
        %v1564 = vld [vmem:[#allocation8 + $0x1480] sm:$0xff]
        %v1565 = vld [vmem:[#allocation8 + $0x1488] sm:$0xff]
        %v1566 = vld [vmem:[#allocation8 + $0x1490] sm:$0xff]
        %v1567 = vld [vmem:[#allocation8 + $0x1498] sm:$0xff]
        %v1568 = vld [vmem:[#allocation8 + $0x14a0] sm:$0xff]
        %v1569 = vld [vmem:[#allocation8 + $0x14a8] sm:$0xff]
        %v1570 = vld [vmem:[#allocation8 + $0x14b0] sm:$0xff]
        %v1571 = vld [vmem:[#allocation8 + $0x14b8] sm:$0xff]
        %v1572 = vld [vmem:[#allocation8 + $0x14c0] sm:$0xff]
        %v1573 = vld [vmem:[#allocation8 + $0x14c8] sm:$0xff]
        %v1574 = vld [vmem:[#allocation8 + $0x14d0] sm:$0xff]
        %v1575 = vld [vmem:[#allocation8 + $0x14d8] sm:$0xff]
        %v1576 = vld [vmem:[#allocation8 + $0x14e0] sm:$0xff]
        %v1577 = vld [vmem:[#allocation8 + $0x14e8] sm:$0xff]
        %v1578 = vld [vmem:[#allocation8 + $0x14f0] sm:$0xff]
        %v1579 = vld [vmem:[#allocation8 + $0x14f8] sm:$0xff]
        %v1580 = vld [vmem:[#allocation8 + $0x1500] sm:$0xff]
        %v1581 = vld [vmem:[#allocation8 + $0x1508] sm:$0xff]
        %v1582 = vld [vmem:[#allocation8 + $0x1510] sm:$0xff]
        %v1583 = vld [vmem:[#allocation8 + $0x1518] sm:$0xff]
        %v1584 = vld [vmem:[#allocation8 + $0x1520] sm:$0xff]
        %v1585 = vld [vmem:[#allocation8 + $0x1528] sm:$0xff]
        %v1586 = vld [vmem:[#allocation8 + $0x1530] sm:$0xff]
        %v1587 = vld [vmem:[#allocation8 + $0x1538] sm:$0xff]
        %v1588 = vld [vmem:[#allocation8 + $0x1540] sm:$0xff]
        %v1589 = vld [vmem:[#allocation8 + $0x1548] sm:$0xff]
        %v1590 = vld [vmem:[#allocation8 + $0x1550] sm:$0xff]
        %v1591 = vld [vmem:[#allocation8 + $0x1558] sm:$0xff]
        %v1592 = vld [vmem:[#allocation8 + $0x1560] sm:$0xff]
        %v1593 = vld [vmem:[#allocation8 + $0x1568] sm:$0xff]
        %v1594 = vld [vmem:[#allocation8 + $0x1570] sm:$0xff]
        %v1595 = vld [vmem:[#allocation8 + $0x1578] sm:$0xff]
        %v1596 = vld [vmem:[#allocation8 + $0x1580] sm:$0xff]
        %v1597 = vld [vmem:[#allocation8 + $0x1588] sm:$0xff]
        %v1598 = vld [vmem:[#allocation8 + $0x1590] sm:$0xff]
        %v1599 = vld [vmem:[#allocation8 + $0x1598] sm:$0xff]
        %v1600 = vld [vmem:[#allocation8 + $0x15a0] sm:$0xff]
        %v1601 = vld [vmem:[#allocation8 + $0x15a8] sm:$0xff]
        %v1602 = vld [vmem:[#allocation8 + $0x15b0] sm:$0xff]
        %v1603 = vld [vmem:[#allocation8 + $0x15b8] sm:$0xff]
        %v1604 = vld [vmem:[#allocation8 + $0x15c0] sm:$0xff]
        %v1605 = vld [vmem:[#allocation8 + $0x15c8] sm:$0xff]
        %v1606 = vld [vmem:[#allocation8 + $0x15d0] sm:$0xff]
        %v1607 = vld [vmem:[#allocation8 + $0x15d8] sm:$0xff]
        %v1608 = vld [vmem:[#allocation8 + $0x15e0] sm:$0xff]
        %v1609 = vld [vmem:[#allocation8 + $0x15e8] sm:$0xff]
        %v1610 = vld [vmem:[#allocation8 + $0x15f0] sm:$0xff]
        %v1611 = vld [vmem:[#allocation8 + $0x15f8] sm:$0xff]
        %v1612 = vld [vmem:[#allocation8 + $0x1600] sm:$0xff]
        %v1613 = vld [vmem:[#allocation8 + $0x1608] sm:$0xff]
        %v1614 = vld [vmem:[#allocation8 + $0x1610] sm:$0xff]
        %v1615 = vld [vmem:[#allocation8 + $0x1618] sm:$0xff]
        %v1616 = vld [vmem:[#allocation8 + $0x1620] sm:$0xff]
        %v1617 = vld [vmem:[#allocation8 + $0x1628] sm:$0xff]
        %v1618 = vld [vmem:[#allocation8 + $0x1630] sm:$0xff]
        %v1619 = vld [vmem:[#allocation8 + $0x1638] sm:$0xff]
        %v1620 = vld [vmem:[#allocation8 + $0x1640] sm:$0xff]
        %v1621 = vld [vmem:[#allocation8 + $0x1648] sm:$0xff]
        %v1622 = vld [vmem:[#allocation8 + $0x1650] sm:$0xff]
        %v1623 = vld [vmem:[#allocation8 + $0x1658] sm:$0xff]
        %v1624 = vld [vmem:[#allocation8 + $0x1660] sm:$0xff]
        %v1625 = vld [vmem:[#allocation8 + $0x1668] sm:$0xff]
        %v1626 = vld [vmem:[#allocation8 + $0x1670] sm:$0xff]
        %v1627 = vld [vmem:[#allocation8 + $0x1678] sm:$0xff]
        %v1628 = vld [vmem:[#allocation8 + $0x1680] sm:$0xff]
        %v1629 = vld [vmem:[#allocation8 + $0x1688] sm:$0xff]
        %v1630 = vld [vmem:[#allocation8 + $0x1690] sm:$0xff]
        %v1631 = vld [vmem:[#allocation8 + $0x1698] sm:$0xff]
        %v1632 = vld [vmem:[#allocation8 + $0x16a0] sm:$0xff]
        %v1633 = vld [vmem:[#allocation8 + $0x16a8] sm:$0xff]
        %v1634 = vld [vmem:[#allocation8 + $0x16b0] sm:$0xff]
        %v1635 = vld [vmem:[#allocation8 + $0x16b8] sm:$0xff]
        %v1636 = vld [vmem:[#allocation8 + $0x16c0] sm:$0xff]
        %v1637 = vld [vmem:[#allocation8 + $0x16c8] sm:$0xff]
        %v1638 = vld [vmem:[#allocation8 + $0x16d0] sm:$0xff]
        %v1639 = vld [vmem:[#allocation8 + $0x16d8] sm:$0xff]
        %v1640 = vld [vmem:[#allocation8 + $0x16e0] sm:$0xff]
        %v1641 = vld [vmem:[#allocation8 + $0x16e8] sm:$0xff]
        %v1642 = vld [vmem:[#allocation8 + $0x16f0] sm:$0xff]
        %v1643 = vld [vmem:[#allocation8 + $0x16f8] sm:$0xff]
        %v1644 = vld [vmem:[#allocation8 + $0x1700] sm:$0xff]
        %v1645 = vld [vmem:[#allocation8 + $0x1708] sm:$0xff]
        %v1646 = vld [vmem:[#allocation8 + $0x1710] sm:$0xff]
        %v1647 = vld [vmem:[#allocation8 + $0x1718] sm:$0xff]
        %v1648 = vld [vmem:[#allocation8 + $0x1720] sm:$0xff]
        %v1649 = vld [vmem:[#allocation8 + $0x1728] sm:$0xff]
        %v1650 = vld [vmem:[#allocation8 + $0x1730] sm:$0xff]
        %v1651 = vld [vmem:[#allocation8 + $0x1738] sm:$0xff]
        %v1652 = vld [vmem:[#allocation8 + $0x1740] sm:$0xff]
        %v1653 = vld [vmem:[#allocation8 + $0x1748] sm:$0xff]
        %v1654 = vld [vmem:[#allocation8 + $0x1750] sm:$0xff]
        %v1655 = vld [vmem:[#allocation8 + $0x1758] sm:$0xff]
        %v1656 = vld [vmem:[#allocation8 + $0x1760] sm:$0xff]
        %v1657 = vld [vmem:[#allocation8 + $0x1768] sm:$0xff]
        %v1658 = vld [vmem:[#allocation8 + $0x1770] sm:$0xff]
        %v1659 = vld [vmem:[#allocation8 + $0x1778] sm:$0xff]
        %v1660 = vld [vmem:[#allocation8 + $0x1780] sm:$0xff]
        %v1661 = vld [vmem:[#allocation8 + $0x1788] sm:$0xff]
        %v1662 = vld [vmem:[#allocation8 + $0x1790] sm:$0xff]
        %v1663 = vld [vmem:[#allocation8 + $0x1798] sm:$0xff]
        %v1664 = vld [vmem:[#allocation8 + $0x17a0] sm:$0xff]
        %v1665 = vld [vmem:[#allocation8 + $0x17a8] sm:$0xff]
        %v1666 = vld [vmem:[#allocation8 + $0x17b0] sm:$0xff]
        %v1667 = vld [vmem:[#allocation8 + $0x17b8] sm:$0xff]
        %v1668 = vld [vmem:[#allocation8 + $0x17c0] sm:$0xff]
        %v1669 = vld [vmem:[#allocation8 + $0x17c8] sm:$0xff]
        %v1670 = vld [vmem:[#allocation8 + $0x17d0] sm:$0xff]
        %v1671 = vld [vmem:[#allocation8 + $0x17d8] sm:$0xff]
        %v1672 = vld [vmem:[#allocation8 + $0x17e0] sm:$0xff]
        %v1673 = vld [vmem:[#allocation8 + $0x17e8] sm:$0xff]
        %v1674 = vld [vmem:[#allocation8 + $0x17f0] sm:$0xff]
        %v1675 = vld [vmem:[#allocation8 + $0x17f8] sm:$0xff]
        %v1676 = vld [vmem:[#allocation8 + $0x1800] sm:$0xff]
        %v1677 = vld [vmem:[#allocation8 + $0x1808] sm:$0xff]
        %v1678 = vld [vmem:[#allocation8 + $0x1810] sm:$0xff]
        %v1679 = vld [vmem:[#allocation8 + $0x1818] sm:$0xff]
        %v1680 = vld [vmem:[#allocation8 + $0x1820] sm:$0xff]
        %v1681 = vld [vmem:[#allocation8 + $0x1828] sm:$0xff]
        %v1682 = vld [vmem:[#allocation8 + $0x1830] sm:$0xff]
        %v1683 = vld [vmem:[#allocation8 + $0x1838] sm:$0xff]
        %v1684 = vld [vmem:[#allocation8 + $0x1840] sm:$0xff]
        %v1685 = vld [vmem:[#allocation8 + $0x1848] sm:$0xff]
        %v1686 = vld [vmem:[#allocation8 + $0x1850] sm:$0xff]
        %v1687 = vld [vmem:[#allocation8 + $0x1858] sm:$0xff]
        %v1688 = vld [vmem:[#allocation8 + $0x1860] sm:$0xff]
        %v1689 = vld [vmem:[#allocation8 + $0x1868] sm:$0xff]
        %v1690 = vld [vmem:[#allocation8 + $0x1870] sm:$0xff]
        %v1691 = vld [vmem:[#allocation8 + $0x1878] sm:$0xff]
        %v1692 = vld [vmem:[#allocation8 + $0x1880] sm:$0xff]
        %v1693 = vld [vmem:[#allocation8 + $0x1888] sm:$0xff]
        %v1694 = vld [vmem:[#allocation8 + $0x1890] sm:$0xff]
        %v1695 = vld [vmem:[#allocation8 + $0x1898] sm:$0xff]
        %v1696 = vld [vmem:[#allocation8 + $0x18a0] sm:$0xff]
        %v1697 = vld [vmem:[#allocation8 + $0x18a8] sm:$0xff]
        %v1698 = vld [vmem:[#allocation8 + $0x18b0] sm:$0xff]
        %v1699 = vld [vmem:[#allocation8 + $0x18b8] sm:$0xff]
        %v1700 = vld [vmem:[#allocation8 + $0x18c0] sm:$0xff]
        %v1701 = vld [vmem:[#allocation8 + $0x18c8] sm:$0xff]
        %v1702 = vld [vmem:[#allocation8 + $0x18d0] sm:$0xff]
        %v1703 = vld [vmem:[#allocation8 + $0x18d8] sm:$0xff]
        %v1704 = vld [vmem:[#allocation8 + $0x18e0] sm:$0xff]
        %v1705 = vld [vmem:[#allocation8 + $0x18e8] sm:$0xff]
        %v1706 = vld [vmem:[#allocation8 + $0x18f0] sm:$0xff]
        %v1707 = vld [vmem:[#allocation8 + $0x18f8] sm:$0xff]
        %v1708 = vld [vmem:[#allocation8 + $0x1900] sm:$0xff]
        %v1709 = vld [vmem:[#allocation8 + $0x1908] sm:$0xff]
        %v1710 = vld [vmem:[#allocation8 + $0x1910] sm:$0xff]
        %v1711 = vld [vmem:[#allocation8 + $0x1918] sm:$0xff]
        %v1712 = vld [vmem:[#allocation8 + $0x1920] sm:$0xff]
        %v1713 = vld [vmem:[#allocation8 + $0x1928] sm:$0xff]
        %v1714 = vld [vmem:[#allocation8 + $0x1930] sm:$0xff]
        %v1715 = vld [vmem:[#allocation8 + $0x1938] sm:$0xff]
        %v1716 = vld [vmem:[#allocation8 + $0x1940] sm:$0xff]
        %v1717 = vld [vmem:[#allocation8 + $0x1948] sm:$0xff]
        %v1718 = vld [vmem:[#allocation8 + $0x1950] sm:$0xff]
        %v1719 = vld [vmem:[#allocation8 + $0x1958] sm:$0xff]
        %v1720 = vld [vmem:[#allocation8 + $0x1960] sm:$0xff]
        %v1721 = vld [vmem:[#allocation8 + $0x1968] sm:$0xff]
        %v1722 = vld [vmem:[#allocation8 + $0x1970] sm:$0xff]
        %v1723 = vld [vmem:[#allocation8 + $0x1978] sm:$0xff]
        %v1724 = vld [vmem:[#allocation8 + $0x1980] sm:$0xff]
        %v1725 = vld [vmem:[#allocation8 + $0x1988] sm:$0xff]
        %v1726 = vld [vmem:[#allocation8 + $0x1990] sm:$0xff]
        %v1727 = vld [vmem:[#allocation8 + $0x1998] sm:$0xff]
        %v1728 = vld [vmem:[#allocation8 + $0x19a0] sm:$0xff]
        %v1729 = vld [vmem:[#allocation8 + $0x19a8] sm:$0xff]
        %v1730 = vld [vmem:[#allocation8 + $0x19b0] sm:$0xff]
        %v1731 = vld [vmem:[#allocation8 + $0x19b8] sm:$0xff]
        %v1732 = vld [vmem:[#allocation8 + $0x19c0] sm:$0xff]
        %v1733 = vld [vmem:[#allocation8 + $0x19c8] sm:$0xff]
        %v1734 = vld [vmem:[#allocation8 + $0x19d0] sm:$0xff]
        %v1735 = vld [vmem:[#allocation8 + $0x19d8] sm:$0xff]
        %v1736 = vld [vmem:[#allocation8 + $0x19e0] sm:$0xff]
        %v1737 = vld [vmem:[#allocation8 + $0x19e8] sm:$0xff]
        %v1738 = vld [vmem:[#allocation8 + $0x19f0] sm:$0xff]
        %v1739 = vld [vmem:[#allocation8 + $0x19f8] sm:$0xff]
        %v1740 = vld [vmem:[#allocation8 + $0x1a00] sm:$0xff]
        %v1741 = vld [vmem:[#allocation8 + $0x1a08] sm:$0xff]
        %v1742 = vld [vmem:[#allocation8 + $0x1a10] sm:$0xff]
        %v1743 = vld [vmem:[#allocation8 + $0x1a18] sm:$0xff]
        %v1744 = vld [vmem:[#allocation8 + $0x1a20] sm:$0xff]
        %v1745 = vld [vmem:[#allocation8 + $0x1a28] sm:$0xff]
        %v1746 = vld [vmem:[#allocation8 + $0x1a30] sm:$0xff]
        %v1747 = vld [vmem:[#allocation8 + $0x1a38] sm:$0xff]
        %v1748 = vld [vmem:[#allocation8 + $0x1a40] sm:$0xff]
        %v1749 = vld [vmem:[#allocation8 + $0x1a48] sm:$0xff]
        %v1750 = vld [vmem:[#allocation8 + $0x1a50] sm:$0xff]
        %v1751 = vld [vmem:[#allocation8 + $0x1a58] sm:$0xff]
        %v1752 = vld [vmem:[#allocation8 + $0x1a60] sm:$0xff]
        %v1753 = vld [vmem:[#allocation8 + $0x1a68] sm:$0xff]
        %v1754 = vld [vmem:[#allocation8 + $0x1a70] sm:$0xff]
        %v1755 = vld [vmem:[#allocation8 + $0x1a78] sm:$0xff]
        %v1756 = vld [vmem:[#allocation8 + $0x1a80] sm:$0xff]
        %v1757 = vld [vmem:[#allocation8 + $0x1a88] sm:$0xff]
        %v1758 = vld [vmem:[#allocation8 + $0x1a90] sm:$0xff]
        %v1759 = vld [vmem:[#allocation8 + $0x1a98] sm:$0xff]
        %v1760 = vld [vmem:[#allocation8 + $0x1aa0] sm:$0xff]
        %v1761 = vld [vmem:[#allocation8 + $0x1aa8] sm:$0xff]
        %v1762 = vld [vmem:[#allocation8 + $0x1ab0] sm:$0xff]
        %v1763 = vld [vmem:[#allocation8 + $0x1ab8] sm:$0xff]
        %v1764 = vld [vmem:[#allocation8 + $0x1ac0] sm:$0xff]
        %v1765 = vld [vmem:[#allocation8 + $0x1ac8] sm:$0xff]
        %v1766 = vld [vmem:[#allocation8 + $0x1ad0] sm:$0xff]
        %v1767 = vld [vmem:[#allocation8 + $0x1ad8] sm:$0xff]
        %v1768 = vld [vmem:[#allocation8 + $0x1ae0] sm:$0xff]
        %v1769 = vld [vmem:[#allocation8 + $0x1ae8] sm:$0xff]
        %v1770 = vld [vmem:[#allocation8 + $0x1af0] sm:$0xff]
        %v1771 = vld [vmem:[#allocation8 + $0x1af8] sm:$0xff]
        %v1772 = vld [vmem:[#allocation8 + $0x1b00] sm:$0xff]
        %v1773 = vld [vmem:[#allocation8 + $0x1b08] sm:$0xff]
        %v1774 = vld [vmem:[#allocation8 + $0x1b10] sm:$0xff]
        %v1775 = vld [vmem:[#allocation8 + $0x1b18] sm:$0xff]
        %v1776 = vld [vmem:[#allocation8 + $0x1b20] sm:$0xff]
        %v1777 = vld [vmem:[#allocation8 + $0x1b28] sm:$0xff]
        %v1778 = vld [vmem:[#allocation8 + $0x1b30] sm:$0xff]
        %v1779 = vld [vmem:[#allocation8 + $0x1b38] sm:$0xff]
        %v1780 = vld [vmem:[#allocation8 + $0x1b40] sm:$0xff]
        %v1781 = vld [vmem:[#allocation8 + $0x1b48] sm:$0xff]
        %v1782 = vld [vmem:[#allocation8 + $0x1b50] sm:$0xff]
        %v1783 = vld [vmem:[#allocation8 + $0x1b58] sm:$0xff]
        %v1784 = vld [vmem:[#allocation8 + $0x1b60] sm:$0xff]
        %v1785 = vld [vmem:[#allocation8 + $0x1b68] sm:$0xff]
        %v1786 = vld [vmem:[#allocation8 + $0x1b70] sm:$0xff]
        %v1787 = vld [vmem:[#allocation8 + $0x1b78] sm:$0xff]
        %v1788 = vld [vmem:[#allocation8 + $0x1b80] sm:$0xff]
        %v1789 = vld [vmem:[#allocation8 + $0x1b88] sm:$0xff]
        %v1790 = vld [vmem:[#allocation8 + $0x1b90] sm:$0xff]
        %v1791 = vld [vmem:[#allocation8 + $0x1b98] sm:$0xff]
        %v1792 = vld [vmem:[#allocation8 + $0x1ba0] sm:$0xff]
        %v1793 = vld [vmem:[#allocation8 + $0x1ba8] sm:$0xff]
        %v1794 = vld [vmem:[#allocation8 + $0x1bb0] sm:$0xff]
        %v1795 = vld [vmem:[#allocation8 + $0x1bb8] sm:$0xff]
        %v1796 = vld [vmem:[#allocation8 + $0x1bc0] sm:$0xff]
        %v1797 = vld [vmem:[#allocation8 + $0x1bc8] sm:$0xff]
        %v1798 = vld [vmem:[#allocation8 + $0x1bd0] sm:$0xff]
        %v1799 = vld [vmem:[#allocation8 + $0x1bd8] sm:$0xff]
        %v1800 = vld [vmem:[#allocation8 + $0x1be0] sm:$0xff]
        %v1801 = vld [vmem:[#allocation8 + $0x1be8] sm:$0xff]
        %v1802 = vld [vmem:[#allocation8 + $0x1bf0] sm:$0xff]
        %v1803 = vld [vmem:[#allocation8 + $0x1bf8] sm:$0xff]
        %v1804 = vld [vmem:[#allocation8 + $0x1c00] sm:$0xff]
        %v1805 = vld [vmem:[#allocation8 + $0x1c08] sm:$0xff]
        %v1806 = vld [vmem:[#allocation8 + $0x1c10] sm:$0xff]
        %v1807 = vld [vmem:[#allocation8 + $0x1c18] sm:$0xff]
        %v1808 = vld [vmem:[#allocation8 + $0x1c20] sm:$0xff]
        %v1809 = vld [vmem:[#allocation8 + $0x1c28] sm:$0xff]
        %v1810 = vld [vmem:[#allocation8 + $0x1c30] sm:$0xff]
        %v1811 = vld [vmem:[#allocation8 + $0x1c38] sm:$0xff]
        %v1812 = vld [vmem:[#allocation8 + $0x1c40] sm:$0xff]
        %v1813 = vld [vmem:[#allocation8 + $0x1c48] sm:$0xff]
        %v1814 = vld [vmem:[#allocation8 + $0x1c50] sm:$0xff]
        %v1815 = vld [vmem:[#allocation8 + $0x1c58] sm:$0xff]
        %v1816 = vld [vmem:[#allocation8 + $0x1c60] sm:$0xff]
        %v1817 = vld [vmem:[#allocation8 + $0x1c68] sm:$0xff]
        %v1818 = vld [vmem:[#allocation8 + $0x1c70] sm:$0xff]
        %v1819 = vld [vmem:[#allocation8 + $0x1c78] sm:$0xff]
        %v1820 = vld [vmem:[#allocation8 + $0x1c80] sm:$0xff]
        %v1821 = vld [vmem:[#allocation8 + $0x1c88] sm:$0xff]
        %v1822 = vld [vmem:[#allocation8 + $0x1c90] sm:$0xff]
        %v1823 = vld [vmem:[#allocation8 + $0x1c98] sm:$0xff]
        %v1824 = vld [vmem:[#allocation8 + $0x1ca0] sm:$0xff]
        %v1825 = vld [vmem:[#allocation8 + $0x1ca8] sm:$0xff]
        %v1826 = vld [vmem:[#allocation8 + $0x1cb0] sm:$0xff]
        %v1827 = vld [vmem:[#allocation8 + $0x1cb8] sm:$0xff]
        %v1828 = vld [vmem:[#allocation8 + $0x1cc0] sm:$0xff]
        %v1829 = vld [vmem:[#allocation8 + $0x1cc8] sm:$0xff]
        %v1830 = vld [vmem:[#allocation8 + $0x1cd0] sm:$0xff]
        %v1831 = vld [vmem:[#allocation8 + $0x1cd8] sm:$0xff]
        %v1832 = vld [vmem:[#allocation8 + $0x1ce0] sm:$0xff]
        %v1833 = vld [vmem:[#allocation8 + $0x1ce8] sm:$0xff]
        %v1834 = vld [vmem:[#allocation8 + $0x1cf0] sm:$0xff]
        %v1835 = vld [vmem:[#allocation8 + $0x1cf8] sm:$0xff]
        %v1836 = vld [vmem:[#allocation8 + $0x1d00] sm:$0xff]
        %v1837 = vld [vmem:[#allocation8 + $0x1d08] sm:$0xff]
        %v1838 = vld [vmem:[#allocation8 + $0x1d10] sm:$0xff]
        %v1839 = vld [vmem:[#allocation8 + $0x1d18] sm:$0xff]
        %v1840 = vld [vmem:[#allocation8 + $0x1d20] sm:$0xff]
        %v1841 = vld [vmem:[#allocation8 + $0x1d28] sm:$0xff]
        %v1842 = vld [vmem:[#allocation8 + $0x1d30] sm:$0xff]
        %v1843 = vld [vmem:[#allocation8 + $0x1d38] sm:$0xff]
        %v1844 = vld [vmem:[#allocation8 + $0x1d40] sm:$0xff]
        %v1845 = vld [vmem:[#allocation8 + $0x1d48] sm:$0xff]
        %v1846 = vld [vmem:[#allocation8 + $0x1d50] sm:$0xff]
        %v1847 = vld [vmem:[#allocation8 + $0x1d58] sm:$0xff]
        %v1848 = vld [vmem:[#allocation8 + $0x1d60] sm:$0xff]
        %v1849 = vld [vmem:[#allocation8 + $0x1d68] sm:$0xff]
        %v1850 = vld [vmem:[#allocation8 + $0x1d70] sm:$0xff]
        %v1851 = vld [vmem:[#allocation8 + $0x1d78] sm:$0xff]
        %v1852 = vld [vmem:[#allocation8 + $0x1d80] sm:$0xff]
        %v1853 = vld [vmem:[#allocation8 + $0x1d88] sm:$0xff]
        %v1854 = vld [vmem:[#allocation8 + $0x1d90] sm:$0xff]
        %v1855 = vld [vmem:[#allocation8 + $0x1d98] sm:$0xff]
        %v1856 = vld [vmem:[#allocation8 + $0x1da0] sm:$0xff]
        %v1857 = vld [vmem:[#allocation8 + $0x1da8] sm:$0xff]
        %v1858 = vld [vmem:[#allocation8 + $0x1db0] sm:$0xff]
        %v1859 = vld [vmem:[#allocation8 + $0x1db8] sm:$0xff]
        %v1860 = vld [vmem:[#allocation8 + $0x1dc0] sm:$0xff]
        %v1861 = vld [vmem:[#allocation8 + $0x1dc8] sm:$0xff]
        %v1862 = vld [vmem:[#allocation8 + $0x1dd0] sm:$0xff]
        %v1863 = vld [vmem:[#allocation8 + $0x1dd8] sm:$0xff]
        %v1864 = vld [vmem:[#allocation8 + $0x1de0] sm:$0xff]
        %v1865 = vld [vmem:[#allocation8 + $0x1de8] sm:$0xff]
        %v1866 = vld [vmem:[#allocation8 + $0x1df0] sm:$0xff]
        %v1867 = vld [vmem:[#allocation8 + $0x1df8] sm:$0xff]
        %v1868 = vld [vmem:[#allocation8 + $0x1e00] sm:$0xff]
        %v1869 = vld [vmem:[#allocation8 + $0x1e08] sm:$0xff]
        %v1870 = vld [vmem:[#allocation8 + $0x1e10] sm:$0xff]
        %v1871 = vld [vmem:[#allocation8 + $0x1e18] sm:$0xff]
        %v1872 = vld [vmem:[#allocation8 + $0x1e20] sm:$0xff]
        %v1873 = vld [vmem:[#allocation8 + $0x1e28] sm:$0xff]
        %v1874 = vld [vmem:[#allocation8 + $0x1e30] sm:$0xff]
        %v1875 = vld [vmem:[#allocation8 + $0x1e38] sm:$0xff]
        %v1876 = vld [vmem:[#allocation8 + $0x1e40] sm:$0xff]
        %v1877 = vld [vmem:[#allocation8 + $0x1e48] sm:$0xff]
        %v1878 = vld [vmem:[#allocation8 + $0x1e50] sm:$0xff]
        %v1879 = vld [vmem:[#allocation8 + $0x1e58] sm:$0xff]
        %v1880 = vld [vmem:[#allocation8 + $0x1e60] sm:$0xff]
        %v1881 = vld [vmem:[#allocation8 + $0x1e68] sm:$0xff]
        %v1882 = vld [vmem:[#allocation8 + $0x1e70] sm:$0xff]
        %v1883 = vld [vmem:[#allocation8 + $0x1e78] sm:$0xff]
        %v1884 = vld [vmem:[#allocation8 + $0x1e80] sm:$0xff]
        %v1885 = vld [vmem:[#allocation8 + $0x1e88] sm:$0xff]
        %v1886 = vld [vmem:[#allocation8 + $0x1e90] sm:$0xff]
        %v1887 = vld [vmem:[#allocation8 + $0x1e98] sm:$0xff]
        %v1888 = vld [vmem:[#allocation8 + $0x1ea0] sm:$0xff]
        %v1889 = vld [vmem:[#allocation8 + $0x1ea8] sm:$0xff]
        %v1890 = vld [vmem:[#allocation8 + $0x1eb0] sm:$0xff]
        %v1891 = vld [vmem:[#allocation8 + $0x1eb8] sm:$0xff]
        %v1892 = vld [vmem:[#allocation8 + $0x1ec0] sm:$0xff]
        %v1893 = vld [vmem:[#allocation8 + $0x1ec8] sm:$0xff]
        %v1894 = vld [vmem:[#allocation8 + $0x1ed0] sm:$0xff]
        %v1895 = vld [vmem:[#allocation8 + $0x1ed8] sm:$0xff]
        %v1896 = vld [vmem:[#allocation8 + $0x1ee0] sm:$0xff]
        %v1897 = vld [vmem:[#allocation8 + $0x1ee8] sm:$0xff]
        %v1898 = vld [vmem:[#allocation8 + $0x1ef0] sm:$0xff]
        %v1899 = vld [vmem:[#allocation8 + $0x1ef8] sm:$0xff]
        %v1900 = vld [vmem:[#allocation8 + $0x1f00] sm:$0xff]
        %v1901 = vld [vmem:[#allocation8 + $0x1f08] sm:$0xff]
        %v1902 = vld [vmem:[#allocation8 + $0x1f10] sm:$0xff]
        %v1903 = vld [vmem:[#allocation8 + $0x1f18] sm:$0xff]
        %v1904 = vld [vmem:[#allocation8 + $0x1f20] sm:$0xff]
        %v1905 = vld [vmem:[#allocation8 + $0x1f28] sm:$0xff]
        %v1906 = vld [vmem:[#allocation8 + $0x1f30] sm:$0xff]
        %v1907 = vld [vmem:[#allocation8 + $0x1f38] sm:$0xff]
        %v1908 = vld [vmem:[#allocation8 + $0x1f40] sm:$0xff]
        %v1909 = vld [vmem:[#allocation8 + $0x1f48] sm:$0xff]
        %v1910 = vld [vmem:[#allocation8 + $0x1f50] sm:$0xff]
        %v1911 = vld [vmem:[#allocation8 + $0x1f58] sm:$0xff]
        %v1912 = vld [vmem:[#allocation8 + $0x1f60] sm:$0xff]
        %v1913 = vld [vmem:[#allocation8 + $0x1f68] sm:$0xff]
        %v1914 = vld [vmem:[#allocation8 + $0x1f70] sm:$0xff]
        %v1915 = vld [vmem:[#allocation8 + $0x1f78] sm:$0xff]
        %vm1916 = vcmask 523264
        %v1918 = vsel %vm1916, %v899, 0
        %v1921 = vsel %vm1916, %v907, 0
        %1923 = vmatprep.subr.mxu0 %v909
        %1924 = vmatpush1.msra.mxu0 %v908
        %1925 = vmatprep.subr.mxu0 %v927
        %1926 = vmatpush1.msra.mxu0 %v926
        %1927 = vmatprep.subr.mxu0 %v945
        %1928 = vmatpush1.msra.mxu0 %v944
        %1929 = vmatprep.subr.mxu0 %v963
        %1930 = vmatpush1.msra.mxu0 %v962
        %1931 = vmatprep.subr.mxu0 %v981
        %1932 = vmatpush1.msra.mxu0 %v980
        %1933 = vmatprep.subr.mxu0 %v999
        %1934 = vmatpush1.msra.mxu0 %v998
        %1935 = vmatprep.subr.mxu0 %v1017
        %1936 = vmatpush1.msra.mxu0 %v1016
        %1937 = vmatprep.subr.mxu0 %v1035
        %1938 = vmatpush1.msra.mxu0 %v1034
        %1939 = vmatprep.subr.mxu0 %v1053
        %1940 = vmatpush1.msra.mxu0 %v1052
        %1941 = vmatprep.subr.mxu0 %v1071
        %1942 = vmatpush1.msra.mxu0 %v1070
        %1943 = vmatprep.subr.mxu0 %v1089
        %1944 = vmatpush1.msra.mxu0 %v1088
        %1945 = vmatprep.subr.mxu0 %v1107
        %1946 = vmatpush1.msra.mxu0 %v1106
        %1947 = vmatprep.subr.mxu0 %v1125
        %1948 = vmatpush1.msra.mxu0 %v1124
        %1949 = vmatprep.subr.mxu0 %v1143
        %1950 = vmatpush1.msra.mxu0 %v1142
        %1951 = vmatprep.subr.mxu0 %v1161
        %1952 = vmatpush1.msra.mxu0 %v1160
        %1953 = vmatprep.subr.mxu0 %v1179
        %1954 = vmatpush1.msra.mxu0 %v1178
        %1955 = vmatprep.subr.mxu0 %v1197
        %1956 = vmatpush1.msra.mxu0 %v1196
        %1957 = vmatprep.subr.mxu0 %v1215
        %1958 = vmatpush1.msra.mxu0 %v1214
        %1959 = vmatprep.subr.mxu0 %v1233
        %1960 = vmatpush1.msra.mxu0 %v1232
        %1961 = vmatprep.subr.mxu0 %v1251
        %1962 = vmatpush1.msra.mxu0 %v1250
        %1963 = vmatprep.subr.mxu0 %v1269
        %1964 = vmatpush1.msra.mxu0 %v1268
        %1965 = vmatprep.subr.mxu0 %v1287
        %1966 = vmatpush1.msra.mxu0 %v1286
        %1967 = vmatprep.subr.mxu0 %v1305
        %1968 = vmatpush1.msra.mxu0 %v1304
        %1969 = vmatprep.subr.mxu0 %v1323
        %1970 = vmatpush1.msra.mxu0 %v1322
        %1971 = vmatprep.subr.mxu0 %v1341
        %1972 = vmatpush1.msra.mxu0 %v1340
        %1973 = vmatprep.subr.mxu0 %v1359
        %1974 = vmatpush1.msra.mxu0 %v1358
        %1975 = vmatprep.subr.mxu0 %v1377
        %1976 = vmatpush1.msra.mxu0 %v1376
        %1977 = vmatprep.subr.mxu0 %v1395
        %1978 = vmatpush1.msra.mxu0 %v1394
        %1979 = vmatprep.subr.mxu0 %v1413
        %1980 = vmatpush1.msra.mxu0 %v1412
        %1981 = vmatprep.subr.mxu0 %v1431
        %1982 = vmatpush1.msra.mxu0 %v1430
        %1983 = vmatprep.subr.mxu0 %v1449
        %1984 = vmatpush1.msra.mxu0 %v1448
        %1985 = vmatprep.subr.mxu0 %v1467
        %1986 = vmatpush1.msra.mxu0 %v1466
        %1987 = vmatprep.mubr.f32.mxu0 %v897
        %1988 = vmatmul.mubr.f32.gmra.mrb[0].mxu0 %v896
        %v1989 = vpop.f32.mrb[0].mxu0
        %v1990 = vadd.f32 0.0, %v1989
        %v1991 = vpop.f32.mrb[0].mxu0
        %v1992 = vadd.f32 0.0, %v1991
        %1993 = vmatprep.mubr.f32.mxu0 %v905
        %1994 = vmatmul.mubr.f32.gmra.mrb[0].mxu0 %v904
        %v1995 = vpop.f32.mrb[0].mxu0
        %v1996 = vadd.f32 0.0, %v1995
        %v1997 = vpop.f32.mrb[0].mxu0
        %v1998 = vadd.f32 0.0, %v1997
        %1999 = vdwg.mxu0
        %2000 = vmatprep.subr.mxu0 %v1485
        %2001 = vmatpush1.msra.mxu0 %v1484
        %2002 = vmatprep.subr.mxu0 %v1503
        %2003 = vmatpush1.msra.mxu0 %v1502
        %2004 = vmatprep.subr.mxu0 %v1521
        %2005 = vmatpush1.msra.mxu0 %v1520
        %2006 = vmatprep.subr.mxu0 %v1539
        %2007 = vmatpush1.msra.mxu0 %v1538
        %2008 = vmatprep.subr.mxu0 %v1557
        %2009 = vmatpush1.msra.mxu0 %v1556
        %2010 = vmatprep.subr.mxu0 %v1575
        %2011 = vmatpush1.msra.mxu0 %v1574
        %2012 = vmatprep.subr.mxu0 %v1593
        %2013 = vmatpush1.msra.mxu0 %v1592
        %2014 = vmatprep.subr.mxu0 %v1611
        %2015 = vmatpush1.msra.mxu0 %v1610
        %2016 = vmatprep.subr.mxu0 %v1629
        %2017 = vmatpush1.msra.mxu0 %v1628
        %2018 = vmatprep.subr.mxu0 %v1647
        %2019 = vmatpush1.msra.mxu0 %v1646
        %2020 = vmatprep.subr.mxu0 %v1665
        %2021 = vmatpush1.msra.mxu0 %v1664
        %2022 = vmatprep.subr.mxu0 %v1683
        %2023 = vmatpush1.msra.mxu0 %v1682
        %2024 = vmatprep.subr.mxu0 %v1701
        %2025 = vmatpush1.msra.mxu0 %v1700
        %2026 = vmatprep.subr.mxu0 %v1719
        %2027 = vmatpush1.msra.mxu0 %v1718
        %2028 = vmatprep.subr.mxu0 %v1737
        %2029 = vmatpush1.msra.mxu0 %v1736
        %2030 = vmatprep.subr.mxu0 %v1755
        %2031 = vmatpush1.msra.mxu0 %v1754
        %2032 = vmatprep.subr.mxu0 %v1773
        %2033 = vmatpush1.msra.mxu0 %v1772
        %2034 = vmatprep.subr.mxu0 %v1791
        %2035 = vmatpush1.msra.mxu0 %v1790
        %2036 = vmatprep.subr.mxu0 %v1809
        %2037 = vmatpush1.msra.mxu0 %v1808
        %2038 = vmatprep.subr.mxu0 %v1827
        %2039 = vmatpush1.msra.mxu0 %v1826
        %2040 = vmatprep.subr.mxu0 %v1845
        %2041 = vmatpush1.msra.mxu0 %v1844
        %2042 = vmatprep.subr.mxu0 %v1863
        %2043 = vmatpush1.msra.mxu0 %v1862
        %2044 = vmatprep.subr.mxu0 %v1881
        %2045 = vmatpush1.msra.mxu0 %v1880
        %2046 = vmatprep.subr.mxu0 %v1899
        %2047 = vmatpush1.msra.mxu0 %v1898
        %2048 = vmatprep.subr.mxu0 0.0
        %2049 = vmatpush1.msra.mxu0 0.0
        %2050 = vmatprep.subr.mxu0 0.0
        %2051 = vmatpush1.msra.mxu0 0.0
        %2052 = vmatprep.subr.mxu0 0.0
        %2053 = vmatpush1.msra.mxu0 0.0
        %2054 = vmatprep.subr.mxu0 0.0
        %2055 = vmatpush1.msra.mxu0 0.0
        %2056 = vmatprep.subr.mxu0 0.0
        %2057 = vmatpush1.msra.mxu0 0.0
        %2058 = vmatprep.subr.mxu0 0.0
        %2059 = vmatpush1.msra.mxu0 0.0
        %2060 = vmatprep.subr.mxu0 0.0
        %2061 = vmatpush1.msra.mxu0 0.0
        %2062 = vmatprep.subr.mxu0 0.0
        %2063 = vmatpush1.msra.mxu0 0.0
        %2064 = vmatprep.mubr.f32.mxu0 %v1918
        %2065 = vmatmul.mubr.f32.gmra.mrb[0].mxu0 %v898
        %v2066 = vpop.f32.mrb[0].mxu0
        %v2067 = vadd.f32 %v1990, %v2066
        %v2068 = vpop.f32.mrb[0].mxu0
        %v2069 = vadd.f32 %v1992, %v2068
        %2070 = vmatprep.mubr.f32.mxu0 %v1921
        %2071 = vmatmul.mubr.f32.gmra.mrb[0].mxu0 %v906
        %v2072 = vpop.f32.mrb[0].mxu0
        %v2073 = vadd.f32 %v1996, %v2072
        %v2074 = vpop.f32.mrb[0].mxu0
        %v2075 = vadd.f32 %v1998, %v2074
        %2076 = vdwg.mxu0
        %2077 = vmatprep.subr.mxu0 %v911
        %2078 = vmatpush1.msra.mxu0 %v910
        %2079 = vmatprep.subr.mxu0 %v929
        %2080 = vmatpush1.msra.mxu0 %v928
        %2081 = vmatprep.subr.mxu0 %v947
        %2082 = vmatpush1.msra.mxu0 %v946
        %2083 = vmatprep.subr.mxu0 %v965
        %2084 = vmatpush1.msra.mxu0 %v964
        %2085 = vmatprep.subr.mxu0 %v983
        %2086 = vmatpush1.msra.mxu0 %v982
        %2087 = vmatprep.subr.mxu0 %v1001
        %2088 = vmatpush1.msra.mxu0 %v1000
        %2089 = vmatprep.subr.mxu0 %v1019
        %2090 = vmatpush1.msra.mxu0 %v1018
        %2091 = vmatprep.subr.mxu0 %v1037
        %2092 = vmatpush1.msra.mxu0 %v1036
        %2093 = vmatprep.subr.mxu0 %v1055
        %2094 = vmatpush1.msra.mxu0 %v1054
        %2095 = vmatprep.subr.mxu0 %v1073
        %2096 = vmatpush1.msra.mxu0 %v1072
        %2097 = vmatprep.subr.mxu0 %v1091
        %2098 = vmatpush1.msra.mxu0 %v1090
        %2099 = vmatprep.subr.mxu0 %v1109
        %2100 = vmatpush1.msra.mxu0 %v1108
        %2101 = vmatprep.subr.mxu0 %v1127
        %2102 = vmatpush1.msra.mxu0 %v1126
        %2103 = vmatprep.subr.mxu0 %v1145
        %2104 = vmatpush1.msra.mxu0 %v1144
        %2105 = vmatprep.subr.mxu0 %v1163
        %2106 = vmatpush1.msra.mxu0 %v1162
        %2107 = vmatprep.subr.mxu0 %v1181
        %2108 = vmatpush1.msra.mxu0 %v1180
        %2109 = vmatprep.subr.mxu0 %v1199
        %2110 = vmatpush1.msra.mxu0 %v1198
        %2111 = vmatprep.subr.mxu0 %v1217
        %2112 = vmatpush1.msra.mxu0 %v1216
        %2113 = vmatprep.subr.mxu0 %v1235
        %2114 = vmatpush1.msra.mxu0 %v1234
        %2115 = vmatprep.subr.mxu0 %v1253
        %2116 = vmatpush1.msra.mxu0 %v1252
        %2117 = vmatprep.subr.mxu0 %v1271
        %2118 = vmatpush1.msra.mxu0 %v1270
        %2119 = vmatprep.subr.mxu0 %v1289
        %2120 = vmatpush1.msra.mxu0 %v1288
        %2121 = vmatprep.subr.mxu0 %v1307
        %2122 = vmatpush1.msra.mxu0 %v1306
        %2123 = vmatprep.subr.mxu0 %v1325
        %2124 = vmatpush1.msra.mxu0 %v1324
        %2125 = vmatprep.subr.mxu0 %v1343
        %2126 = vmatpush1.msra.mxu0 %v1342
        %2127 = vmatprep.subr.mxu0 %v1361
        %2128 = vmatpush1.msra.mxu0 %v1360
        %2129 = vmatprep.subr.mxu0 %v1379
        %2130 = vmatpush1.msra.mxu0 %v1378
        %2131 = vmatprep.subr.mxu0 %v1397
        %2132 = vmatpush1.msra.mxu0 %v1396
        %2133 = vmatprep.subr.mxu0 %v1415
        %2134 = vmatpush1.msra.mxu0 %v1414
        %2135 = vmatprep.subr.mxu0 %v1433
        %2136 = vmatpush1.msra.mxu0 %v1432
        %2137 = vmatprep.subr.mxu0 %v1451
        %2138 = vmatpush1.msra.mxu0 %v1450
        %2139 = vmatprep.subr.mxu0 %v1469
        %2140 = vmatpush1.msra.mxu0 %v1468
        %2141 = vmatprep.mubr.f32.mxu0 %v897
        %2142 = vmatmul.mubr.f32.gmra.mrb[0].mxu0 %v896
        %v2143 = vpop.f32.mrb[0].mxu0
        %v2144 = vadd.f32 0.0, %v2143
        %v2145 = vpop.f32.mrb[0].mxu0
        %v2146 = vadd.f32 0.0, %v2145
        %2147 = vmatprep.mubr.f32.mxu0 %v905
        %2148 = vmatmul.mubr.f32.gmra.mrb[0].mxu0 %v904
        %v2149 = vpop.f32.mrb[0].mxu0
        %v2150 = vadd.f32 0.0, %v2149
        %v2151 = vpop.f32.mrb[0].mxu0
        %v2152 = vadd.f32 0.0, %v2151
        %2153 = vdwg.mxu0
        %2154 = vmatprep.subr.mxu0 %v1487
        %2155 = vmatpush1.msra.mxu0 %v1486
        %2156 = vmatprep.subr.mxu0 %v1505
        %2157 = vmatpush1.msra.mxu0 %v1504
        %2158 = vmatprep.subr.mxu0 %v1523
        %2159 = vmatpush1.msra.mxu0 %v1522
        %2160 = vmatprep.subr.mxu0 %v1541
        %2161 = vmatpush1.msra.mxu0 %v1540
        %2162 = vmatprep.subr.mxu0 %v1559
        %2163 = vmatpush1.msra.mxu0 %v1558
        %2164 = vmatprep.subr.mxu0 %v1577
        %2165 = vmatpush1.msra.mxu0 %v1576
        %2166 = vmatprep.subr.mxu0 %v1595
        %2167 = vmatpush1.msra.mxu0 %v1594
        %2168 = vmatprep.subr.mxu0 %v1613
        %2169 = vmatpush1.msra.mxu0 %v1612
        %2170 = vmatprep.subr.mxu0 %v1631
        %2171 = vmatpush1.msra.mxu0 %v1630
        %2172 = vmatprep.subr.mxu0 %v1649
        %2173 = vmatpush1.msra.mxu0 %v1648
        %2174 = vmatprep.subr.mxu0 %v1667
        %2175 = vmatpush1.msra.mxu0 %v1666
        %2176 = vmatprep.subr.mxu0 %v1685
        %2177 = vmatpush1.msra.mxu0 %v1684
        %2178 = vmatprep.subr.mxu0 %v1703
        %2179 = vmatpush1.msra.mxu0 %v1702
        %2180 = vmatprep.subr.mxu0 %v1721
        %2181 = vmatpush1.msra.mxu0 %v1720
        %2182 = vmatprep.subr.mxu0 %v1739
        %2183 = vmatpush1.msra.mxu0 %v1738
        %2184 = vmatprep.subr.mxu0 %v1757
        %2185 = vmatpush1.msra.mxu0 %v1756
        %2186 = vmatprep.subr.mxu0 %v1775
        %2187 = vmatpush1.msra.mxu0 %v1774
        %2188 = vmatprep.subr.mxu0 %v1793
        %2189 = vmatpush1.msra.mxu0 %v1792
        %2190 = vmatprep.subr.mxu0 %v1811
        %2191 = vmatpush1.msra.mxu0 %v1810
        %2192 = vmatprep.subr.mxu0 %v1829
        %2193 = vmatpush1.msra.mxu0 %v1828
        %2194 = vmatprep.subr.mxu0 %v1847
        %2195 = vmatpush1.msra.mxu0 %v1846
        %2196 = vmatprep.subr.mxu0 %v1865
        %2197 = vmatpush1.msra.mxu0 %v1864
        %2198 = vmatprep.subr.mxu0 %v1883
        %2199 = vmatpush1.msra.mxu0 %v1882
        %2200 = vmatprep.subr.mxu0 %v1901
        %2201 = vmatpush1.msra.mxu0 %v1900
        %2202 = vmatprep.subr.mxu0 0.0
        %2203 = vmatpush1.msra.mxu0 0.0
        %2204 = vmatprep.subr.mxu0 0.0
        %2205 = vmatpush1.msra.mxu0 0.0
        %2206 = vmatprep.subr.mxu0 0.0
        %2207 = vmatpush1.msra.mxu0 0.0
        %2208 = vmatprep.subr.mxu0 0.0
        %2209 = vmatpush1.msra.mxu0 0.0
        %2210 = vmatprep.subr.mxu0 0.0
        %2211 = vmatpush1.msra.mxu0 0.0
        %2212 = vmatprep.subr.mxu0 0.0
        %2213 = vmatpush1.msra.mxu0 0.0
        %2214 = vmatprep.subr.mxu0 0.0
        %2215 = vmatpush1.msra.mxu0 0.0
        %2216 = vmatprep.subr.mxu0 0.0
        %2217 = vmatpush1.msra.mxu0 0.0
        %2218 = vmatprep.mubr.f32.mxu0 %v1918
        %2219 = vmatmul.mubr.f32.gmra.mrb[0].mxu0 %v898
        %v2220 = vpop.f32.mrb[0].mxu0
        %v2221 = vadd.f32 %v2144, %v2220
        %v2222 = vpop.f32.mrb[0].mxu0
        %v2223 = vadd.f32 %v2146, %v2222
        %2224 = vmatprep.mubr.f32.mxu0 %v1921
        %2225 = vmatmul.mubr.f32.gmra.mrb[0].mxu0 %v906
        %v2226 = vpop.f32.mrb[0].mxu0
        %v2227 = vadd.f32 %v2150, %v2226
        %v2228 = vpop.f32.mrb[0].mxu0
        %v2229 = vadd.f32 %v2152, %v2228
        %2230 = vdwg.mxu0
        %2231 = vmatprep.subr.mxu0 %v913
        %2232 = vmatpush1.msra.mxu0 %v912
        %2233 = vmatprep.subr.mxu0 %v931
        %2234 = vmatpush1.msra.mxu0 %v930
        %2235 = vmatprep.subr.mxu0 %v949
        %2236 = vmatpush1.msra.mxu0 %v948
        %2237 = vmatprep.subr.mxu0 %v967
        %2238 = vmatpush1.msra.mxu0 %v966
        %2239 = vmatprep.subr.mxu0 %v985
        %2240 = vmatpush1.msra.mxu0 %v984
        %2241 = vmatprep.subr.mxu0 %v1003
        %2242 = vmatpush1.msra.mxu0 %v1002
        %2243 = vmatprep.subr.mxu0 %v1021
        %2244 = vmatpush1.msra.mxu0 %v1020
        %2245 = vmatprep.subr.mxu0 %v1039
        %2246 = vmatpush1.msra.mxu0 %v1038
        %2247 = vmatprep.subr.mxu0 %v1057
        %2248 = vmatpush1.msra.mxu0 %v1056
        %2249 = vmatprep.subr.mxu0 %v1075
        %2250 = vmatpush1.msra.mxu0 %v1074
        %2251 = vmatprep.subr.mxu0 %v1093
        %2252 = vmatpush1.msra.mxu0 %v1092
        %2253 = vmatprep.subr.mxu0 %v1111
        %2254 = vmatpush1.msra.mxu0 %v1110
        %2255 = vmatprep.subr.mxu0 %v1129
        %2256 = vmatpush1.msra.mxu0 %v1128
        %2257 = vmatprep.subr.mxu0 %v1147
        %2258 = vmatpush1.msra.mxu0 %v1146
        %2259 = vmatprep.subr.mxu0 %v1165
        %2260 = vmatpush1.msra.mxu0 %v1164
        %2261 = vmatprep.subr.mxu0 %v1183
        %2262 = vmatpush1.msra.mxu0 %v1182
        %2263 = vmatprep.subr.mxu0 %v1201
        %2264 = vmatpush1.msra.mxu0 %v1200
        %2265 = vmatprep.subr.mxu0 %v1219
        %2266 = vmatpush1.msra.mxu0 %v1218
        %2267 = vmatprep.subr.mxu0 %v1237
        %2268 = vmatpush1.msra.mxu0 %v1236
        %2269 = vmatprep.subr.mxu0 %v1255
        %2270 = vmatpush1.msra.mxu0 %v1254
        %2271 = vmatprep.subr.mxu0 %v1273
        %2272 = vmatpush1.msra.mxu0 %v1272
        %2273 = vmatprep.subr.mxu0 %v1291
        %2274 = vmatpush1.msra.mxu0 %v1290
        %2275 = vmatprep.subr.mxu0 %v1309
        %2276 = vmatpush1.msra.mxu0 %v1308
        %2277 = vmatprep.subr.mxu0 %v1327
        %2278 = vmatpush1.msra.mxu0 %v1326
        %2279 = vmatprep.subr.mxu0 %v1345
        %2280 = vmatpush1.msra.mxu0 %v1344
        %2281 = vmatprep.subr.mxu0 %v1363
        %2282 = vmatpush1.msra.mxu0 %v1362
        %2283 = vmatprep.subr.mxu0 %v1381
        %2284 = vmatpush1.msra.mxu0 %v1380
        %2285 = vmatprep.subr.mxu0 %v1399
        %2286 = vmatpush1.msra.mxu0 %v1398
        %2287 = vmatprep.subr.mxu0 %v1417
        %2288 = vmatpush1.msra.mxu0 %v1416
        %2289 = vmatprep.subr.mxu0 %v1435
        %2290 = vmatpush1.msra.mxu0 %v1434
        %2291 = vmatprep.subr.mxu0 %v1453
        %2292 = vmatpush1.msra.mxu0 %v1452
        %2293 = vmatprep.subr.mxu0 %v1471
        %2294 = vmatpush1.msra.mxu0 %v1470
        %2295 = vmatprep.mubr.f32.mxu0 %v897
        %2296 = vmatmul.mubr.f32.gmra.mrb[0].mxu0 %v896
        %v2297 = vpop.f32.mrb[0].mxu0
        %v2298 = vadd.f32 0.0, %v2297
        %v2299 = vpop.f32.mrb[0].mxu0
        %v2300 = vadd.f32 0.0, %v2299
        %2301 = vmatprep.mubr.f32.mxu0 %v905
        %2302 = vmatmul.mubr.f32.gmra.mrb[0].mxu0 %v904
        %v2303 = vpop.f32.mrb[0].mxu0
        %v2304 = vadd.f32 0.0, %v2303
        %v2305 = vpop.f32.mrb[0].mxu0
        %v2306 = vadd.f32 0.0, %v2305
        %2307 = vdwg.mxu0
        %2308 = vmatprep.subr.mxu0 %v1489
        %2309 = vmatpush1.msra.mxu0 %v1488
        %2310 = vmatprep.subr.mxu0 %v1507
        %2311 = vmatpush1.msra.mxu0 %v1506
        %2312 = vmatprep.subr.mxu0 %v1525
        %2313 = vmatpush1.msra.mxu0 %v1524
        %2314 = vmatprep.subr.mxu0 %v1543
        %2315 = vmatpush1.msra.mxu0 %v1542
        %2316 = vmatprep.subr.mxu0 %v1561
        %2317 = vmatpush1.msra.mxu0 %v1560
        %2318 = vmatprep.subr.mxu0 %v1579
        %2319 = vmatpush1.msra.mxu0 %v1578
        %2320 = vmatprep.subr.mxu0 %v1597
        %2321 = vmatpush1.msra.mxu0 %v1596
        %2322 = vmatprep.subr.mxu0 %v1615
        %2323 = vmatpush1.msra.mxu0 %v1614
        %2324 = vmatprep.subr.mxu0 %v1633
        %2325 = vmatpush1.msra.mxu0 %v1632
        %2326 = vmatprep.subr.mxu0 %v1651
        %2327 = vmatpush1.msra.mxu0 %v1650
        %2328 = vmatprep.subr.mxu0 %v1669
        %2329 = vmatpush1.msra.mxu0 %v1668
        %2330 = vmatprep.subr.mxu0 %v1687
        %2331 = vmatpush1.msra.mxu0 %v1686
        %2332 = vmatprep.subr.mxu0 %v1705
        %2333 = vmatpush1.msra.mxu0 %v1704
        %2334 = vmatprep.subr.mxu0 %v1723
        %2335 = vmatpush1.msra.mxu0 %v1722
        %2336 = vmatprep.subr.mxu0 %v1741
        %2337 = vmatpush1.msra.mxu0 %v1740
        %2338 = vmatprep.subr.mxu0 %v1759
        %2339 = vmatpush1.msra.mxu0 %v1758
        %2340 = vmatprep.subr.mxu0 %v1777
        %2341 = vmatpush1.msra.mxu0 %v1776
        %2342 = vmatprep.subr.mxu0 %v1795
        %2343 = vmatpush1.msra.mxu0 %v1794
        %2344 = vmatprep.subr.mxu0 %v1813
        %2345 = vmatpush1.msra.mxu0 %v1812
        %2346 = vmatprep.subr.mxu0 %v1831
        %2347 = vmatpush1.msra.mxu0 %v1830
        %2348 = vmatprep.subr.mxu0 %v1849
        %2349 = vmatpush1.msra.mxu0 %v1848
        %2350 = vmatprep.subr.mxu0 %v1867
        %2351 = vmatpush1.msra.mxu0 %v1866
        %2352 = vmatprep.subr.mxu0 %v1885
        %2353 = vmatpush1.msra.mxu0 %v1884
        %2354 = vmatprep.subr.mxu0 %v1903
        %2355 = vmatpush1.msra.mxu0 %v1902
        %2356 = vmatprep.subr.mxu0 0.0
        %2357 = vmatpush1.msra.mxu0 0.0
        %2358 = vmatprep.subr.mxu0 0.0
        %2359 = vmatpush1.msra.mxu0 0.0
        %2360 = vmatprep.subr.mxu0 0.0
        %2361 = vmatpush1.msra.mxu0 0.0
        %2362 = vmatprep.subr.mxu0 0.0
        %2363 = vmatpush1.msra.mxu0 0.0
        %2364 = vmatprep.subr.mxu0 0.0
        %2365 = vmatpush1.msra.mxu0 0.0
        %2366 = vmatprep.subr.mxu0 0.0
        %2367 = vmatpush1.msra.mxu0 0.0
        %2368 = vmatprep.subr.mxu0 0.0
        %2369 = vmatpush1.msra.mxu0 0.0
        %2370 = vmatprep.subr.mxu0 0.0
        %2371 = vmatpush1.msra.mxu0 0.0
        %2372 = vmatprep.mubr.f32.mxu0 %v1918
        %2373 = vmatmul.mubr.f32.gmra.mrb[0].mxu0 %v898
        %v2374 = vpop.f32.mrb[0].mxu0
        %v2375 = vadd.f32 %v2298, %v2374
        %v2376 = vpop.f32.mrb[0].mxu0
        %v2377 = vadd.f32 %v2300, %v2376
        %2378 = vmatprep.mubr.f32.mxu0 %v1921
        %2379 = vmatmul.mubr.f32.gmra.mrb[0].mxu0 %v906
        %v2380 = vpop.f32.mrb[0].mxu0
        %v2381 = vadd.f32 %v2304, %v2380
        %v2382 = vpop.f32.mrb[0].mxu0
        %v2383 = vadd.f32 %v2306, %v2382
        %2384 = vdwg.mxu0
        %2385 = vmatprep.subr.mxu0 %v915
        %2386 = vmatpush1.msra.mxu0 %v914
        %2387 = vmatprep.subr.mxu0 %v933
        %2388 = vmatpush1.msra.mxu0 %v932
        %2389 = vmatprep.subr.mxu0 %v951
        %2390 = vmatpush1.msra.mxu0 %v950
        %2391 = vmatprep.subr.mxu0 %v969
        %2392 = vmatpush1.msra.mxu0 %v968
        %2393 = vmatprep.subr.mxu0 %v987
        %2394 = vmatpush1.msra.mxu0 %v986
        %2395 = vmatprep.subr.mxu0 %v1005
        %2396 = vmatpush1.msra.mxu0 %v1004
        %2397 = vmatprep.subr.mxu0 %v1023
        %2398 = vmatpush1.msra.mxu0 %v1022
        %2399 = vmatprep.subr.mxu0 %v1041
        %2400 = vmatpush1.msra.mxu0 %v1040
        %2401 = vmatprep.subr.mxu0 %v1059
        %2402 = vmatpush1.msra.mxu0 %v1058
        %2403 = vmatprep.subr.mxu0 %v1077
        %2404 = vmatpush1.msra.mxu0 %v1076
        %2405 = vmatprep.subr.mxu0 %v1095
        %2406 = vmatpush1.msra.mxu0 %v1094
        %2407 = vmatprep.subr.mxu0 %v1113
        %2408 = vmatpush1.msra.mxu0 %v1112
        %2409 = vmatprep.subr.mxu0 %v1131
        %2410 = vmatpush1.msra.mxu0 %v1130
        %2411 = vmatprep.subr.mxu0 %v1149
        %2412 = vmatpush1.msra.mxu0 %v1148
        %2413 = vmatprep.subr.mxu0 %v1167
        %2414 = vmatpush1.msra.mxu0 %v1166
        %2415 = vmatprep.subr.mxu0 %v1185
        %2416 = vmatpush1.msra.mxu0 %v1184
        %2417 = vmatprep.subr.mxu0 %v1203
        %2418 = vmatpush1.msra.mxu0 %v1202
        %2419 = vmatprep.subr.mxu0 %v1221
        %2420 = vmatpush1.msra.mxu0 %v1220
        %2421 = vmatprep.subr.mxu0 %v1239
        %2422 = vmatpush1.msra.mxu0 %v1238
        %2423 = vmatprep.subr.mxu0 %v1257
        %2424 = vmatpush1.msra.mxu0 %v1256
        %2425 = vmatprep.subr.mxu0 %v1275
        %2426 = vmatpush1.msra.mxu0 %v1274
        %2427 = vmatprep.subr.mxu0 %v1293
        %2428 = vmatpush1.msra.mxu0 %v1292
        %2429 = vmatprep.subr.mxu0 %v1311
        %2430 = vmatpush1.msra.mxu0 %v1310
        %2431 = vmatprep.subr.mxu0 %v1329
        %2432 = vmatpush1.msra.mxu0 %v1328
        %2433 = vmatprep.subr.mxu0 %v1347
        %2434 = vmatpush1.msra.mxu0 %v1346
        %2435 = vmatprep.subr.mxu0 %v1365
        %2436 = vmatpush1.msra.mxu0 %v1364
        %2437 = vmatprep.subr.mxu0 %v1383
        %2438 = vmatpush1.msra.mxu0 %v1382
        %2439 = vmatprep.subr.mxu0 %v1401
        %2440 = vmatpush1.msra.mxu0 %v1400
        %2441 = vmatprep.subr.mxu0 %v1419
        %2442 = vmatpush1.msra.mxu0 %v1418
        %2443 = vmatprep.subr.mxu0 %v1437
        %2444 = vmatpush1.msra.mxu0 %v1436
        %2445 = vmatprep.subr.mxu0 %v1455
        %2446 = vmatpush1.msra.mxu0 %v1454
        %2447 = vmatprep.subr.mxu0 %v1473
        %2448 = vmatpush1.msra.mxu0 %v1472
        %2449 = vmatprep.mubr.f32.mxu0 %v897
        %2450 = vmatmul.mubr.f32.gmra.mrb[0].mxu0 %v896
        %v2451 = vpop.f32.mrb[0].mxu0
        %v2452 = vadd.f32 0.0, %v2451
        %v2453 = vpop.f32.mrb[0].mxu0
        %v2454 = vadd.f32 0.0, %v2453
        %2455 = vmatprep.mubr.f32.mxu0 %v905
        %2456 = vmatmul.mubr.f32.gmra.mrb[0].mxu0 %v904
        %v2457 = vpop.f32.mrb[0].mxu0
        %v2458 = vadd.f32 0.0, %v2457
        %v2459 = vpop.f32.mrb[0].mxu0
        %v2460 = vadd.f32 0.0, %v2459
        %2461 = vdwg.mxu0
        %2462 = vmatprep.subr.mxu0 %v1491
        %2463 = vmatpush1.msra.mxu0 %v1490
        %2464 = vmatprep.subr.mxu0 %v1509
        %2465 = vmatpush1.msra.mxu0 %v1508
        %2466 = vmatprep.subr.mxu0 %v1527
        %2467 = vmatpush1.msra.mxu0 %v1526
        %2468 = vmatprep.subr.mxu0 %v1545
        %2469 = vmatpush1.msra.mxu0 %v1544
        %2470 = vmatprep.subr.mxu0 %v1563
        %2471 = vmatpush1.msra.mxu0 %v1562
        %2472 = vmatprep.subr.mxu0 %v1581
        %2473 = vmatpush1.msra.mxu0 %v1580
        %2474 = vmatprep.subr.mxu0 %v1599
        %2475 = vmatpush1.msra.mxu0 %v1598
        %2476 = vmatprep.subr.mxu0 %v1617
        %2477 = vmatpush1.msra.mxu0 %v1616
        %2478 = vmatprep.subr.mxu0 %v1635
        %2479 = vmatpush1.msra.mxu0 %v1634
        %2480 = vmatprep.subr.mxu0 %v1653
        %2481 = vmatpush1.msra.mxu0 %v1652
        %2482 = vmatprep.subr.mxu0 %v1671
        %2483 = vmatpush1.msra.mxu0 %v1670
        %2484 = vmatprep.subr.mxu0 %v1689
        %2485 = vmatpush1.msra.mxu0 %v1688
        %2486 = vmatprep.subr.mxu0 %v1707
        %2487 = vmatpush1.msra.mxu0 %v1706
        %2488 = vmatprep.subr.mxu0 %v1725
        %2489 = vmatpush1.msra.mxu0 %v1724
        %2490 = vmatprep.subr.mxu0 %v1743
        %2491 = vmatpush1.msra.mxu0 %v1742
        %2492 = vmatprep.subr.mxu0 %v1761
        %2493 = vmatpush1.msra.mxu0 %v1760
        %2494 = vmatprep.subr.mxu0 %v1779
        %2495 = vmatpush1.msra.mxu0 %v1778
        %2496 = vmatprep.subr.mxu0 %v1797
        %2497 = vmatpush1.msra.mxu0 %v1796
        %2498 = vmatprep.subr.mxu0 %v1815
        %2499 = vmatpush1.msra.mxu0 %v1814
        %2500 = vmatprep.subr.mxu0 %v1833
        %2501 = vmatpush1.msra.mxu0 %v1832
        %2502 = vmatprep.subr.mxu0 %v1851
        %2503 = vmatpush1.msra.mxu0 %v1850
        %2504 = vmatprep.subr.mxu0 %v1869
        %2505 = vmatpush1.msra.mxu0 %v1868
        %2506 = vmatprep.subr.mxu0 %v1887
        %2507 = vmatpush1.msra.mxu0 %v1886
        %2508 = vmatprep.subr.mxu0 %v1905
        %2509 = vmatpush1.msra.mxu0 %v1904
        %2510 = vmatprep.subr.mxu0 0.0
        %2511 = vmatpush1.msra.mxu0 0.0
        %2512 = vmatprep.subr.mxu0 0.0
        %2513 = vmatpush1.msra.mxu0 0.0
        %2514 = vmatprep.subr.mxu0 0.0
        %2515 = vmatpush1.msra.mxu0 0.0
        %2516 = vmatprep.subr.mxu0 0.0
        %2517 = vmatpush1.msra.mxu0 0.0
        %2518 = vmatprep.subr.mxu0 0.0
        %2519 = vmatpush1.msra.mxu0 0.0
        %2520 = vmatprep.subr.mxu0 0.0
        %2521 = vmatpush1.msra.mxu0 0.0
        %2522 = vmatprep.subr.mxu0 0.0
        %2523 = vmatpush1.msra.mxu0 0.0
        %2524 = vmatprep.subr.mxu0 0.0
        %2525 = vmatpush1.msra.mxu0 0.0
        %2526 = vmatprep.mubr.f32.mxu0 %v1918
        %2527 = vmatmul.mubr.f32.gmra.mrb[0].mxu0 %v898
        %v2528 = vpop.f32.mrb[0].mxu0
        %v2529 = vadd.f32 %v2452, %v2528
        %v2530 = vpop.f32.mrb[0].mxu0
        %v2531 = vadd.f32 %v2454, %v2530
        %2532 = vmatprep.mubr.f32.mxu0 %v1921
        %2533 = vmatmul.mubr.f32.gmra.mrb[0].mxu0 %v906
        %v2534 = vpop.f32.mrb[0].mxu0
        %v2535 = vadd.f32 %v2458, %v2534
        %v2536 = vpop.f32.mrb[0].mxu0
        %v2537 = vadd.f32 %v2460, %v2536
        %2538 = vdwg.mxu0
        %2539 = vmatprep.subr.mxu0 %v917
        %2540 = vmatpush1.msra.mxu0 %v916
        %2541 = vmatprep.subr.mxu0 %v935
        %2542 = vmatpush1.msra.mxu0 %v934
        %2543 = vmatprep.subr.mxu0 %v953
        %2544 = vmatpush1.msra.mxu0 %v952
        %2545 = vmatprep.subr.mxu0 %v971
        %2546 = vmatpush1.msra.mxu0 %v970
        %2547 = vmatprep.subr.mxu0 %v989
        %2548 = vmatpush1.msra.mxu0 %v988
        %2549 = vmatprep.subr.mxu0 %v1007
        %2550 = vmatpush1.msra.mxu0 %v1006
        %2551 = vmatprep.subr.mxu0 %v1025
        %2552 = vmatpush1.msra.mxu0 %v1024
        %2553 = vmatprep.subr.mxu0 %v1043
        %2554 = vmatpush1.msra.mxu0 %v1042
        %2555 = vmatprep.subr.mxu0 %v1061
        %2556 = vmatpush1.msra.mxu0 %v1060
        %2557 = vmatprep.subr.mxu0 %v1079
        %2558 = vmatpush1.msra.mxu0 %v1078
        %2559 = vmatprep.subr.mxu0 %v1097
        %2560 = vmatpush1.msra.mxu0 %v1096
        %2561 = vmatprep.subr.mxu0 %v1115
        %2562 = vmatpush1.msra.mxu0 %v1114
        %2563 = vmatprep.subr.mxu0 %v1133
        %2564 = vmatpush1.msra.mxu0 %v1132
        %2565 = vmatprep.subr.mxu0 %v1151
        %2566 = vmatpush1.msra.mxu0 %v1150
        %2567 = vmatprep.subr.mxu0 %v1169
        %2568 = vmatpush1.msra.mxu0 %v1168
        %2569 = vmatprep.subr.mxu0 %v1187
        %2570 = vmatpush1.msra.mxu0 %v1186
        %2571 = vmatprep.subr.mxu0 %v1205
        %2572 = vmatpush1.msra.mxu0 %v1204
        %2573 = vmatprep.subr.mxu0 %v1223
        %2574 = vmatpush1.msra.mxu0 %v1222
        %2575 = vmatprep.subr.mxu0 %v1241
        %2576 = vmatpush1.msra.mxu0 %v1240
        %2577 = vmatprep.subr.mxu0 %v1259
        %2578 = vmatpush1.msra.mxu0 %v1258
        %2579 = vmatprep.subr.mxu0 %v1277
        %2580 = vmatpush1.msra.mxu0 %v1276
        %2581 = vmatprep.subr.mxu0 %v1295
        %2582 = vmatpush1.msra.mxu0 %v1294
        %2583 = vmatprep.subr.mxu0 %v1313
        %2584 = vmatpush1.msra.mxu0 %v1312
        %2585 = vmatprep.subr.mxu0 %v1331
        %2586 = vmatpush1.msra.mxu0 %v1330
        %2587 = vmatprep.subr.mxu0 %v1349
        %2588 = vmatpush1.msra.mxu0 %v1348
        %2589 = vmatprep.subr.mxu0 %v1367
        %2590 = vmatpush1.msra.mxu0 %v1366
        %2591 = vmatprep.subr.mxu0 %v1385
        %2592 = vmatpush1.msra.mxu0 %v1384
        %2593 = vmatprep.subr.mxu0 %v1403
        %2594 = vmatpush1.msra.mxu0 %v1402
        %2595 = vmatprep.subr.mxu0 %v1421
        %2596 = vmatpush1.msra.mxu0 %v1420
        %2597 = vmatprep.subr.mxu0 %v1439
        %2598 = vmatpush1.msra.mxu0 %v1438
        %2599 = vmatprep.subr.mxu0 %v1457
        %2600 = vmatpush1.msra.mxu0 %v1456
        %2601 = vmatprep.subr.mxu0 %v1475
        %2602 = vmatpush1.msra.mxu0 %v1474
        %2603 = vmatprep.mubr.f32.mxu0 %v897
        %2604 = vmatmul.mubr.f32.gmra.mrb[0].mxu0 %v896
        %v2605 = vpop.f32.mrb[0].mxu0
        %v2606 = vadd.f32 0.0, %v2605
        %v2607 = vpop.f32.mrb[0].mxu0
        %v2608 = vadd.f32 0.0, %v2607
        %2609 = vmatprep.mubr.f32.mxu0 %v905
        %2610 = vmatmul.mubr.f32.gmra.mrb[0].mxu0 %v904
        %v2611 = vpop.f32.mrb[0].mxu0
        %v2612 = vadd.f32 0.0, %v2611
        %v2613 = vpop.f32.mrb[0].mxu0
        %v2614 = vadd.f32 0.0, %v2613
        %2615 = vdwg.mxu0
        %2616 = vmatprep.subr.mxu0 %v1493
        %2617 = vmatpush1.msra.mxu0 %v1492
        %2618 = vmatprep.subr.mxu0 %v1511
        %2619 = vmatpush1.msra.mxu0 %v1510
        %2620 = vmatprep.subr.mxu0 %v1529
        %2621 = vmatpush1.msra.mxu0 %v1528
        %2622 = vmatprep.subr.mxu0 %v1547
        %2623 = vmatpush1.msra.mxu0 %v1546
        %2624 = vmatprep.subr.mxu0 %v1565
        %2625 = vmatpush1.msra.mxu0 %v1564
        %2626 = vmatprep.subr.mxu0 %v1583
        %2627 = vmatpush1.msra.mxu0 %v1582
        %2628 = vmatprep.subr.mxu0 %v1601
        %2629 = vmatpush1.msra.mxu0 %v1600
        %2630 = vmatprep.subr.mxu0 %v1619
        %2631 = vmatpush1.msra.mxu0 %v1618
        %2632 = vmatprep.subr.mxu0 %v1637
        %2633 = vmatpush1.msra.mxu0 %v1636
        %2634 = vmatprep.subr.mxu0 %v1655
        %2635 = vmatpush1.msra.mxu0 %v1654
        %2636 = vmatprep.subr.mxu0 %v1673
        %2637 = vmatpush1.msra.mxu0 %v1672
        %2638 = vmatprep.subr.mxu0 %v1691
        %2639 = vmatpush1.msra.mxu0 %v1690
        %2640 = vmatprep.subr.mxu0 %v1709
        %2641 = vmatpush1.msra.mxu0 %v1708
        %2642 = vmatprep.subr.mxu0 %v1727
        %2643 = vmatpush1.msra.mxu0 %v1726
        %2644 = vmatprep.subr.mxu0 %v1745
        %2645 = vmatpush1.msra.mxu0 %v1744
        %2646 = vmatprep.subr.mxu0 %v1763
        %2647 = vmatpush1.msra.mxu0 %v1762
        %2648 = vmatprep.subr.mxu0 %v1781
        %2649 = vmatpush1.msra.mxu0 %v1780
        %2650 = vmatprep.subr.mxu0 %v1799
        %2651 = vmatpush1.msra.mxu0 %v1798
        %2652 = vmatprep.subr.mxu0 %v1817
        %2653 = vmatpush1.msra.mxu0 %v1816
        %2654 = vmatprep.subr.mxu0 %v1835
        %2655 = vmatpush1.msra.mxu0 %v1834
        %2656 = vmatprep.subr.mxu0 %v1853
        %2657 = vmatpush1.msra.mxu0 %v1852
        %2658 = vmatprep.subr.mxu0 %v1871
        %2659 = vmatpush1.msra.mxu0 %v1870
        %2660 = vmatprep.subr.mxu0 %v1889
        %2661 = vmatpush1.msra.mxu0 %v1888
        %2662 = vmatprep.subr.mxu0 %v1907
        %2663 = vmatpush1.msra.mxu0 %v1906
        %2664 = vmatprep.subr.mxu0 0.0
        %2665 = vmatpush1.msra.mxu0 0.0
        %2666 = vmatprep.subr.mxu0 0.0
        %2667 = vmatpush1.msra.mxu0 0.0
        %2668 = vmatprep.subr.mxu0 0.0
        %2669 = vmatpush1.msra.mxu0 0.0
        %2670 = vmatprep.subr.mxu0 0.0
        %2671 = vmatpush1.msra.mxu0 0.0
        %2672 = vmatprep.subr.mxu0 0.0
        %2673 = vmatpush1.msra.mxu0 0.0
        %2674 = vmatprep.subr.mxu0 0.0
        %2675 = vmatpush1.msra.mxu0 0.0
        %2676 = vmatprep.subr.mxu0 0.0
        %2677 = vmatpush1.msra.mxu0 0.0
        %2678 = vmatprep.subr.mxu0 0.0
        %2679 = vmatpush1.msra.mxu0 0.0
        %2680 = vmatprep.mubr.f32.mxu0 %v1918
        %2681 = vmatmul.mubr.f32.gmra.mrb[0].mxu0 %v898
        %v2682 = vpop.f32.mrb[0].mxu0
        %v2683 = vadd.f32 %v2606, %v2682
        %v2684 = vpop.f32.mrb[0].mxu0
        %v2685 = vadd.f32 %v2608, %v2684
        %2686 = vmatprep.mubr.f32.mxu0 %v1921
        %2687 = vmatmul.mubr.f32.gmra.mrb[0].mxu0 %v906
        %v2688 = vpop.f32.mrb[0].mxu0
        %v2689 = vadd.f32 %v2612, %v2688
        %v2690 = vpop.f32.mrb[0].mxu0
        %v2691 = vadd.f32 %v2614, %v2690
        %2692 = vdwg.mxu0
        %2693 = vmatprep.subr.mxu0 %v919
        %2694 = vmatpush1.msra.mxu0 %v918
        %2695 = vmatprep.subr.mxu0 %v937
        %2696 = vmatpush1.msra.mxu0 %v936
        %2697 = vmatprep.subr.mxu0 %v955
        %2698 = vmatpush1.msra.mxu0 %v954
        %2699 = vmatprep.subr.mxu0 %v973
        %2700 = vmatpush1.msra.mxu0 %v972
        %2701 = vmatprep.subr.mxu0 %v991
        %2702 = vmatpush1.msra.mxu0 %v990
        %2703 = vmatprep.subr.mxu0 %v1009
        %2704 = vmatpush1.msra.mxu0 %v1008
        %2705 = vmatprep.subr.mxu0 %v1027
        %2706 = vmatpush1.msra.mxu0 %v1026
        %2707 = vmatprep.subr.mxu0 %v1045
        %2708 = vmatpush1.msra.mxu0 %v1044
        %2709 = vmatprep.subr.mxu0 %v1063
        %2710 = vmatpush1.msra.mxu0 %v1062
        %2711 = vmatprep.subr.mxu0 %v1081
        %2712 = vmatpush1.msra.mxu0 %v1080
        %2713 = vmatprep.subr.mxu0 %v1099
        %2714 = vmatpush1.msra.mxu0 %v1098
        %2715 = vmatprep.subr.mxu0 %v1117
        %2716 = vmatpush1.msra.mxu0 %v1116
        %2717 = vmatprep.subr.mxu0 %v1135
        %2718 = vmatpush1.msra.mxu0 %v1134
        %2719 = vmatprep.subr.mxu0 %v1153
        %2720 = vmatpush1.msra.mxu0 %v1152
        %2721 = vmatprep.subr.mxu0 %v1171
        %2722 = vmatpush1.msra.mxu0 %v1170
        %2723 = vmatprep.subr.mxu0 %v1189
        %2724 = vmatpush1.msra.mxu0 %v1188
        %2725 = vmatprep.subr.mxu0 %v1207
        %2726 = vmatpush1.msra.mxu0 %v1206
        %2727 = vmatprep.subr.mxu0 %v1225
        %2728 = vmatpush1.msra.mxu0 %v1224
        %2729 = vmatprep.subr.mxu0 %v1243
        %2730 = vmatpush1.msra.mxu0 %v1242
        %2731 = vmatprep.subr.mxu0 %v1261
        %2732 = vmatpush1.msra.mxu0 %v1260
        %2733 = vmatprep.subr.mxu0 %v1279
        %2734 = vmatpush1.msra.mxu0 %v1278
        %2735 = vmatprep.subr.mxu0 %v1297
        %2736 = vmatpush1.msra.mxu0 %v1296
        %2737 = vmatprep.subr.mxu0 %v1315
        %2738 = vmatpush1.msra.mxu0 %v1314
        %2739 = vmatprep.subr.mxu0 %v1333
        %2740 = vmatpush1.msra.mxu0 %v1332
        %2741 = vmatprep.subr.mxu0 %v1351
        %2742 = vmatpush1.msra.mxu0 %v1350
        %2743 = vmatprep.subr.mxu0 %v1369
        %2744 = vmatpush1.msra.mxu0 %v1368
        %2745 = vmatprep.subr.mxu0 %v1387
        %2746 = vmatpush1.msra.mxu0 %v1386
        %2747 = vmatprep.subr.mxu0 %v1405
        %2748 = vmatpush1.msra.mxu0 %v1404
        %2749 = vmatprep.subr.mxu0 %v1423
        %2750 = vmatpush1.msra.mxu0 %v1422
        %2751 = vmatprep.subr.mxu0 %v1441
        %2752 = vmatpush1.msra.mxu0 %v1440
        %2753 = vmatprep.subr.mxu0 %v1459
        %2754 = vmatpush1.msra.mxu0 %v1458
        %2755 = vmatprep.subr.mxu0 %v1477
        %2756 = vmatpush1.msra.mxu0 %v1476
        %2757 = vmatprep.mubr.f32.mxu0 %v897
        %2758 = vmatmul.mubr.f32.gmra.mrb[0].mxu0 %v896
        %v2759 = vpop.f32.mrb[0].mxu0
        %v2760 = vadd.f32 0.0, %v2759
        %v2761 = vpop.f32.mrb[0].mxu0
        %v2762 = vadd.f32 0.0, %v2761
        %2763 = vmatprep.mubr.f32.mxu0 %v905
        %2764 = vmatmul.mubr.f32.gmra.mrb[0].mxu0 %v904
        %v2765 = vpop.f32.mrb[0].mxu0
        %v2766 = vadd.f32 0.0, %v2765
        %v2767 = vpop.f32.mrb[0].mxu0
        %v2768 = vadd.f32 0.0, %v2767
        %2769 = vdwg.mxu0
        %2770 = vmatprep.subr.mxu0 %v1495
        %2771 = vmatpush1.msra.mxu0 %v1494
        %2772 = vmatprep.subr.mxu0 %v1513
        %2773 = vmatpush1.msra.mxu0 %v1512
        %2774 = vmatprep.subr.mxu0 %v1531
        %2775 = vmatpush1.msra.mxu0 %v1530
        %2776 = vmatprep.subr.mxu0 %v1549
        %2777 = vmatpush1.msra.mxu0 %v1548
        %2778 = vmatprep.subr.mxu0 %v1567
        %2779 = vmatpush1.msra.mxu0 %v1566
        %2780 = vmatprep.subr.mxu0 %v1585
        %2781 = vmatpush1.msra.mxu0 %v1584
        %2782 = vmatprep.subr.mxu0 %v1603
        %2783 = vmatpush1.msra.mxu0 %v1602
        %2784 = vmatprep.subr.mxu0 %v1621
        %2785 = vmatpush1.msra.mxu0 %v1620
        %2786 = vmatprep.subr.mxu0 %v1639
        %2787 = vmatpush1.msra.mxu0 %v1638
        %2788 = vmatprep.subr.mxu0 %v1657
        %2789 = vmatpush1.msra.mxu0 %v1656
        %2790 = vmatprep.subr.mxu0 %v1675
        %2791 = vmatpush1.msra.mxu0 %v1674
        %2792 = vmatprep.subr.mxu0 %v1693
        %2793 = vmatpush1.msra.mxu0 %v1692
        %2794 = vmatprep.subr.mxu0 %v1711
        %2795 = vmatpush1.msra.mxu0 %v1710
        %2796 = vmatprep.subr.mxu0 %v1729
        %2797 = vmatpush1.msra.mxu0 %v1728
        %2798 = vmatprep.subr.mxu0 %v1747
        %2799 = vmatpush1.msra.mxu0 %v1746
        %2800 = vmatprep.subr.mxu0 %v1765
        %2801 = vmatpush1.msra.mxu0 %v1764
        %2802 = vmatprep.subr.mxu0 %v1783
        %2803 = vmatpush1.msra.mxu0 %v1782
        %2804 = vmatprep.subr.mxu0 %v1801
        %2805 = vmatpush1.msra.mxu0 %v1800
        %2806 = vmatprep.subr.mxu0 %v1819
        %2807 = vmatpush1.msra.mxu0 %v1818
        %2808 = vmatprep.subr.mxu0 %v1837
        %2809 = vmatpush1.msra.mxu0 %v1836
        %2810 = vmatprep.subr.mxu0 %v1855
        %2811 = vmatpush1.msra.mxu0 %v1854
        %2812 = vmatprep.subr.mxu0 %v1873
        %2813 = vmatpush1.msra.mxu0 %v1872
        %2814 = vmatprep.subr.mxu0 %v1891
        %2815 = vmatpush1.msra.mxu0 %v1890
        %2816 = vmatprep.subr.mxu0 %v1909
        %2817 = vmatpush1.msra.mxu0 %v1908
        %2818 = vmatprep.subr.mxu0 0.0
        %2819 = vmatpush1.msra.mxu0 0.0
        %2820 = vmatprep.subr.mxu0 0.0
        %2821 = vmatpush1.msra.mxu0 0.0
        %2822 = vmatprep.subr.mxu0 0.0
        %2823 = vmatpush1.msra.mxu0 0.0
        %2824 = vmatprep.subr.mxu0 0.0
        %2825 = vmatpush1.msra.mxu0 0.0
        %2826 = vmatprep.subr.mxu0 0.0
        %2827 = vmatpush1.msra.mxu0 0.0
        %2828 = vmatprep.subr.mxu0 0.0
        %2829 = vmatpush1.msra.mxu0 0.0
        %2830 = vmatprep.subr.mxu0 0.0
        %2831 = vmatpush1.msra.mxu0 0.0
        %2832 = vmatprep.subr.mxu0 0.0
        %2833 = vmatpush1.msra.mxu0 0.0
        %2834 = vmatprep.mubr.f32.mxu0 %v1918
        %2835 = vmatmul.mubr.f32.gmra.mrb[0].mxu0 %v898
        %v2836 = vpop.f32.mrb[0].mxu0
        %v2837 = vadd.f32 %v2760, %v2836
        %v2838 = vpop.f32.mrb[0].mxu0
        %v2839 = vadd.f32 %v2762, %v2838
        %2840 = vmatprep.mubr.f32.mxu0 %v1921
        %2841 = vmatmul.mubr.f32.gmra.mrb[0].mxu0 %v906
        %v2842 = vpop.f32.mrb[0].mxu0
        %v2843 = vadd.f32 %v2766, %v2842
        %v2844 = vpop.f32.mrb[0].mxu0
        %v2845 = vadd.f32 %v2768, %v2844
        %2846 = vdwg.mxu0
        %2847 = vmatprep.subr.mxu0 %v921
        %2848 = vmatpush1.msra.mxu0 %v920
        %2849 = vmatprep.subr.mxu0 %v939
        %2850 = vmatpush1.msra.mxu0 %v938
        %2851 = vmatprep.subr.mxu0 %v957
        %2852 = vmatpush1.msra.mxu0 %v956
        %2853 = vmatprep.subr.mxu0 %v975
        %2854 = vmatpush1.msra.mxu0 %v974
        %2855 = vmatprep.subr.mxu0 %v993
        %2856 = vmatpush1.msra.mxu0 %v992
        %2857 = vmatprep.subr.mxu0 %v1011
        %2858 = vmatpush1.msra.mxu0 %v1010
        %2859 = vmatprep.subr.mxu0 %v1029
        %2860 = vmatpush1.msra.mxu0 %v1028
        %2861 = vmatprep.subr.mxu0 %v1047
        %2862 = vmatpush1.msra.mxu0 %v1046
        %2863 = vmatprep.subr.mxu0 %v1065
        %2864 = vmatpush1.msra.mxu0 %v1064
        %2865 = vmatprep.subr.mxu0 %v1083
        %2866 = vmatpush1.msra.mxu0 %v1082
        %2867 = vmatprep.subr.mxu0 %v1101
        %2868 = vmatpush1.msra.mxu0 %v1100
        %2869 = vmatprep.subr.mxu0 %v1119
        %2870 = vmatpush1.msra.mxu0 %v1118
        %2871 = vmatprep.subr.mxu0 %v1137
        %2872 = vmatpush1.msra.mxu0 %v1136
        %2873 = vmatprep.subr.mxu0 %v1155
        %2874 = vmatpush1.msra.mxu0 %v1154
        %2875 = vmatprep.subr.mxu0 %v1173
        %2876 = vmatpush1.msra.mxu0 %v1172
        %2877 = vmatprep.subr.mxu0 %v1191
        %2878 = vmatpush1.msra.mxu0 %v1190
        %2879 = vmatprep.subr.mxu0 %v1209
        %2880 = vmatpush1.msra.mxu0 %v1208
        %2881 = vmatprep.subr.mxu0 %v1227
        %2882 = vmatpush1.msra.mxu0 %v1226
        %2883 = vmatprep.subr.mxu0 %v1245
        %2884 = vmatpush1.msra.mxu0 %v1244
        %2885 = vmatprep.subr.mxu0 %v1263
        %2886 = vmatpush1.msra.mxu0 %v1262
        %2887 = vmatprep.subr.mxu0 %v1281
        %2888 = vmatpush1.msra.mxu0 %v1280
        %2889 = vmatprep.subr.mxu0 %v1299
        %2890 = vmatpush1.msra.mxu0 %v1298
        %2891 = vmatprep.subr.mxu0 %v1317
        %2892 = vmatpush1.msra.mxu0 %v1316
        %2893 = vmatprep.subr.mxu0 %v1335
        %2894 = vmatpush1.msra.mxu0 %v1334
        %2895 = vmatprep.subr.mxu0 %v1353
        %2896 = vmatpush1.msra.mxu0 %v1352
        %2897 = vmatprep.subr.mxu0 %v1371
        %2898 = vmatpush1.msra.mxu0 %v1370
        %2899 = vmatprep.subr.mxu0 %v1389
        %2900 = vmatpush1.msra.mxu0 %v1388
        %2901 = vmatprep.subr.mxu0 %v1407
        %2902 = vmatpush1.msra.mxu0 %v1406
        %2903 = vmatprep.subr.mxu0 %v1425
        %2904 = vmatpush1.msra.mxu0 %v1424
        %2905 = vmatprep.subr.mxu0 %v1443
        %2906 = vmatpush1.msra.mxu0 %v1442
        %2907 = vmatprep.subr.mxu0 %v1461
        %2908 = vmatpush1.msra.mxu0 %v1460
        %2909 = vmatprep.subr.mxu0 %v1479
        %2910 = vmatpush1.msra.mxu0 %v1478
        %2911 = vmatprep.mubr.f32.mxu0 %v897
        %2912 = vmatmul.mubr.f32.gmra.mrb[0].mxu0 %v896
        %v2913 = vpop.f32.mrb[0].mxu0
        %v2914 = vadd.f32 0.0, %v2913
        %v2915 = vpop.f32.mrb[0].mxu0
        %v2916 = vadd.f32 0.0, %v2915
        %2917 = vmatprep.mubr.f32.mxu0 %v905
        %2918 = vmatmul.mubr.f32.gmra.mrb[0].mxu0 %v904
        %v2919 = vpop.f32.mrb[0].mxu0
        %v2920 = vadd.f32 0.0, %v2919
        %v2921 = vpop.f32.mrb[0].mxu0
        %v2922 = vadd.f32 0.0, %v2921
        %2923 = vdwg.mxu0
        %2924 = vmatprep.subr.mxu0 %v1497
        %2925 = vmatpush1.msra.mxu0 %v1496
        %2926 = vmatprep.subr.mxu0 %v1515
        %2927 = vmatpush1.msra.mxu0 %v1514
        %2928 = vmatprep.subr.mxu0 %v1533
        %2929 = vmatpush1.msra.mxu0 %v1532
        %2930 = vmatprep.subr.mxu0 %v1551
        %2931 = vmatpush1.msra.mxu0 %v1550
        %2932 = vmatprep.subr.mxu0 %v1569
        %2933 = vmatpush1.msra.mxu0 %v1568
        %2934 = vmatprep.subr.mxu0 %v1587
        %2935 = vmatpush1.msra.mxu0 %v1586
        %2936 = vmatprep.subr.mxu0 %v1605
        %2937 = vmatpush1.msra.mxu0 %v1604
        %2938 = vmatprep.subr.mxu0 %v1623
        %2939 = vmatpush1.msra.mxu0 %v1622
        %2940 = vmatprep.subr.mxu0 %v1641
        %2941 = vmatpush1.msra.mxu0 %v1640
        %2942 = vmatprep.subr.mxu0 %v1659
        %2943 = vmatpush1.msra.mxu0 %v1658
        %2944 = vmatprep.subr.mxu0 %v1677
        %2945 = vmatpush1.msra.mxu0 %v1676
        %2946 = vmatprep.subr.mxu0 %v1695
        %2947 = vmatpush1.msra.mxu0 %v1694
        %2948 = vmatprep.subr.mxu0 %v1713
        %2949 = vmatpush1.msra.mxu0 %v1712
        %2950 = vmatprep.subr.mxu0 %v1731
        %2951 = vmatpush1.msra.mxu0 %v1730
        %2952 = vmatprep.subr.mxu0 %v1749
        %2953 = vmatpush1.msra.mxu0 %v1748
        %2954 = vmatprep.subr.mxu0 %v1767
        %2955 = vmatpush1.msra.mxu0 %v1766
        %2956 = vmatprep.subr.mxu0 %v1785
        %2957 = vmatpush1.msra.mxu0 %v1784
        %2958 = vmatprep.subr.mxu0 %v1803
        %2959 = vmatpush1.msra.mxu0 %v1802
        %2960 = vmatprep.subr.mxu0 %v1821
        %2961 = vmatpush1.msra.mxu0 %v1820
        %2962 = vmatprep.subr.mxu0 %v1839
        %2963 = vmatpush1.msra.mxu0 %v1838
        %2964 = vmatprep.subr.mxu0 %v1857
        %2965 = vmatpush1.msra.mxu0 %v1856
        %2966 = vmatprep.subr.mxu0 %v1875
        %2967 = vmatpush1.msra.mxu0 %v1874
        %2968 = vmatprep.subr.mxu0 %v1893
        %2969 = vmatpush1.msra.mxu0 %v1892
        %2970 = vmatprep.subr.mxu0 %v1911
        %2971 = vmatpush1.msra.mxu0 %v1910
        %2972 = vmatprep.subr.mxu0 0.0
        %2973 = vmatpush1.msra.mxu0 0.0
        %2974 = vmatprep.subr.mxu0 0.0
        %2975 = vmatpush1.msra.mxu0 0.0
        %2976 = vmatprep.subr.mxu0 0.0
        %2977 = vmatpush1.msra.mxu0 0.0
        %2978 = vmatprep.subr.mxu0 0.0
        %2979 = vmatpush1.msra.mxu0 0.0
        %2980 = vmatprep.subr.mxu0 0.0
        %2981 = vmatpush1.msra.mxu0 0.0
        %2982 = vmatprep.subr.mxu0 0.0
        %2983 = vmatpush1.msra.mxu0 0.0
        %2984 = vmatprep.subr.mxu0 0.0
        %2985 = vmatpush1.msra.mxu0 0.0
        %2986 = vmatprep.subr.mxu0 0.0
        %2987 = vmatpush1.msra.mxu0 0.0
        %2988 = vmatprep.mubr.f32.mxu0 %v1918
        %2989 = vmatmul.mubr.f32.gmra.mrb[0].mxu0 %v898
        %v2990 = vpop.f32.mrb[0].mxu0
        %v2991 = vadd.f32 %v2914, %v2990
        %v2992 = vpop.f32.mrb[0].mxu0
        %v2993 = vadd.f32 %v2916, %v2992
        %2994 = vmatprep.mubr.f32.mxu0 %v1921
        %2995 = vmatmul.mubr.f32.gmra.mrb[0].mxu0 %v906
        %v2996 = vpop.f32.mrb[0].mxu0
        %v2997 = vadd.f32 %v2920, %v2996
        %v2998 = vpop.f32.mrb[0].mxu0
        %v2999 = vadd.f32 %v2922, %v2998
        %3000 = vdwg.mxu0
        %3001 = vmatprep.subr.mxu0 %v923
        %3002 = vmatpush1.msra.mxu0 %v922
        %3003 = vmatprep.subr.mxu0 %v941
        %3004 = vmatpush1.msra.mxu0 %v940
        %3005 = vmatprep.subr.mxu0 %v959
        %3006 = vmatpush1.msra.mxu0 %v958
        %3007 = vmatprep.subr.mxu0 %v977
        %3008 = vmatpush1.msra.mxu0 %v976
        %3009 = vmatprep.subr.mxu0 %v995
        %3010 = vmatpush1.msra.mxu0 %v994
        %3011 = vmatprep.subr.mxu0 %v1013
        %3012 = vmatpush1.msra.mxu0 %v1012
        %3013 = vmatprep.subr.mxu0 %v1031
        %3014 = vmatpush1.msra.mxu0 %v1030
        %3015 = vmatprep.subr.mxu0 %v1049
        %3016 = vmatpush1.msra.mxu0 %v1048
        %3017 = vmatprep.subr.mxu0 %v1067
        %3018 = vmatpush1.msra.mxu0 %v1066
        %3019 = vmatprep.subr.mxu0 %v1085
        %3020 = vmatpush1.msra.mxu0 %v1084
        %3021 = vmatprep.subr.mxu0 %v1103
        %3022 = vmatpush1.msra.mxu0 %v1102
        %3023 = vmatprep.subr.mxu0 %v1121
        %3024 = vmatpush1.msra.mxu0 %v1120
        %3025 = vmatprep.subr.mxu0 %v1139
        %3026 = vmatpush1.msra.mxu0 %v1138
        %3027 = vmatprep.subr.mxu0 %v1157
        %3028 = vmatpush1.msra.mxu0 %v1156
        %3029 = vmatprep.subr.mxu0 %v1175
        %3030 = vmatpush1.msra.mxu0 %v1174
        %3031 = vmatprep.subr.mxu0 %v1193
        %3032 = vmatpush1.msra.mxu0 %v1192
        %3033 = vmatprep.subr.mxu0 %v1211
        %3034 = vmatpush1.msra.mxu0 %v1210
        %3035 = vmatprep.subr.mxu0 %v1229
        %3036 = vmatpush1.msra.mxu0 %v1228
        %3037 = vmatprep.subr.mxu0 %v1247
        %3038 = vmatpush1.msra.mxu0 %v1246
        %3039 = vmatprep.subr.mxu0 %v1265
        %3040 = vmatpush1.msra.mxu0 %v1264
        %3041 = vmatprep.subr.mxu0 %v1283
        %3042 = vmatpush1.msra.mxu0 %v1282
        %3043 = vmatprep.subr.mxu0 %v1301
        %3044 = vmatpush1.msra.mxu0 %v1300
        %3045 = vmatprep.subr.mxu0 %v1319
        %3046 = vmatpush1.msra.mxu0 %v1318
        %3047 = vmatprep.subr.mxu0 %v1337
        %3048 = vmatpush1.msra.mxu0 %v1336
        %3049 = vmatprep.subr.mxu0 %v1355
        %3050 = vmatpush1.msra.mxu0 %v1354
        %3051 = vmatprep.subr.mxu0 %v1373
        %3052 = vmatpush1.msra.mxu0 %v1372
        %3053 = vmatprep.subr.mxu0 %v1391
        %3054 = vmatpush1.msra.mxu0 %v1390
        %3055 = vmatprep.subr.mxu0 %v1409
        %3056 = vmatpush1.msra.mxu0 %v1408
        %3057 = vmatprep.subr.mxu0 %v1427
        %3058 = vmatpush1.msra.mxu0 %v1426
        %3059 = vmatprep.subr.mxu0 %v1445
        %3060 = vmatpush1.msra.mxu0 %v1444
        %3061 = vmatprep.subr.mxu0 %v1463
        %3062 = vmatpush1.msra.mxu0 %v1462
        %3063 = vmatprep.subr.mxu0 %v1481
        %3064 = vmatpush1.msra.mxu0 %v1480
        %3065 = vmatprep.mubr.f32.mxu0 %v897
        %3066 = vmatmul.mubr.f32.gmra.mrb[0].mxu0 %v896
        %v3067 = vpop.f32.mrb[0].mxu0
        %v3068 = vadd.f32 0.0, %v3067
        %v3069 = vpop.f32.mrb[0].mxu0
        %v3070 = vadd.f32 0.0, %v3069
        %3071 = vmatprep.mubr.f32.mxu0 %v905
        %3072 = vmatmul.mubr.f32.gmra.mrb[0].mxu0 %v904
        %v3073 = vpop.f32.mrb[0].mxu0
        %v3074 = vadd.f32 0.0, %v3073
        %v3075 = vpop.f32.mrb[0].mxu0
        %v3076 = vadd.f32 0.0, %v3075
        %3077 = vdwg.mxu0
        %3078 = vmatprep.subr.mxu0 %v1499
        %3079 = vmatpush1.msra.mxu0 %v1498
        %3080 = vmatprep.subr.mxu0 %v1517
        %3081 = vmatpush1.msra.mxu0 %v1516
        %3082 = vmatprep.subr.mxu0 %v1535
        %3083 = vmatpush1.msra.mxu0 %v1534
        %3084 = vmatprep.subr.mxu0 %v1553
        %3085 = vmatpush1.msra.mxu0 %v1552
        %3086 = vmatprep.subr.mxu0 %v1571
        %3087 = vmatpush1.msra.mxu0 %v1570
        %3088 = vmatprep.subr.mxu0 %v1589
        %3089 = vmatpush1.msra.mxu0 %v1588
        %3090 = vmatprep.subr.mxu0 %v1607
        %3091 = vmatpush1.msra.mxu0 %v1606
        %3092 = vmatprep.subr.mxu0 %v1625
        %3093 = vmatpush1.msra.mxu0 %v1624
        %3094 = vmatprep.subr.mxu0 %v1643
        %3095 = vmatpush1.msra.mxu0 %v1642
        %3096 = vmatprep.subr.mxu0 %v1661
        %3097 = vmatpush1.msra.mxu0 %v1660
        %3098 = vmatprep.subr.mxu0 %v1679
        %3099 = vmatpush1.msra.mxu0 %v1678
        %3100 = vmatprep.subr.mxu0 %v1697
        %3101 = vmatpush1.msra.mxu0 %v1696
        %3102 = vmatprep.subr.mxu0 %v1715
        %3103 = vmatpush1.msra.mxu0 %v1714
        %3104 = vmatprep.subr.mxu0 %v1733
        %3105 = vmatpush1.msra.mxu0 %v1732
        %3106 = vmatprep.subr.mxu0 %v1751
        %3107 = vmatpush1.msra.mxu0 %v1750
        %3108 = vmatprep.subr.mxu0 %v1769
        %3109 = vmatpush1.msra.mxu0 %v1768
        %3110 = vmatprep.subr.mxu0 %v1787
        %3111 = vmatpush1.msra.mxu0 %v1786
        %3112 = vmatprep.subr.mxu0 %v1805
        %3113 = vmatpush1.msra.mxu0 %v1804
        %3114 = vmatprep.subr.mxu0 %v1823
        %3115 = vmatpush1.msra.mxu0 %v1822
        %3116 = vmatprep.subr.mxu0 %v1841
        %3117 = vmatpush1.msra.mxu0 %v1840
        %3118 = vmatprep.subr.mxu0 %v1859
        %3119 = vmatpush1.msra.mxu0 %v1858
        %3120 = vmatprep.subr.mxu0 %v1877
        %3121 = vmatpush1.msra.mxu0 %v1876
        %3122 = vmatprep.subr.mxu0 %v1895
        %3123 = vmatpush1.msra.mxu0 %v1894
        %3124 = vmatprep.subr.mxu0 %v1913
        %3125 = vmatpush1.msra.mxu0 %v1912
        %3126 = vmatprep.subr.mxu0 0.0
        %3127 = vmatpush1.msra.mxu0 0.0
        %3128 = vmatprep.subr.mxu0 0.0
        %3129 = vmatpush1.msra.mxu0 0.0
        %3130 = vmatprep.subr.mxu0 0.0
        %3131 = vmatpush1.msra.mxu0 0.0
        %3132 = vmatprep.subr.mxu0 0.0
        %3133 = vmatpush1.msra.mxu0 0.0
        %3134 = vmatprep.subr.mxu0 0.0
        %3135 = vmatpush1.msra.mxu0 0.0
        %3136 = vmatprep.subr.mxu0 0.0
        %3137 = vmatpush1.msra.mxu0 0.0
        %3138 = vmatprep.subr.mxu0 0.0
        %3139 = vmatpush1.msra.mxu0 0.0
        %3140 = vmatprep.subr.mxu0 0.0
        %3141 = vmatpush1.msra.mxu0 0.0
        %3142 = vmatprep.mubr.f32.mxu0 %v1918
        %3143 = vmatmul.mubr.f32.gmra.mrb[0].mxu0 %v898
        %v3144 = vpop.f32.mrb[0].mxu0
        %v3145 = vadd.f32 %v3068, %v3144
        %v3146 = vpop.f32.mrb[0].mxu0
        %v3147 = vadd.f32 %v3070, %v3146
        %3148 = vmatprep.mubr.f32.mxu0 %v1921
        %3149 = vmatmul.mubr.f32.gmra.mrb[0].mxu0 %v906
        %v3150 = vpop.f32.mrb[0].mxu0
        %v3151 = vadd.f32 %v3074, %v3150
        %v3152 = vpop.f32.mrb[0].mxu0
        %v3153 = vadd.f32 %v3076, %v3152
        %3154 = vdwg.mxu0
        %3155 = vmatprep.subr.mxu0 %v925
        %3156 = vmatpush1.msra.mxu0 %v924
        %3157 = vmatprep.subr.mxu0 %v943
        %3158 = vmatpush1.msra.mxu0 %v942
        %3159 = vmatprep.subr.mxu0 %v961
        %3160 = vmatpush1.msra.mxu0 %v960
        %3161 = vmatprep.subr.mxu0 %v979
        %3162 = vmatpush1.msra.mxu0 %v978
        %3163 = vmatprep.subr.mxu0 %v997
        %3164 = vmatpush1.msra.mxu0 %v996
        %3165 = vmatprep.subr.mxu0 %v1015
        %3166 = vmatpush1.msra.mxu0 %v1014
        %3167 = vmatprep.subr.mxu0 %v1033
        %3168 = vmatpush1.msra.mxu0 %v1032
        %3169 = vmatprep.subr.mxu0 %v1051
        %3170 = vmatpush1.msra.mxu0 %v1050
        %3171 = vmatprep.subr.mxu0 %v1069
        %3172 = vmatpush1.msra.mxu0 %v1068
        %3173 = vmatprep.subr.mxu0 %v1087
        %3174 = vmatpush1.msra.mxu0 %v1086
        %3175 = vmatprep.subr.mxu0 %v1105
        %3176 = vmatpush1.msra.mxu0 %v1104
        %3177 = vmatprep.subr.mxu0 %v1123
        %3178 = vmatpush1.msra.mxu0 %v1122
        %3179 = vmatprep.subr.mxu0 %v1141
        %3180 = vmatpush1.msra.mxu0 %v1140
        %3181 = vmatprep.subr.mxu0 %v1159
        %3182 = vmatpush1.msra.mxu0 %v1158
        %3183 = vmatprep.subr.mxu0 %v1177
        %3184 = vmatpush1.msra.mxu0 %v1176
        %3185 = vmatprep.subr.mxu0 %v1195
        %3186 = vmatpush1.msra.mxu0 %v1194
        %3187 = vmatprep.subr.mxu0 %v1213
        %3188 = vmatpush1.msra.mxu0 %v1212
        %3189 = vmatprep.subr.mxu0 %v1231
        %3190 = vmatpush1.msra.mxu0 %v1230
        %3191 = vmatprep.subr.mxu0 %v1249
        %3192 = vmatpush1.msra.mxu0 %v1248
        %3193 = vmatprep.subr.mxu0 %v1267
        %3194 = vmatpush1.msra.mxu0 %v1266
        %3195 = vmatprep.subr.mxu0 %v1285
        %3196 = vmatpush1.msra.mxu0 %v1284
        %3197 = vmatprep.subr.mxu0 %v1303
        %3198 = vmatpush1.msra.mxu0 %v1302
        %3199 = vmatprep.subr.mxu0 %v1321
        %3200 = vmatpush1.msra.mxu0 %v1320
        %3201 = vmatprep.subr.mxu0 %v1339
        %3202 = vmatpush1.msra.mxu0 %v1338
        %3203 = vmatprep.subr.mxu0 %v1357
        %3204 = vmatpush1.msra.mxu0 %v1356
        %3205 = vmatprep.subr.mxu0 %v1375
        %3206 = vmatpush1.msra.mxu0 %v1374
        %3207 = vmatprep.subr.mxu0 %v1393
        %3208 = vmatpush1.msra.mxu0 %v1392
        %3209 = vmatprep.subr.mxu0 %v1411
        %3210 = vmatpush1.msra.mxu0 %v1410
        %3211 = vmatprep.subr.mxu0 %v1429
        %3212 = vmatpush1.msra.mxu0 %v1428
        %3213 = vmatprep.subr.mxu0 %v1447
        %3214 = vmatpush1.msra.mxu0 %v1446
        %3215 = vmatprep.subr.mxu0 %v1465
        %3216 = vmatpush1.msra.mxu0 %v1464
        %3217 = vmatprep.subr.mxu0 %v1483
        %3218 = vmatpush1.msra.mxu0 %v1482
        %3219 = vmatprep.mubr.f32.mxu0 %v897
        %3220 = vmatmul.mubr.f32.gmra.mrb[0].mxu0 %v896
        %v3221 = vpop.f32.mrb[0].mxu0
        %v3222 = vadd.f32 0.0, %v3221
        %v3223 = vpop.f32.mrb[0].mxu0
        %v3224 = vadd.f32 0.0, %v3223
        %3225 = vmatprep.mubr.f32.mxu0 %v905
        %3226 = vmatmul.mubr.f32.gmra.mrb[0].mxu0 %v904
        %v3227 = vpop.f32.mrb[0].mxu0
        %v3228 = vadd.f32 0.0, %v3227
        %v3229 = vpop.f32.mrb[0].mxu0
        %v3230 = vadd.f32 0.0, %v3229
        %3231 = vdwg.mxu0
        %3232 = vmatprep.subr.mxu0 %v1501
        %3233 = vmatpush1.msra.mxu0 %v1500
        %3234 = vmatprep.subr.mxu0 %v1519
        %3235 = vmatpush1.msra.mxu0 %v1518
        %3236 = vmatprep.subr.mxu0 %v1537
        %3237 = vmatpush1.msra.mxu0 %v1536
        %3238 = vmatprep.subr.mxu0 %v1555
        %3239 = vmatpush1.msra.mxu0 %v1554
        %3240 = vmatprep.subr.mxu0 %v1573
        %3241 = vmatpush1.msra.mxu0 %v1572
        %3242 = vmatprep.subr.mxu0 %v1591
        %3243 = vmatpush1.msra.mxu0 %v1590
        %3244 = vmatprep.subr.mxu0 %v1609
        %3245 = vmatpush1.msra.mxu0 %v1608
        %3246 = vmatprep.subr.mxu0 %v1627
        %3247 = vmatpush1.msra.mxu0 %v1626
        %3248 = vmatprep.subr.mxu0 %v1645
        %3249 = vmatpush1.msra.mxu0 %v1644
        %3250 = vmatprep.subr.mxu0 %v1663
        %3251 = vmatpush1.msra.mxu0 %v1662
        %3252 = vmatprep.subr.mxu0 %v1681
        %3253 = vmatpush1.msra.mxu0 %v1680
        %3254 = vmatprep.subr.mxu0 %v1699
        %3255 = vmatpush1.msra.mxu0 %v1698
        %3256 = vmatprep.subr.mxu0 %v1717
        %3257 = vmatpush1.msra.mxu0 %v1716
        %3258 = vmatprep.subr.mxu0 %v1735
        %3259 = vmatpush1.msra.mxu0 %v1734
        %3260 = vmatprep.subr.mxu0 %v1753
        %3261 = vmatpush1.msra.mxu0 %v1752
        %3262 = vmatprep.subr.mxu0 %v1771
        %3263 = vmatpush1.msra.mxu0 %v1770
        %3264 = vmatprep.subr.mxu0 %v1789
        %3265 = vmatpush1.msra.mxu0 %v1788
        %3266 = vmatprep.subr.mxu0 %v1807
        %3267 = vmatpush1.msra.mxu0 %v1806
        %3268 = vmatprep.subr.mxu0 %v1825
        %3269 = vmatpush1.msra.mxu0 %v1824
        %3270 = vmatprep.subr.mxu0 %v1843
        %3271 = vmatpush1.msra.mxu0 %v1842
        %3272 = vmatprep.subr.mxu0 %v1861
        %3273 = vmatpush1.msra.mxu0 %v1860
        %3274 = vmatprep.subr.mxu0 %v1879
        %3275 = vmatpush1.msra.mxu0 %v1878
        %3276 = vmatprep.subr.mxu0 %v1897
        %3277 = vmatpush1.msra.mxu0 %v1896
        %3278 = vmatprep.subr.mxu0 %v1915
        %3279 = vmatpush1.msra.mxu0 %v1914
        %3280 = vmatprep.subr.mxu0 0.0
        %3281 = vmatpush1.msra.mxu0 0.0
        %3282 = vmatprep.subr.mxu0 0.0
        %3283 = vmatpush1.msra.mxu0 0.0
        %3284 = vmatprep.subr.mxu0 0.0
        %3285 = vmatpush1.msra.mxu0 0.0
        %3286 = vmatprep.subr.mxu0 0.0
        %3287 = vmatpush1.msra.mxu0 0.0
        %3288 = vmatprep.subr.mxu0 0.0
        %3289 = vmatpush1.msra.mxu0 0.0
        %3290 = vmatprep.subr.mxu0 0.0
        %3291 = vmatpush1.msra.mxu0 0.0
        %3292 = vmatprep.subr.mxu0 0.0
        %3293 = vmatpush1.msra.mxu0 0.0
        %3294 = vmatprep.subr.mxu0 0.0
        %3295 = vmatpush1.msra.mxu0 0.0
        %3296 = vmatprep.mubr.f32.mxu0 %v1918
        %3297 = vmatmul.mubr.f32.gmra.mrb[0].mxu0 %v898
        %v3298 = vpop.f32.mrb[0].mxu0
        %v3299 = vadd.f32 %v3222, %v3298
        %v3300 = vpop.f32.mrb[0].mxu0
        %v3301 = vadd.f32 %v3224, %v3300
        %3302 = vmatprep.mubr.f32.mxu0 %v1921
        %3303 = vmatmul.mubr.f32.gmra.mrb[0].mxu0 %v906
        %v3304 = vpop.f32.mrb[0].mxu0
        %v3305 = vadd.f32 %v3228, %v3304
        %v3306 = vpop.f32.mrb[0].mxu0
        %v3307 = vadd.f32 %v3230, %v3306
        %3308 = vdwg.mxu0
        %v3321 = vrot.slane %v2529, 1
        %v3322 = vrot.slane %v2535, 1
        %v3323 = vsel %vm800, %v3321, %v3322
        %v3324 = vrot.slane %v2531, 1
        %v3325 = vrot.slane %v2537, 1
        %v3326 = vsel %vm800, %v3324, %v3325
        %v3327 = vrot.slane %v2683, 1
        %v3328 = vrot.slane %v2689, 1
        %v3329 = vsel %vm800, %v3327, %v3328
        %v3330 = vrot.slane %v2685, 1
        %v3331 = vrot.slane %v2691, 1
        %v3332 = vsel %vm800, %v3330, %v3331
        %v3333 = vrot.slane %v2837, 1
        %v3334 = vrot.slane %v2843, 1
        %v3335 = vsel %vm800, %v3333, %v3334
        %v3336 = vrot.slane %v2839, 1
        %v3337 = vrot.slane %v2845, 1
        %v3338 = vsel %vm800, %v3336, %v3337
        %v3351 = vadd.f32 %v2067, %v3323
        %v3352 = vadd.f32 %v2069, %v3326
        %v3353 = vadd.f32 %v2221, %v3329
        %v3354 = vadd.f32 %v2223, %v3332
        %v3355 = vadd.f32 %v2375, %v3335
        %v3356 = vadd.f32 %v2377, %v3338
        %v3357 = vadd.f32 %v2073, %v3322
        %v3358 = vadd.f32 %v2075, %v3325
        %v3359 = vadd.f32 %v2227, %v3328
        %v3360 = vadd.f32 %v2229, %v3331
        %v3361 = vadd.f32 %v2381, %v3334
        %v3362 = vadd.f32 %v2383, %v3337
        %v3375 = vrot.slane %v2991, 2
        %v3376 = vrot.slane %v2997, 2
        %v3377 = vsel %vm837, %v3375, %v3376
        %v3378 = vrot.slane %v2993, 2
        %v3379 = vrot.slane %v2999, 2
        %v3380 = vsel %vm837, %v3378, %v3379
        %v3381 = vrot.slane %v3145, 2
        %v3382 = vrot.slane %v3151, 2
        %v3383 = vsel %vm837, %v3381, %v3382
        %v3384 = vrot.slane %v3147, 2
        %v3385 = vrot.slane %v3153, 2
        %v3386 = vsel %vm837, %v3384, %v3385
        %v3387 = vrot.slane %v3299, 2
        %v3388 = vrot.slane %v3305, 2
        %v3389 = vsel %vm837, %v3387, %v3388
        %v3390 = vrot.slane %v3301, 2
        %v3391 = vrot.slane %v3307, 2
        %v3392 = vsel %vm837, %v3390, %v3391
        %v3405 = vadd.f32 %v3351, %v3377
        %v3406 = vadd.f32 %v3352, %v3380
        %v3407 = vadd.f32 %v3353, %v3383
        %v3408 = vadd.f32 %v3354, %v3386
        %v3409 = vadd.f32 %v3355, %v3389
        %v3410 = vadd.f32 %v3356, %v3392
        %v3411 = vadd.f32 %v3357, %v3376
        %v3412 = vadd.f32 %v3358, %v3379
        %v3413 = vadd.f32 %v3359, %v3382
        %v3414 = vadd.f32 %v3360, %v3385
        %v3415 = vadd.f32 %v3361, %v3388
        %v3416 = vadd.f32 %v3362, %v3391
        %v3417 = vld [vmem:[#allocation10] sm:$0x3f]
        %v3419 = vlaneseq
        %v3420 = vshrl.u32 %v3419, 7
        %v3421 = vsub.s32 0, %v3420
        %v3422 = vrot.slane %v3417, %v3421
        %v3423 = vlaneseq
        %v3424 = vshrl.u32 %v3423, 7
        %v3425 = vsub.s32 1, %v3424
        %v3426 = vrot.slane %v3417, %v3425
        %v3427 = vlaneseq
        %v3428 = vshrl.u32 %v3427, 7
        %v3429 = vsub.s32 2, %v3428
        %v3430 = vrot.slane %v3417, %v3429
        %v3431 = vlaneseq
        %v3432 = vshrl.u32 %v3431, 7
        %v3433 = vsub.s32 3, %v3432
        %v3434 = vrot.slane %v3417, %v3433
        %v3435 = vlaneseq
        %v3436 = vshrl.u32 %v3435, 7
        %v3437 = vsub.s32 4, %v3436
        %v3438 = vrot.slane %v3417, %v3437
        %v3439 = vlaneseq
        %v3440 = vshrl.u32 %v3439, 7
        %v3441 = vsub.s32 5, %v3440
        %v3442 = vrot.slane %v3417, %v3441
        %v3449 = vadd.f32 %v3405, %v3422
        %v3450 = vadd.f32 %v3406, %v3426
        %v3451 = vadd.f32 %v3407, %v3430
        %v3452 = vadd.f32 %v3408, %v3434
        %v3453 = vadd.f32 %v3409, %v3438
        %v3454 = vadd.f32 %v3410, %v3442
        %v3455 = vadd.f32 %v3411, %v3422
        %v3456 = vadd.f32 %v3412, %v3426
        %v3457 = vadd.f32 %v3413, %v3430
        %v3458 = vadd.f32 %v3414, %v3434
        %v3459 = vadd.f32 %v3415, %v3438
        %v3460 = vadd.f32 %v3416, %v3442
        %v3461 = vmax.f32 %v3449, 0.0
        %v3462 = vmax.f32 %v3450, 0.0
        %v3463 = vmax.f32 %v3451, 0.0
        %v3464 = vmax.f32 %v3452, 0.0
        %v3465 = vmax.f32 %v3453, 0.0
        %v3466 = vmax.f32 %v3454, 0.0
        %v3467 = vmax.f32 %v3455, 0.0
        %v3468 = vmax.f32 %v3456, 0.0
        %v3469 = vmax.f32 %v3457, 0.0
        %v3470 = vmax.f32 %v3458, 0.0
        %v3471 = vmax.f32 %v3459, 0.0
        %v3472 = vmax.f32 %v3460, 0.0
        %3475 = vrot.lane.b32.xlu0 %v3461, 64
        %v3476 = vpop.permute.xlu0 %3475
        %3477 = vrot.lane.b32.xlu0 %v3467, 64
        %v3478 = vpop.permute.xlu0 %3477
        %v3481 = vmax.f32 %v3461, %v3476
        %v3482 = vmax.f32 %v3467, %v3478
        %3485 = vrot.lane.b32.xlu0 %v3462, 64
        %v3486 = vpop.permute.xlu0 %3485
        %3487 = vrot.lane.b32.xlu0 %v3468, 64
        %v3488 = vpop.permute.xlu0 %3487
        %v3491 = vmax.f32 %v3462, %v3486
        %v3492 = vmax.f32 %v3468, %v3488
        %3495 = vrot.lane.b32.xlu0 %v3463, 64
        %v3496 = vpop.permute.xlu0 %3495
        %3497 = vrot.lane.b32.xlu0 %v3469, 64
        %v3498 = vpop.permute.xlu0 %3497
        %v3501 = vmax.f32 %v3463, %v3496
        %v3502 = vmax.f32 %v3469, %v3498
        %3505 = vrot.lane.b32.xlu0 %v3464, 64
        %v3506 = vpop.permute.xlu0 %3505
        %3507 = vrot.lane.b32.xlu0 %v3470, 64
        %v3508 = vpop.permute.xlu0 %3507
        %v3511 = vmax.f32 %v3464, %v3506
        %v3512 = vmax.f32 %v3470, %v3508
        %3515 = vrot.lane.b32.xlu0 %v3465, 64
        %v3516 = vpop.permute.xlu0 %3515
        %3517 = vrot.lane.b32.xlu0 %v3471, 64
        %v3518 = vpop.permute.xlu0 %3517
        %v3521 = vmax.f32 %v3465, %v3516
        %v3522 = vmax.f32 %v3471, %v3518
        %3525 = vrot.lane.b32.xlu0 %v3466, 64
        %v3526 = vpop.permute.xlu0 %3525
        %3527 = vrot.lane.b32.xlu0 %v3472, 64
        %v3528 = vpop.permute.xlu0 %3527
        %v3531 = vmax.f32 %v3466, %v3526
        %v3532 = vmax.f32 %v3472, %v3528
        %3535 = vrot.lane.b32.xlu0 %v3491, 64
        %v3536 = vpop.permute.xlu0 %3535
        %3537 = vrot.lane.b32.xlu0 %v3492, 64
        %v3538 = vpop.permute.xlu0 %3537
        %3543 = vrot.lane.b32.xlu0 %v3511, 64
        %v3544 = vpop.permute.xlu0 %3543
        %3545 = vrot.lane.b32.xlu0 %v3512, 64
        %v3546 = vpop.permute.xlu0 %3545
        %3551 = vrot.lane.b32.xlu0 %v3531, 64
        %v3552 = vpop.permute.xlu0 %3551
        %3553 = vrot.lane.b32.xlu0 %v3532, 64
        %v3554 = vpop.permute.xlu0 %3553
        %v3557 = vsel %vm1916, %v3481, %v3536
        %v3558 = vsel %vm1916, %v3482, %v3538
        %v3559 = vsel %vm1916, %v3501, %v3544
        %v3560 = vsel %vm1916, %v3502, %v3546
        %v3561 = vsel %vm1916, %v3521, %v3552
        %v3562 = vsel %vm1916, %v3522, %v3554
        %v3566 = vrot.slane %v3557, 1
        %v3567 = vrot.slane %v3559, 1
        %v3568 = vrot.slane %v3561, 1
        %v3572 = vmax.f32 %v3557, %v3566
        %v3573 = vmax.f32 %v3559, %v3567
        %v3574 = vmax.f32 %v3561, %v3568
        %v3578 = vrot.slane %v3558, 1
        %v3579 = vrot.slane %v3560, 1
        %v3580 = vrot.slane %v3562, 1
        %v3584 = vmax.f32 %v3558, %v3578
        %v3585 = vmax.f32 %v3560, %v3579
        %v3586 = vmax.f32 %v3562, %v3580
        %v3590 = vrot.slane %v3572, 1
        %v3591 = vrot.slane %v3573, 1
        %v3592 = vrot.slane %v3574, 1
        %v3596 = vrot.slane %v3572, 2
        %v3597 = vrot.slane %v3573, 2
        %v3598 = vrot.slane %v3574, 2
        %v3602 = vrot.slane %v3572, 3
        %v3603 = vrot.slane %v3573, 3
        %v3604 = vrot.slane %v3574, 3
        %v3611 = vrot.slane %v3584, 4
        %v3612 = vrot.slane %v3585, 4
        %v3613 = vrot.slane %v3586, 4
        %v3617 = vrot.slane %v3584, 5
        %v3618 = vrot.slane %v3585, 5
        %v3619 = vrot.slane %v3586, 5
        %vm3623 = vcmask 1040384
        %v3624 = vsel %vm3623, %v3572, %v3590
        %v3625 = vsel %vm3623, %v3573, %v3591
        %v3626 = vsel %vm3623, %v3574, %v3592
        %vm3627 = vcmask 1041408
        %v3628 = vsel %vm3627, %v3624, %v3596
        %v3629 = vsel %vm3627, %v3625, %v3597
        %v3630 = vsel %vm3627, %v3626, %v3598
        %vm3631 = vcmask 1042432
        %v3632 = vsel %vm3631, %v3628, %v3602
        %v3633 = vsel %vm3631, %v3629, %v3603
        %v3634 = vsel %vm3631, %v3630, %v3604
        %vm3635 = vcmask 1043456
        %v3636 = vsel %vm3635, %v3632, %v3611
        %v3637 = vsel %vm3635, %v3633, %v3612
        %v3638 = vsel %vm3635, %v3634, %v3613
        %vm3639 = vcmask 1044480
        %v3640 = vsel %vm3639, %v3636, %v3617
        %v3641 = vsel %vm3639, %v3637, %v3618
        %v3642 = vsel %vm3639, %v3638, %v3619
        %3643 = vst [vmem:[%s296] sm:$0x3f] %v3640
        %3644 = vst [vmem:[%s296 + $0x8] sm:$0x3f] %v3641
        %3645 = vst [vmem:[%s296 + $0x10] sm:$0x3f] %v3642
        %s3646 = sand.u32 %s142, 1
        %s3647 = scalar_lea.sflag [#allocation4], %s3646
        %s3648 = sand.u32 %s142, 1
        %s3649 = smul.addr %s3648, 24
        %s3650 = scalar_lea.vmem [#allocation11], %s3649
        // Predicated region
        $region61: #{tpu_custom_call.1} parent=39 // pred_check
          %p3651 = pneg %p152
        $region62: #{tpu_custom_call.1} parent=39 // pred_check_branch
          %3653 = sbr.rel (%p3651) target = $region64
        $region63: #{tpu_custom_call.1} parent=39 // pred_region
          %s3655 = ssub.s32 384, 384
          %3656 = vsyncadd %s3647, %s3655
          %s3657 = smul.addr %s24, 3
          %s3658 = smul.addr %s3657, 128
          %s3659 = scalar_lea.hbm %s5, %s3658
          %s3661 = sshll.u32 %s3650, 4
          %s3662 = int_to_ptr.vmem [resolvable:$true] %s3661
          %3664 = dma.vmem_to_hbm [thread:$0]  %s3662, 384, %s3659, %s3647
        $region64: #{tpu_custom_call.1} parent=39 // pred_fallthru
          _
      $region40: #{tpu_custom_call.1} parent=5 // pred_fallthru
        _
      %p3665 = scmp.le.s32.totalorder 2, %s19
      // Predicated region
      $region65: #{tpu_custom_call.1} parent=5 // pred_check
        %p3666 = pneg %p3665
      $region66: #{tpu_custom_call.1} parent=5 // pred_check_branch
        %3668 = sbr.rel (%p3666) target = $region68
      $region67: #{tpu_custom_call.1} parent=5 // pred_region
        %s3669 = ssub.s32 %s19, 2
        // Predicated region
        $region69: #{tpu_custom_call.1} parent=67 // pred_check
          %p3670 = pneg %p158
        $region70: #{tpu_custom_call.1} parent=67 // pred_check_branch
          %3672 = sbr.rel (%p3670) target = $region72
        $region71: #{tpu_custom_call.1} parent=67 // pred_region
          %s3673 = sand.u32 %s143, 1
          %s3674 = scalar_lea.sflag [#allocation4], %s3673
          %s3675 = sand.u32 %s143, 1
          %s3676 = smul.addr %s3675, 24
          %s3677 = scalar_lea.vmem [#allocation11], %s3676
          %3678 = dma.done %s3674, 384
        $region72: #{tpu_custom_call.1} parent=67 // pred_fallthru
          _
      $region68: #{tpu_custom_call.1} parent=5 // pred_fallthru
        _
    $region6: #{tpu_custom_call.1} parent=1 // loop_footer
      %s23 = sadd.s32 1, %s19
    $region7: #{tpu_custom_call.1} parent=1 // loop_footer_branch
      %18 = sbr.rel target = $region3
    $region8: #{tpu_custom_call.1} parent=1 // loop_exit
      _
    %3679 = vsyncpa [#allocation3], 1
    %s3680 = scalar_lea.sflag [#allocation3], 1
    %3681 = vsyncpa %s3680, 1
    %3682 = vsyncpa [#allocation6], 1
    %3683 = vsyncpa [#allocation9], 1
    %3684 = vsyncpa [#allocation4], 1
    %s3685 = scalar_lea.sflag [#allocation4], 1
    %3686 = vsyncpa %s3685, 1

</llo_original>
